<compile_context>
chip_gen: v5e
topology: v5e:2x2
jax: 0.10.0
libtpu: 0.0.40
codegen_flags: <defaults>
</compile_context>

<pallas_src>
import functools
import math

import jax
import jax.numpy as jnp
from jax.experimental import pallas as pl
from jax.experimental.pallas import tpu as pltpu

PAD_INDEX = 0
NEG_INF = -1e30            # stands in for float('-inf') in PyTorch masks
LN_EPS = 1e-5
DIM_FF = 2048              # nn.Transformer default dim_feedforward


# --------------------------------------------------------------------------
# tiling / padding helpers
# --------------------------------------------------------------------------

def _round_up(x, m):
    return ((x + m - 1) // m) * m


def _row_pad_target(m):
    """Pad rows minimally (8) for small M, to 256 for large M so that big,
    aligned tiles always exist (never fall back to a degenerate tiny tile)."""
    return _round_up(m, 8) if m <= 512 else _round_up(m, 256)


def _pick_tile(dim, max_tile, align):
    """Largest multiple of `align` <= max_tile that divides `dim`.
    `dim` is guaranteed to be a multiple of `align` by the padding helpers."""
    t = min(max_tile, dim)
    t = (t // align) * align
    while t > align and dim % t:
        t -= align
    return max(t, align)


def _pad_rows(a, mp):
    m = a.shape[0]
    return a if m == mp else jnp.pad(a, ((0, mp - m), (0, 0)))


# --------------------------------------------------------------------------
# Pallas kernels
# --------------------------------------------------------------------------

def _linear_kernel(x_ref, w_ref, b_ref, o_ref, *, activation):
    x = x_ref[...].astype(jnp.bfloat16)                 # bf16 in, f32 accumulate
    y = jnp.dot(x, w_ref[...], preferred_element_type=jnp.float32) + b_ref[...]
    if activation == "relu":
        y = jnp.maximum(y, 0.0)
    o_ref[...] = y.astype(o_ref.dtype)


def linear(x, w, b, activation=None, tm_max=512, tn_max=512):
    """y = x @ w + b.  x: (M, K) f32; w: (K, N) bf16 (pre-transposed); b: (N,) f32.
    Rows padded to 8/256 multiples, N padded to a 128 multiple (lane-dense
    stores, no full-dim weight fallback); padding sliced off afterwards."""
    M, K = x.shape
    N = w.shape[1]
    Mp = _row_pad_target(M)
    Np = _round_up(N, 128)
    xp = _pad_rows(x, Mp)
    wp = w if Np == N else jnp.pad(w, ((0, 0), (0, Np - N)))
    bp = b if Np == N else jnp.pad(b, (0, Np - N))
    tm = _pick_tile(Mp, tm_max, 8)
    tn = _pick_tile(Np, tn_max, 128)
    out = pl.pallas_call(
        functools.partial(_linear_kernel, activation=activation),
        out_shape=jax.ShapeDtypeStruct((Mp, Np), jnp.float32),
        grid=(Mp // tm, Np // tn),
        in_specs=[pl.BlockSpec((tm, K), lambda i, j: (i, 0)),
                  pl.BlockSpec((K, tn), lambda i, j: (0, j)),
                  pl.BlockSpec((1, tn), lambda i, j: (0, j))],
        out_specs=pl.BlockSpec((tm, tn), lambda i, j: (i, j)),
        compiler_params=pltpu.CompilerParams(
            dimension_semantics=("parallel", "parallel")),
    )(xp, wp, bp.reshape(1, Np))
    if Mp != M or Np != N:
        out = out[:M, :N]
    return out


def _linear_add_ln_kernel(x_ref, w_ref, b_ref, r_ref, g_ref, beta_ref, o_ref):
    # fused: LayerNorm(residual + x @ w + b); LN math rides in VPU/EUP slots
    x = x_ref[...].astype(jnp.bfloat16)
    y = jnp.dot(x, w_ref[...], preferred_element_type=jnp.float32)
    z = r_ref[...] + y + b_ref[...]
    mu = jnp.mean(z, axis=-1, keepdims=True)
    var = jnp.mean(jnp.square(z - mu), axis=-1, keepdims=True)   # biased, as torch
    o_ref[...] = ((z - mu) * jax.lax.rsqrt(var + LN_EPS) * g_ref[...]
                  + beta_ref[...]).astype(o_ref.dtype)


def linear_add_ln(x, w, b, residual, gamma, beta, tm_max=512):
    """LayerNorm(residual + x @ w + b).  N un-tiled (LN reduction spans it)."""
    M, K = x.shape
    N = w.shape[1]
    Mp = _row_pad_target(M)
    xp, rp = _pad_rows(x, Mp), _pad_rows(residual, Mp)
    tm = _pick_tile(Mp, tm_max, 8)
    out = pl.pallas_call(
        _linear_add_ln_kernel,
        out_shape=jax.ShapeDtypeStruct((Mp, N), jnp.float32),
        grid=(Mp // tm,),
        in_specs=[pl.BlockSpec((tm, K), lambda i: (i, 0)),
                  pl.BlockSpec((K, N), lambda i: (0, 0)),
                  pl.BlockSpec((1, N), lambda i: (0, 0)),
                  pl.BlockSpec((tm, N), lambda i: (i, 0)),
                  pl.BlockSpec((1, N), lambda i: (0, 0)),
                  pl.BlockSpec((1, N), lambda i: (0, 0))],
        out_specs=pl.BlockSpec((tm, N), lambda i: (i, 0)),
        compiler_params=pltpu.CompilerParams(dimension_semantics=("parallel",)),
    )(xp, w, b.reshape(1, N), rp, gamma.reshape(1, N), beta.reshape(1, N))
    return out[:M] if Mp != M else out


def _ffn_add_ln_kernel(x_ref, w1_ref, b1_ref, w2_ref, b2_ref, r_ref,
                       g_ref, beta_ref, o_ref):
    # fused FFN: LayerNorm(residual + relu(x @ W1 + b1) @ W2 + b2)
    # the (tm, FF) intermediate never leaves VMEM.
    x = x_ref[...].astype(jnp.bfloat16)
    h = jnp.dot(x, w1_ref[...], preferred_element_type=jnp.float32) + b1_ref[...]
    h = jnp.maximum(h, 0.0)
    y = jnp.dot(h.astype(jnp.bfloat16), w2_ref[...],
                preferred_element_type=jnp.float32)
    z = r_ref[...] + y + b2_ref[...]
    mu = jnp.mean(z, axis=-1, keepdims=True)
    var = jnp.mean(jnp.square(z - mu), axis=-1, keepdims=True)
    o_ref[...] = ((z - mu) * jax.lax.rsqrt(var + LN_EPS) * g_ref[...]
                  + beta_ref[...]).astype(o_ref.dtype)


def ffn_add_ln(x, w1, b1, w2, b2, residual, gamma, beta, tm_max=256):
    """Fused feed-forward block: LN(res + relu(x@W1+b1)@W2 + b2).
    Both weights stay resident per M tile (bf16: ~4 MiB at D=512/FF=2048)."""
    M, D = x.shape
    FF = w1.shape[1]
    Mp = _row_pad_target(M)
    xp, rp = _pad_rows(x, Mp), _pad_rows(residual, Mp)
    tm = _pick_tile(Mp, tm_max, 8)
    out = pl.pallas_call(
        _ffn_add_ln_kernel,
        out_shape=jax.ShapeDtypeStruct((Mp, D), jnp.float32),
        grid=(Mp // tm,),
        in_specs=[pl.BlockSpec((tm, D), lambda i: (i, 0)),
                  pl.BlockSpec((D, FF), lambda i: (0, 0)),
                  pl.BlockSpec((1, FF), lambda i: (0, 0)),
                  pl.BlockSpec((FF, D), lambda i: (0, 0)),
                  pl.BlockSpec((1, D), lambda i: (0, 0)),
                  pl.BlockSpec((tm, D), lambda i: (i, 0)),
                  pl.BlockSpec((1, D), lambda i: (0, 0)),
                  pl.BlockSpec((1, D), lambda i: (0, 0))],
        out_specs=pl.BlockSpec((tm, D), lambda i: (i, 0)),
        compiler_params=pltpu.CompilerParams(dimension_semantics=("parallel",)),
    )(xp, w1, b1.reshape(1, FF), w2, b2.reshape(1, D), rp,
      gamma.reshape(1, D), beta.reshape(1, D))
    return out[:M] if Mp != M else out


def _layernorm_kernel(x_ref, g_ref, b_ref, o_ref):
    x = x_ref[...]
    mu = jnp.mean(x, axis=-1, keepdims=True)
    var = jnp.mean(jnp.square(x - mu), axis=-1, keepdims=True)
    o_ref[...] = ((x - mu) * jax.lax.rsqrt(var + LN_EPS) * g_ref[...]
                  + b_ref[...]).astype(o_ref.dtype)


def layernorm(x, g, b, tm_max=512):
    M, D = x.shape
    Mp = _row_pad_target(M)
    xp = _pad_rows(x, Mp)
    tm = _pick_tile(Mp, tm_max, 8)
    out = pl.pallas_call(
        _layernorm_kernel,
        out_shape=jax.ShapeDtypeStruct((Mp, D), jnp.float32),
        grid=(Mp // tm,),
        in_specs=[pl.BlockSpec((tm, D), lambda i: (i, 0)),
                  pl.BlockSpec((1, D), lambda i: (0, 0)),
                  pl.BlockSpec((1, D), lambda i: (0, 0))],
        out_specs=pl.BlockSpec((tm, D), lambda i: (i, 0)),
        compiler_params=pltpu.CompilerParams(dimension_semantics=("parallel",)),
    )(xp, g.reshape(1, D), b.reshape(1, D))
    return out[:M] if Mp != M else out


# --------------------------------------------------------------------------
# attention kernels: consume the packed projection output directly
# (no XLA transposes; heads split with static lane slices in-kernel)
# --------------------------------------------------------------------------

def _attn_heads(qm, kvm, mask, *, H, Dh, scale, causal, q_off, k_off, v_off):
    """qm: (Sq, Cq) f32 with Q at columns [q_off, q_off+H*Dh);
    kvm: (Sk, Ckv) with K at [k_off, ...) and V at [v_off, ...);
    mask: (1, Sk) additive float.  Heads processed sequentially (one (Sq,Sk)
    score tile live at a time), result re-packed to (Sq, H*Dh)."""
    Sq, Sk = qm.shape[0], kvm.shape[0]
    if causal:
        row = jax.lax.broadcasted_iota(jnp.int32, (Sq, Sk), 0)
        col = jax.lax.broadcasted_iota(jnp.int32, (Sq, Sk), 1)
        cmask = jnp.where(col > row, NEG_INF, 0.0).astype(jnp.float32)
    nt_dims = (((1,), (1,)), ((), ()))            # q @ k^T without transposing k
    outs = []
    for h in range(H):
        q = qm[:, q_off + h * Dh: q_off + (h + 1) * Dh].astype(jnp.bfloat16)
        k = kvm[:, k_off + h * Dh: k_off + (h + 1) * Dh].astype(jnp.bfloat16)
        v = kvm[:, v_off + h * Dh: v_off + (h + 1) * Dh].astype(jnp.bfloat16)
        s = jax.lax.dot_general(q, k, nt_dims,
                                preferred_element_type=jnp.float32) * scale
        s = s + mask
        if causal:
            s = s + cmask
        s = s - jnp.max(s, axis=-1, keepdims=True)
        p = jnp.exp(s)
        p = p * pl.reciprocal(jnp.sum(p, axis=-1, keepdims=True), approx=True)
        outs.append(jnp.dot(p.astype(jnp.bfloat16), v,
                            preferred_element_type=jnp.float32))
    return jnp.concatenate(outs, axis=-1)


def _self_attn_kernel(qkv_ref, kpm_ref, o_ref, *, H, Dh, scale, causal):
    qkv = qkv_ref[0]                                    # (S, 3D)
    D = H * Dh
    o_ref[0] = _attn_heads(qkv, qkv, kpm_ref[0], H=H, Dh=Dh, scale=scale,
                           causal=causal, q_off=0, k_off=D, v_off=2 * D
                           ).astype(o_ref.dtype)


def _cross_attn_kernel(q_ref, kv_ref, kpm_ref, o_ref, *, H, Dh, scale):
    D = H * Dh
    o_ref[0] = _attn_heads(q_ref[0], kv_ref[0], kpm_ref[0], H=H, Dh=Dh,
                           scale=scale, causal=False, q_off=0, k_off=0,
                           v_off=D).astype(o_ref.dtype)


def self_attention(qkv_flat, kpm, B, S, H, Dh, causal):
    """qkv_flat: (B*S, 3D) packed QKV projection output (row-major, free reshape)."""
    D = H * Dh
    qkv = qkv_flat.reshape(B, S, 3 * D)                 # bitcast, no copy
    scale = 1.0 / math.sqrt(Dh)
    out = pl.pallas_call(
        functools.partial(_self_attn_kernel, H=H, Dh=Dh, scale=scale,
                          causal=causal),
        out_shape=jax.ShapeDtypeStruct((B, S, D), jnp.float32),
        grid=(B,),
        in_specs=[pl.BlockSpec((1, S, 3 * D), lambda b: (b, 0, 0)),
                  pl.BlockSpec((1, 1, S), lambda b: (b, 0, 0))],
        out_specs=pl.BlockSpec((1, S, D), lambda b: (b, 0, 0)),
        compiler_params=pltpu.CompilerParams(dimension_semantics=("parallel",)),
    )(qkv, kpm)
    return out.reshape(B * S, D)


def cross_attention(q_flat, kv_flat, kpm, B, Sq, Sk, H, Dh):
    D = H * Dh
    q = q_flat.reshape(B, Sq, D)
    kv = kv_flat.reshape(B, Sk, 2 * D)
    scale = 1.0 / math.sqrt(Dh)
    out = pl.pallas_call(
        functools.partial(_cross_attn_kernel, H=H, Dh=Dh, scale=scale),
        out_shape=jax.ShapeDtypeStruct((B, Sq, D), jnp.float32),
        grid=(B,),
        in_specs=[pl.BlockSpec((1, Sq, D), lambda b: (b, 0, 0)),
                  pl.BlockSpec((1, Sk, 2 * D), lambda b: (b, 0, 0)),
                  pl.BlockSpec((1, 1, Sk), lambda b: (b, 0, 0))],
        out_specs=pl.BlockSpec((1, Sq, D), lambda b: (b, 0, 0)),
        compiler_params=pltpu.CompilerParams(dimension_semantics=("parallel",)),
    )(q, kv, kpm)
    return out.reshape(B * Sq, D)


# --------------------------------------------------------------------------
# Transformer built from the kernels above (glue in plain JAX)
# --------------------------------------------------------------------------

def mha_self(x, p, kpm, causal, H, ln_g, ln_b):
    """Self-attention + fused out-proj/residual/LayerNorm (PyTorch post-norm)."""
    B, S, D = x.shape
    Dh = D // H
    xf = x.reshape(B * S, D)
    qkv = linear(xf, p["qkv_w"], p["qkv_b"])             # one fused matmul
    o = self_attention(qkv, kpm, B, S, H, Dh, causal)    # (B*S, D), no transposes
    out = linear_add_ln(o, p["out_w"], p["out_b"], xf, ln_g, ln_b)
    return out.reshape(B, S, D)


def mha_cross(x_q, x_kv, p, kpm, H, ln_g, ln_b):
    B, Sq, D = x_q.shape
    Sk = x_kv.shape[1]
    Dh = D // H
    xqf = x_q.reshape(B * Sq, D)
    xkvf = x_kv.reshape(B * Sk, D)
    q = linear(xqf, p["q_w"], p["q_b"])                  # (B*Sq, D)
    kv = linear(xkvf, p["kv_w"], p["kv_b"])              # fused K/V matmul (B*Sk, 2D)
    o = cross_attention(q, kv, kpm, B, Sq, Sk, H, Dh)
    out = linear_add_ln(o, p["out_w"], p["out_b"], xqf, ln_g, ln_b)
    return out.reshape(B, Sq, D)


def encoder_layer(x, p, src_kpm, H):
    # TODO(synk): dropout (p=0.1 in nn.Transformer) implemented as identity (eval semantics).
    B, S, D = x.shape
    x = mha_self(x, p["self_attn"], src_kpm, False, H, p["norm1_g"], p["norm1_b"])
    xf = x.reshape(B * S, D)
    out = ffn_add_ln(xf, p["lin1_w"], p["lin1_b"], p["lin2_w"], p["lin2_b"],
                     xf, p["norm2_g"], p["norm2_b"])
    return out.reshape(B, S, D)


def decoder_layer(x, memory, p, tgt_kpm, mem_kpm, H):
    B, T, D = x.shape
    x = mha_self(x, p["self_attn"], tgt_kpm, True, H, p["norm1_g"], p["norm1_b"])
    x = mha_cross(x, memory, p["cross_attn"], mem_kpm, H, p["norm2_g"], p["norm2_b"])
    xf = x.reshape(B * T, D)
    out = ffn_add_ln(xf, p["lin1_w"], p["lin1_b"], p["lin2_w"], p["lin2_b"],
                     xf, p["norm3_g"], p["norm3_b"])
    return out.reshape(B, T, D)


def transformer_forward(params, source, target):
    """Exact forward() of TransformerNet (eval-mode dropout)."""
    B, S = source.shape
    T = target.shape[1]
    D = params["src_emb"].shape[1]
    H = params["heads"]

    # ---- embeddings (gather stays in JAX glue) ----
    src_x = params["src_emb"][source] + params["src_pos"][jnp.arange(S)][None]
    tgt_x = params["tgt_emb"][target] + params["tgt_pos"][jnp.arange(T)][None]

    # ---- masks: only per-key rows are passed; broadcast + causal happen in-kernel ----
    src_kpm = jnp.where(source == PAD_INDEX, NEG_INF, 0.0).astype(jnp.float32)
    src_kpm = src_kpm[:, None, :]                                  # (B, 1, S)
    # NOTE: PyTorch code casts the target key-padding mask to FLOAT (0/1), so it
    # is added (+1.0 on pad keys) rather than set to -inf -- reproduced exactly.
    tgt_kpm = (target == PAD_INDEX).astype(jnp.float32)[:, None, :]  # (B, 1, T)

    # ---- encoder ----
    mem = src_x
    for lp in params["enc_layers"]:
        mem = encoder_layer(mem, lp, src_kpm, H)
    mem = layernorm(mem.reshape(B * S, D),
                    params["enc_norm_g"], params["enc_norm_b"]).reshape(B, S, D)

    # ---- decoder ----
    x = tgt_x
    for lp in params["dec_layers"]:
        x = decoder_layer(x, mem, lp, tgt_kpm, src_kpm, H)
    x = layernorm(x.reshape(B * T, D),
                  params["dec_norm_g"], params["dec_norm_b"]).reshape(B, T, D)

    # ---- final projection ----
    V = params["fc_w"].shape[1]
    return linear(x.reshape(B * T, D), params["fc_w"], params["fc_b"]).reshape(B, T, V)


# --------------------------------------------------------------------------
# Deterministic parameter construction.  Matmul weights pre-transposed to
# (K, N) layout and stored bf16 (halves weight HBM traffic; MXU is bf16
# native); biases / LN params / embeddings stay f32.
# --------------------------------------------------------------------------

class _KeyGen:
    def __init__(self, key):
        self._key = key

    def __call__(self):
        self._key, sub = jax.random.split(self._key)
        return sub


def _w(kg, shape, scale=0.05):
    return (scale * jax.random.normal(kg(), shape, jnp.float32)).astype(jnp.bfloat16)


def _b(kg, shape, scale=0.05):
    return scale * jax.random.normal(kg(), shape, jnp.float32)


def _self_attn_params(kg, D):
    return dict(qkv_w=_w(kg, (D, 3 * D)), qkv_b=_b(kg, (3 * D,)),
                out_w=_w(kg, (D, D)), out_b=_b(kg, (D,)))


def _cross_attn_params(kg, D):
    return dict(q_w=_w(kg, (D, D)), q_b=_b(kg, (D,)),
                kv_w=_w(kg, (D, 2 * D)), kv_b=_b(kg, (2 * D,)),
                out_w=_w(kg, (D, D)), out_b=_b(kg, (D,)))


def _ffn_norm_params(kg, D, ff, n_norms):
    p = dict(lin1_w=_w(kg, (D, ff)), lin1_b=_b(kg, (ff,)),
             lin2_w=_w(kg, (ff, D)), lin2_b=_b(kg, (D,)))
    for i in range(1, n_norms + 1):
        p[f"norm{i}_g"] = jnp.ones((D,), jnp.float32)
        p[f"norm{i}_b"] = jnp.zeros((D,), jnp.float32)
    return p


def init_params(key, dim_model, heads, encoder_layers, decoder_layers,
                source_vocab_size, target_vocab_size, max_sequence_length=64,
                dim_feedforward=DIM_FF):
    kg = _KeyGen(key)
    s = 0.05
    params = dict(
        heads=heads,
        src_emb=s * jax.random.normal(kg(), (source_vocab_size, dim_model), jnp.float32),
        src_pos=s * jax.random.normal(kg(), (max_sequence_length, dim_model), jnp.float32),
        tgt_emb=s * jax.random.normal(kg(), (target_vocab_size, dim_model), jnp.float32),
        tgt_pos=s * jax.random.normal(kg(), (max_sequence_length, dim_model), jnp.float32),
        enc_norm_g=jnp.ones((dim_model,), jnp.float32),
        enc_norm_b=jnp.zeros((dim_model,), jnp.float32),
        dec_norm_g=jnp.ones((dim_model,), jnp.float32),
        dec_norm_b=jnp.zeros((dim_model,), jnp.float32),
        fc_w=_w(kg, (dim_model, target_vocab_size)),
        fc_b=_b(kg, (target_vocab_size,)),
    )
    params["enc_layers"] = [
        dict(self_attn=_self_attn_params(kg, dim_model),
             **_ffn_norm_params(kg, dim_model, dim_feedforward, n_norms=2))
        for _ in range(encoder_layers)]
    params["dec_layers"] = [
        dict(self_attn=_self_attn_params(kg, dim_model),
             cross_attn=_cross_attn_params(kg, dim_model),
             **_ffn_norm_params(kg, dim_model, dim_feedforward, n_norms=3))
        for _ in range(decoder_layers)]
    return params


# --------------------------------------------------------------------------
# TODO(synk): the autoregressive `infer()` loop is host-side control flow and is
#             not implemented; only forward() is reproduced.

if __name__ == "__main__":
    B, S, T = 2, 8, 8
    DIM_MODEL, HEADS = 32, 4
    ENC_LAYERS, DEC_LAYERS = 2, 2
    SRC_VOCAB, TGT_VOCAB = 50, 60

    params = init_params(jax.random.PRNGKey(0), DIM_MODEL, HEADS,
                         ENC_LAYERS, DEC_LAYERS, SRC_VOCAB, TGT_VOCAB,
                         max_sequence_length=64)

    k_src, k_tgt = jax.random.split(jax.random.PRNGKey(0))
    source = jax.random.randint(k_src, (B, S), 1, SRC_VOCAB).astype(jnp.int32)
    target = jax.random.randint(k_tgt, (B, T), 1, TGT_VOCAB).astype(jnp.int32)
    # add some padding tokens so the key-padding masks are exercised
    source = source.at[:, -2:].set(PAD_INDEX)
    target = target.at[:, -1].set(PAD_INDEX)

    fwd = jax.jit(lambda s, t: transformer_forward(params, s, t))
    out = fwd(source, target)
    out = jax.block_until_ready(out)

    assert out.shape == (B, T, TGT_VOCAB), out.shape
    assert bool(jnp.all(jnp.isfinite(out)))
    print("KERNEL_OK")
</pallas_src>

<mosaic_0001>
module attributes {stable_mosaic.version = 11 : i64} {
  func.func @_linear_add_ln_kernel(%arg0: i32, %arg1: memref<16x32xf32, #tpu.memory_space<vmem>>, %arg2: memref<32x32xbf16, #tpu.memory_space<vmem>>, %arg3: memref<1x32xf32, #tpu.memory_space<vmem>>, %arg4: memref<16x32xf32, #tpu.memory_space<vmem>>, %arg5: memref<1x32xf32, #tpu.memory_space<vmem>>, %arg6: memref<1x32xf32, #tpu.memory_space<vmem>>, %arg7: memref<16x32xf32, #tpu.memory_space<vmem>>) attributes {dimension_semantics = [#tpu.dimension_semantics<parallel>], iteration_bounds = array<i64: 1>, scalar_prefetch = 0 : i64, scratch_operands = 0 : i64, tpu.core_type = #tpu.core_type<tc>, window_params = [{transform_indices = @transform_0, window_bounds = array<i64: 16, 32>}, {pipeline_mode = #tpu.pipeline_mode<synchronous>, transform_indices = @transform_1, window_bounds = array<i64: 32, 32>}, {pipeline_mode = #tpu.pipeline_mode<synchronous>, transform_indices = @transform_2, window_bounds = array<i64: 1, 32>}, {transform_indices = @transform_3, window_bounds = array<i64: 16, 32>}, {pipeline_mode = #tpu.pipeline_mode<synchronous>, transform_indices = @transform_4, window_bounds = array<i64: 1, 32>}, {pipeline_mode = #tpu.pipeline_mode<synchronous>, transform_indices = @transform_5, window_bounds = array<i64: 1, 32>}, {transform_indices = @transform_6, window_bounds = array<i64: 16, 32>}]} {
    %c0 = arith.constant 0 : index
    %c0_0 = arith.constant 0 : index
    %0 = vector.load %arg1[%c0, %c0_0] : memref<16x32xf32, #tpu.memory_space<vmem>>, vector<16x32xf32>
    %1 = arith.truncf %0 : vector<16x32xf32> to vector<16x32xbf16>
    %c0_1 = arith.constant 0 : index
    %c0_2 = arith.constant 0 : index
    %2 = vector.load %arg2[%c0_1, %c0_2] : memref<32x32xbf16, #tpu.memory_space<vmem>>, vector<32x32xbf16>
    %cst = arith.constant dense<0.000000e+00> : vector<16x32xf32>
    %3 = tpu.matmul %1, %2, %cst {dimension_numbers = #tpu.dot_dimension_numbers<[1], [0], [0], [1], [0, 0, 1, 1], [], []>} : vector<16x32xbf16>, vector<32x32xbf16>, vector<16x32xf32> -> vector<16x32xf32>
    %c0_3 = arith.constant 0 : index
    %c0_4 = arith.constant 0 : index
    %4 = vector.load %arg4[%c0_3, %c0_4] : memref<16x32xf32, #tpu.memory_space<vmem>>, vector<16x32xf32>
    %5 = arith.addf %4, %3 : vector<16x32xf32>
    %c0_5 = arith.constant 0 : index
    %c0_6 = arith.constant 0 : index
    %6 = vector.load %arg3[%c0_5, %c0_6] : memref<1x32xf32, #tpu.memory_space<vmem>>, vector<1x32xf32>
    %7 = vector.broadcast %6 : vector<1x32xf32> to vector<16x32xf32>
    %8 = arith.addf %5, %7 : vector<16x32xf32>
    %cst_7 = arith.constant dense<0.000000e+00> : vector<16xf32>
    %9 = vector.multi_reduction <add>, %8, %cst_7 [1] : vector<16x32xf32> to vector<16xf32>
    %10 = vector.shape_cast %9 : vector<16xf32> to vector<16x1xf32>
    %cst_8 = arith.constant 3.200000e+01 : f32
    %11 = vector.broadcast %cst_8 : f32 to vector<16x1xf32>
    %12 = arith.divf %10, %11 : vector<16x1xf32>
    %13 = vector.broadcast %12 : vector<16x1xf32> to vector<16x32xf32>
    %14 = arith.subf %8, %13 : vector<16x32xf32>
    %15 = arith.mulf %14, %14 : vector<16x32xf32>
    %cst_9 = arith.constant dense<0.000000e+00> : vector<16xf32>
    %16 = vector.multi_reduction <add>, %15, %cst_9 [1] : vector<16x32xf32> to vector<16xf32>
    %17 = vector.shape_cast %16 : vector<16xf32> to vector<16x1xf32>
    %cst_10 = arith.constant 3.200000e+01 : f32
    %18 = vector.broadcast %cst_10 : f32 to vector<16x1xf32>
    %19 = arith.divf %17, %18 : vector<16x1xf32>
    %20 = vector.broadcast %12 : vector<16x1xf32> to vector<16x32xf32>
    %21 = arith.subf %8, %20 : vector<16x32xf32>
    %cst_11 = arith.constant 9.99999974E-6 : f32
    %22 = vector.broadcast %cst_11 : f32 to vector<16x1xf32>
    %23 = arith.addf %19, %22 : vector<16x1xf32>
    %24 = math.rsqrt %23 : vector<16x1xf32>
    %25 = vector.broadcast %24 : vector<16x1xf32> to vector<16x32xf32>
    %26 = arith.mulf %21, %25 : vector<16x32xf32>
    %c0_12 = arith.constant 0 : index
    %c0_13 = arith.constant 0 : index
    %27 = vector.load %arg5[%c0_12, %c0_13] : memref<1x32xf32, #tpu.memory_space<vmem>>, vector<1x32xf32>
    %28 = vector.broadcast %27 : vector<1x32xf32> to vector<16x32xf32>
    %29 = arith.mulf %26, %28 : vector<16x32xf32>
    %c0_14 = arith.constant 0 : index
    %c0_15 = arith.constant 0 : index
    %30 = vector.load %arg6[%c0_14, %c0_15] : memref<1x32xf32, #tpu.memory_space<vmem>>, vector<1x32xf32>
    %31 = vector.broadcast %30 : vector<1x32xf32> to vector<16x32xf32>
    %32 = arith.addf %29, %31 : vector<16x32xf32>
    %c0_16 = arith.constant 0 : index
    %c0_17 = arith.constant 0 : index
    %33 = vector.load %arg7[%c0_16, %c0_17] : memref<16x32xf32, #tpu.memory_space<vmem>>, vector<16x32xf32>
    tpu.vector_store %arg7[%c0_16, %c0_17], %32 {strides = array<i32>} : memref<16x32xf32, #tpu.memory_space<vmem>>, vector<16x32xf32>,
    return
  }
  func.func @transform_0(%arg0: i32) -> (i32, i32) {
    %c0_i32 = arith.constant 0 : i32
    %c0_i32_0 = arith.constant 0 : i32
    return %arg0, %c0_i32 : i32, i32
  }
  func.func @transform_1(%arg0: i32) -> (i32, i32) {
    %c0_i32 = arith.constant 0 : i32
    %c0_i32_0 = arith.constant 0 : i32
    %c0_i32_1 = arith.constant 0 : i32
    return %c0_i32, %c0_i32_0 : i32, i32
  }
  func.func @transform_2(%arg0: i32) -> (i32, i32) {
    %c0_i32 = arith.constant 0 : i32
    %c0_i32_0 = arith.constant 0 : i32
    %c0_i32_1 = arith.constant 0 : i32
    return %c0_i32, %c0_i32_0 : i32, i32
  }
  func.func @transform_3(%arg0: i32) -> (i32, i32) {
    %c0_i32 = arith.constant 0 : i32
    %c0_i32_0 = arith.constant 0 : i32
    return %arg0, %c0_i32 : i32, i32
  }
  func.func @transform_4(%arg0: i32) -> (i32, i32) {
    %c0_i32 = arith.constant 0 : i32
    %c0_i32_0 = arith.constant 0 : i32
    %c0_i32_1 = arith.constant 0 : i32
    return %c0_i32, %c0_i32_0 : i32, i32
  }
  func.func @transform_5(%arg0: i32) -> (i32, i32) {
    %c0_i32 = arith.constant 0 : i32
    %c0_i32_0 = arith.constant 0 : i32
    %c0_i32_1 = arith.constant 0 : i32
    return %c0_i32, %c0_i32_0 : i32, i32
  }
  func.func @transform_6(%arg0: i32) -> (i32, i32) {
    %c0_i32 = arith.constant 0 : i32
    %c0_i32_0 = arith.constant 0 : i32
    return %arg0, %c0_i32 : i32, i32
  }
}

module attributes {stable_mosaic.version = 11 : i64} {
  func.func @_self_attn_kernel(%arg0: i32, %arg1: memref<1x8x96xf32, #tpu.memory_space<vmem>>, %arg2: memref<1x1x8xf32, #tpu.memory_space<vmem>>, %arg3: memref<1x8x32xf32, #tpu.memory_space<vmem>>) attributes {dimension_semantics = [#tpu.dimension_semantics<parallel>], iteration_bounds = array<i64: 2>, scalar_prefetch = 0 : i64, scratch_operands = 0 : i64, tpu.core_type = #tpu.core_type<tc>, window_params = [{transform_indices = @transform_0, window_bounds = array<i64: 1, 8, 96>}, {transform_indices = @transform_1, window_bounds = array<i64: 1, 1, 8>}, {transform_indices = @transform_2, window_bounds = array<i64: 1, 8, 32>}]} {
    %c0 = arith.constant 0 : index
    %c0_0 = arith.constant 0 : index
    %c0_1 = arith.constant 0 : index
    %0 = vector.load %arg1[%c0, %c0_0, %c0_1] : memref<1x8x96xf32, #tpu.memory_space<vmem>>, vector<1x8x96xf32>
    %1 = vector.shape_cast %0 : vector<1x8x96xf32> to vector<8x96xf32>
    %c0_2 = arith.constant 0 : index
    %c0_3 = arith.constant 0 : index
    %c0_4 = arith.constant 0 : index
    %2 = vector.load %arg2[%c0_2, %c0_3, %c0_4] : memref<1x1x8xf32, #tpu.memory_space<vmem>>, vector<1x1x8xf32>
    %3 = vector.shape_cast %2 : vector<1x1x8xf32> to vector<1x8xf32>
    %4 = vector.extract_strided_slice %1 {offsets = [0, 0], sizes = [8, 8], strides = [1, 1]} : vector<8x96xf32> to vector<8x8xf32>
    %5 = arith.truncf %4 : vector<8x8xf32> to vector<8x8xbf16>
    %6 = vector.extract_strided_slice %1 {offsets = [0, 32], sizes = [8, 8], strides = [1, 1]} : vector<8x96xf32> to vector<8x8xf32>
    %7 = arith.truncf %6 : vector<8x8xf32> to vector<8x8xbf16>
    %8 = vector.extract_strided_slice %1 {offsets = [0, 64], sizes = [8, 8], strides = [1, 1]} : vector<8x96xf32> to vector<8x8xf32>
    %9 = arith.truncf %8 : vector<8x8xf32> to vector<8x8xbf16>
    %cst = arith.constant dense<0.000000e+00> : vector<8x8xf32>
    %10 = tpu.matmul %5, %7, %cst {dimension_numbers = #tpu.dot_dimension_numbers<[1], [1], [0], [0], [0, 0, 1, 0], [], []>} : vector<8x8xbf16>, vector<8x8xbf16>, vector<8x8xf32> -> vector<8x8xf32>
    %cst_5 = arith.constant 0.353553385 : f32
    %11 = vector.broadcast %cst_5 : f32 to vector<8x8xf32>
    %12 = arith.mulf %10, %11 : vector<8x8xf32>
    %13 = vector.broadcast %3 : vector<1x8xf32> to vector<8x8xf32>
    %14 = arith.addf %12, %13 : vector<8x8xf32>
    %cst_6 = arith.constant dense<0xFF800000> : vector<8xf32>
    %15 = vector.multi_reduction <maximumf>, %14, %cst_6 [1] : vector<8x8xf32> to vector<8xf32>
    %16 = vector.shape_cast %15 : vector<8xf32> to vector<8x1xf32>
    %17 = vector.broadcast %16 : vector<8x1xf32> to vector<8x8xf32>
    %18 = arith.subf %14, %17 : vector<8x8xf32>
    %19 = math.exp %18 : vector<8x8xf32>
    %cst_7 = arith.constant dense<0.000000e+00> : vector<8xf32>
    %20 = vector.multi_reduction <add>, %19, %cst_7 [1] : vector<8x8xf32> to vector<8xf32>
    %21 = vector.shape_cast %20 : vector<8xf32> to vector<8x1xf32>
    %22 = tpu.reciprocal %21 {approx = true} : vector<8x1xf32> -> vector<8x1xf32>
    %23 = vector.broadcast %22 : vector<8x1xf32> to vector<8x8xf32>
    %24 = arith.mulf %19, %23 : vector<8x8xf32>
    %25 = arith.truncf %24 : vector<8x8xf32> to vector<8x8xbf16>
    %cst_8 = arith.constant dense<0.000000e+00> : vector<8x8xf32>
    %26 = tpu.matmul %25, %9, %cst_8 {dimension_numbers = #tpu.dot_dimension_numbers<[1], [0], [0], [1], [0, 0, 1, 1], [], []>} : vector<8x8xbf16>, vector<8x8xbf16>, vector<8x8xf32> -> vector<8x8xf32>
    %27 = vector.extract_strided_slice %1 {offsets = [0, 8], sizes = [8, 8], strides = [1, 1]} : vector<8x96xf32> to vector<8x8xf32>
    %28 = arith.truncf %27 : vector<8x8xf32> to vector<8x8xbf16>
    %29 = vector.extract_strided_slice %1 {offsets = [0, 40], sizes = [8, 8], strides = [1, 1]} : vector<8x96xf32> to vector<8x8xf32>
    %30 = arith.truncf %29 : vector<8x8xf32> to vector<8x8xbf16>
    %31 = vector.extract_strided_slice %1 {offsets = [0, 72], sizes = [8, 8], strides = [1, 1]} : vector<8x96xf32> to vector<8x8xf32>
    %32 = arith.truncf %31 : vector<8x8xf32> to vector<8x8xbf16>
    %cst_9 = arith.constant dense<0.000000e+00> : vector<8x8xf32>
    %33 = tpu.matmul %28, %30, %cst_9 {dimension_numbers = #tpu.dot_dimension_numbers<[1], [1], [0], [0], [0, 0, 1, 0], [], []>} : vector<8x8xbf16>, vector<8x8xbf16>, vector<8x8xf32> -> vector<8x8xf32>
    %cst_10 = arith.constant 0.353553385 : f32
    %34 = vector.broadcast %cst_10 : f32 to vector<8x8xf32>
    %35 = arith.mulf %33, %34 : vector<8x8xf32>
    %36 = vector.broadcast %3 : vector<1x8xf32> to vector<8x8xf32>
    %37 = arith.addf %35, %36 : vector<8x8xf32>
    %cst_11 = arith.constant dense<0xFF800000> : vector<8xf32>
    %38 = vector.multi_reduction <maximumf>, %37, %cst_11 [1] : vector<8x8xf32> to vector<8xf32>
    %39 = vector.shape_cast %38 : vector<8xf32> to vector<8x1xf32>
    %40 = vector.broadcast %39 : vector<8x1xf32> to vector<8x8xf32>
    %41 = arith.subf %37, %40 : vector<8x8xf32>
    %42 = math.exp %41 : vector<8x8xf32>
    %cst_12 = arith.constant dense<0.000000e+00> : vector<8xf32>
    %43 = vector.multi_reduction <add>, %42, %cst_12 [1] : vector<8x8xf32> to vector<8xf32>
    %44 = vector.shape_cast %43 : vector<8xf32> to vector<8x1xf32>
    %45 = tpu.reciprocal %44 {approx = true} : vector<8x1xf32> -> vector<8x1xf32>
    %46 = vector.broadcast %45 : vector<8x1xf32> to vector<8x8xf32>
    %47 = arith.mulf %42, %46 : vector<8x8xf32>
    %48 = arith.truncf %47 : vector<8x8xf32> to vector<8x8xbf16>
    %cst_13 = arith.constant dense<0.000000e+00> : vector<8x8xf32>
    %49 = tpu.matmul %48, %32, %cst_13 {dimension_numbers = #tpu.dot_dimension_numbers<[1], [0], [0], [1], [0, 0, 1, 1], [], []>} : vector<8x8xbf16>, vector<8x8xbf16>, vector<8x8xf32> -> vector<8x8xf32>
    %50 = vector.extract_strided_slice %1 {offsets = [0, 16], sizes = [8, 8], strides = [1, 1]} : vector<8x96xf32> to vector<8x8xf32>
    %51 = arith.truncf %50 : vector<8x8xf32> to vector<8x8xbf16>
    %52 = vector.extract_strided_slice %1 {offsets = [0, 48], sizes = [8, 8], strides = [1, 1]} : vector<8x96xf32> to vector<8x8xf32>
    %53 = arith.truncf %52 : vector<8x8xf32> to vector<8x8xbf16>
    %54 = vector.extract_strided_slice %1 {offsets = [0, 80], sizes = [8, 8], strides = [1, 1]} : vector<8x96xf32> to vector<8x8xf32>
    %55 = arith.truncf %54 : vector<8x8xf32> to vector<8x8xbf16>
    %cst_14 = arith.constant dense<0.000000e+00> : vector<8x8xf32>
    %56 = tpu.matmul %51, %53, %cst_14 {dimension_numbers = #tpu.dot_dimension_numbers<[1], [1], [0], [0], [0, 0, 1, 0], [], []>} : vector<8x8xbf16>, vector<8x8xbf16>, vector<8x8xf32> -> vector<8x8xf32>
    %cst_15 = arith.constant 0.353553385 : f32
    %57 = vector.broadcast %cst_15 : f32 to vector<8x8xf32>
    %58 = arith.mulf %56, %57 : vector<8x8xf32>
    %59 = vector.broadcast %3 : vector<1x8xf32> to vector<8x8xf32>
    %60 = arith.addf %58, %59 : vector<8x8xf32>
    %cst_16 = arith.constant dense<0xFF800000> : vector<8xf32>
    %61 = vector.multi_reduction <maximumf>, %60, %cst_16 [1] : vector<8x8xf32> to vector<8xf32>
    %62 = vector.shape_cast %61 : vector<8xf32> to vector<8x1xf32>
    %63 = vector.broadcast %62 : vector<8x1xf32> to vector<8x8xf32>
    %64 = arith.subf %60, %63 : vector<8x8xf32>
    %65 = math.exp %64 : vector<8x8xf32>
    %cst_17 = arith.constant dense<0.000000e+00> : vector<8xf32>
    %66 = vector.multi_reduction <add>, %65, %cst_17 [1] : vector<8x8xf32> to vector<8xf32>
    %67 = vector.shape_cast %66 : vector<8xf32> to vector<8x1xf32>
    %68 = tpu.reciprocal %67 {approx = true} : vector<8x1xf32> -> vector<8x1xf32>
    %69 = vector.broadcast %68 : vector<8x1xf32> to vector<8x8xf32>
    %70 = arith.mulf %65, %69 : vector<8x8xf32>
    %71 = arith.truncf %70 : vector<8x8xf32> to vector<8x8xbf16>
    %cst_18 = arith.constant dense<0.000000e+00> : vector<8x8xf32>
    %72 = tpu.matmul %71, %55, %cst_18 {dimension_numbers = #tpu.dot_dimension_numbers<[1], [0], [0], [1], [0, 0, 1, 1], [], []>} : vector<8x8xbf16>, vector<8x8xbf16>, vector<8x8xf32> -> vector<8x8xf32>
    %73 = vector.extract_strided_slice %1 {offsets = [0, 24], sizes = [8, 8], strides = [1, 1]} : vector<8x96xf32> to vector<8x8xf32>
    %74 = arith.truncf %73 : vector<8x8xf32> to vector<8x8xbf16>
    %75 = vector.extract_strided_slice %1 {offsets = [0, 56], sizes = [8, 8], strides = [1, 1]} : vector<8x96xf32> to vector<8x8xf32>
    %76 = arith.truncf %75 : vector<8x8xf32> to vector<8x8xbf16>
    %77 = vector.extract_strided_slice %1 {offsets = [0, 88], sizes = [8, 8], strides = [1, 1]} : vector<8x96xf32> to vector<8x8xf32>
    %78 = arith.truncf %77 : vector<8x8xf32> to vector<8x8xbf16>
    %cst_19 = arith.constant dense<0.000000e+00> : vector<8x8xf32>
    %79 = tpu.matmul %74, %76, %cst_19 {dimension_numbers = #tpu.dot_dimension_numbers<[1], [1], [0], [0], [0, 0, 1, 0], [], []>} : vector<8x8xbf16>, vector<8x8xbf16>, vector<8x8xf32> -> vector<8x8xf32>
    %cst_20 = arith.constant 0.353553385 : f32
    %80 = vector.broadcast %cst_20 : f32 to vector<8x8xf32>
    %81 = arith.mulf %79, %80 : vector<8x8xf32>
    %82 = vector.broadcast %3 : vector<1x8xf32> to vector<8x8xf32>
    %83 = arith.addf %81, %82 : vector<8x8xf32>
    %cst_21 = arith.constant dense<0xFF800000> : vector<8xf32>
    %84 = vector.multi_reduction <maximumf>, %83, %cst_21 [1] : vector<8x8xf32> to vector<8xf32>
    %85 = vector.shape_cast %84 : vector<8xf32> to vector<8x1xf32>
    %86 = vector.broadcast %85 : vector<8x1xf32> to vector<8x8xf32>
    %87 = arith.subf %83, %86 : vector<8x8xf32>
    %88 = math.exp %87 : vector<8x8xf32>
    %cst_22 = arith.constant dense<0.000000e+00> : vector<8xf32>
    %89 = vector.multi_reduction <add>, %88, %cst_22 [1] : vector<8x8xf32> to vector<8xf32>
    %90 = vector.shape_cast %89 : vector<8xf32> to vector<8x1xf32>
    %91 = tpu.reciprocal %90 {approx = true} : vector<8x1xf32> -> vector<8x1xf32>
    %92 = vector.broadcast %91 : vector<8x1xf32> to vector<8x8xf32>
    %93 = arith.mulf %88, %92 : vector<8x8xf32>
    %94 = arith.truncf %93 : vector<8x8xf32> to vector<8x8xbf16>
    %cst_23 = arith.constant dense<0.000000e+00> : vector<8x8xf32>
    %95 = tpu.matmul %94, %78, %cst_23 {dimension_numbers = #tpu.dot_dimension_numbers<[1], [0], [0], [1], [0, 0, 1, 1], [], []>} : vector<8x8xbf16>, vector<8x8xbf16>, vector<8x8xf32> -> vector<8x8xf32>
    %96 = tpu.concatenate %26, %49, %72, %95 in 1 : vector<8x8xf32>, vector<8x8xf32>, vector<8x8xf32>, vector<8x8xf32> -> vector<8x32xf32>
    %c0_24 = arith.constant 0 : index
    %c0_25 = arith.constant 0 : index
    %c0_26 = arith.constant 0 : index
    %97 = vector.load %arg3[%c0_24, %c0_25, %c0_26] : memref<1x8x32xf32, #tpu.memory_space<vmem>>, vector<1x8x32xf32>
    %98 = vector.shape_cast %97 : vector<1x8x32xf32> to vector<8x32xf32>
    %99 = vector.shape_cast %96 : vector<8x32xf32> to vector<1x8x32xf32>
    tpu.vector_store %arg3[%c0_24, %c0_25, %c0_26], %99 {strides = array<i32>} : memref<1x8x32xf32, #tpu.memory_space<vmem>>, vector<1x8x32xf32>,
    return
  }
  func.func @transform_0(%arg0: i32) -> (i32, i32, i32) {
    %c0_i32 = arith.constant 0 : i32
    %c0_i32_0 = arith.constant 0 : i32
    %c0_i32_1 = arith.constant 0 : i32
    return %arg0, %c0_i32, %c0_i32_0 : i32, i32, i32
  }
  func.func @transform_1(%arg0: i32) -> (i32, i32, i32) {
    %c0_i32 = arith.constant 0 : i32
    %c0_i32_0 = arith.constant 0 : i32
    %c0_i32_1 = arith.constant 0 : i32
    return %arg0, %c0_i32, %c0_i32_0 : i32, i32, i32
  }
  func.func @transform_2(%arg0: i32) -> (i32, i32, i32) {
    %c0_i32 = arith.constant 0 : i32
    %c0_i32_0 = arith.constant 0 : i32
    %c0_i32_1 = arith.constant 0 : i32
    return %arg0, %c0_i32, %c0_i32_0 : i32, i32, i32
  }
}

module attributes {stable_mosaic.version = 11 : i64} {
  func.func @_linear_kernel(%arg0: i32, %arg1: i32, %arg2: memref<16x32xf32, #tpu.memory_space<vmem>>, %arg3: memref<32x128xbf16, #tpu.memory_space<vmem>>, %arg4: memref<1x128xf32, #tpu.memory_space<vmem>>, %arg5: memref<16x128xf32, #tpu.memory_space<vmem>>) attributes {dimension_semantics = [#tpu.dimension_semantics<parallel>, #tpu.dimension_semantics<parallel>], iteration_bounds = array<i64: 1, 1>, scalar_prefetch = 0 : i64, scratch_operands = 0 : i64, tpu.core_type = #tpu.core_type<tc>, window_params = [{transform_indices = @transform_0, window_bounds = array<i64: 16, 32>}, {transform_indices = @transform_1, window_bounds = array<i64: 32, 128>}, {transform_indices = @transform_2, window_bounds = array<i64: 1, 128>}, {transform_indices = @transform_3, window_bounds = array<i64: 16, 128>}]} {
    %c0 = arith.constant 0 : index
    %c0_0 = arith.constant 0 : index
    %0 = vector.load %arg2[%c0, %c0_0] : memref<16x32xf32, #tpu.memory_space<vmem>>, vector<16x32xf32>
    %1 = arith.truncf %0 : vector<16x32xf32> to vector<16x32xbf16>
    %c0_1 = arith.constant 0 : index
    %c0_2 = arith.constant 0 : index
    %2 = vector.load %arg3[%c0_1, %c0_2] : memref<32x128xbf16, #tpu.memory_space<vmem>>, vector<32x128xbf16>
    %cst = arith.constant dense<0.000000e+00> : vector<16x128xf32>
    %3 = tpu.matmul %1, %2, %cst {dimension_numbers = #tpu.dot_dimension_numbers<[1], [0], [0], [1], [0, 0, 1, 1], [], []>} : vector<16x32xbf16>, vector<32x128xbf16>, vector<16x128xf32> -> vector<16x128xf32>
    %c0_3 = arith.constant 0 : index
    %c0_4 = arith.constant 0 : index
    %4 = vector.load %arg4[%c0_3, %c0_4] : memref<1x128xf32, #tpu.memory_space<vmem>>, vector<1x128xf32>
    %5 = vector.broadcast %4 : vector<1x128xf32> to vector<16x128xf32>
    %6 = arith.addf %3, %5 : vector<16x128xf32>
    %c0_5 = arith.constant 0 : index
    %c0_6 = arith.constant 0 : index
    %7 = vector.load %arg5[%c0_5, %c0_6] : memref<16x128xf32, #tpu.memory_space<vmem>>, vector<16x128xf32>
    tpu.vector_store %arg5[%c0_5, %c0_6], %6 {strides = array<i32>} : memref<16x128xf32, #tpu.memory_space<vmem>>, vector<16x128xf32>,
    return
  }
  func.func @transform_0(%arg0: i32, %arg1: i32) -> (i32, i32) {
    %c0_i32 = arith.constant 0 : i32
    %c0_i32_0 = arith.constant 0 : i32
    return %arg0, %c0_i32 : i32, i32
  }
  func.func @transform_1(%arg0: i32, %arg1: i32) -> (i32, i32) {
    %c0_i32 = arith.constant 0 : i32
    %c0_i32_0 = arith.constant 0 : i32
    return %c0_i32, %arg1 : i32, i32
  }
  func.func @transform_2(%arg0: i32, %arg1: i32) -> (i32, i32) {
    %c0_i32 = arith.constant 0 : i32
    %c0_i32_0 = arith.constant 0 : i32
    return %c0_i32, %arg1 : i32, i32
  }
  func.func @transform_3(%arg0: i32, %arg1: i32) -> (i32, i32) {
    %c0_i32 = arith.constant 0 : i32
    return %arg0, %arg1 : i32, i32
  }
}

module attributes {stable_mosaic.version = 11 : i64} {
  func.func @_self_attn_kernel(%arg0: i32, %arg1: memref<1x8x96xf32, #tpu.memory_space<vmem>>, %arg2: memref<1x1x8xf32, #tpu.memory_space<vmem>>, %arg3: memref<1x8x32xf32, #tpu.memory_space<vmem>>) attributes {dimension_semantics = [#tpu.dimension_semantics<parallel>], iteration_bounds = array<i64: 2>, scalar_prefetch = 0 : i64, scratch_operands = 0 : i64, tpu.core_type = #tpu.core_type<tc>, window_params = [{transform_indices = @transform_0, window_bounds = array<i64: 1, 8, 96>}, {transform_indices = @transform_1, window_bounds = array<i64: 1, 1, 8>}, {transform_indices = @transform_2, window_bounds = array<i64: 1, 8, 32>}]} {
    %c0 = arith.constant 0 : index
    %c0_0 = arith.constant 0 : index
    %c0_1 = arith.constant 0 : index
    %0 = vector.load %arg1[%c0, %c0_0, %c0_1] : memref<1x8x96xf32, #tpu.memory_space<vmem>>, vector<1x8x96xf32>
    %1 = vector.shape_cast %0 : vector<1x8x96xf32> to vector<8x96xf32>
    %c0_2 = arith.constant 0 : index
    %c0_3 = arith.constant 0 : index
    %c0_4 = arith.constant 0 : index
    %2 = vector.load %arg2[%c0_2, %c0_3, %c0_4] : memref<1x1x8xf32, #tpu.memory_space<vmem>>, vector<1x1x8xf32>
    %3 = vector.shape_cast %2 : vector<1x1x8xf32> to vector<1x8xf32>
    %4 = tpu.iota {dimensions = array<i32: 0>} : vector<8x8xi32>
    %5 = tpu.iota {dimensions = array<i32: 1>} : vector<8x8xi32>
    %6 = arith.cmpi sgt, %5, %4 : vector<8x8xi32>
    %cst = arith.constant -1.000000e+30 : f32
    %cst_5 = arith.constant 0.000000e+00 : f32
    %7 = vector.broadcast %cst : f32 to vector<8x8xf32>
    %8 = vector.broadcast %cst_5 : f32 to vector<8x8xf32>
    %9 = arith.select %6, %7, %8 : vector<8x8xi1>, vector<8x8xf32>
    %10 = vector.extract_strided_slice %1 {offsets = [0, 0], sizes = [8, 8], strides = [1, 1]} : vector<8x96xf32> to vector<8x8xf32>
    %11 = arith.truncf %10 : vector<8x8xf32> to vector<8x8xbf16>
    %12 = vector.extract_strided_slice %1 {offsets = [0, 32], sizes = [8, 8], strides = [1, 1]} : vector<8x96xf32> to vector<8x8xf32>
    %13 = arith.truncf %12 : vector<8x8xf32> to vector<8x8xbf16>
    %14 = vector.extract_strided_slice %1 {offsets = [0, 64], sizes = [8, 8], strides = [1, 1]} : vector<8x96xf32> to vector<8x8xf32>
    %15 = arith.truncf %14 : vector<8x8xf32> to vector<8x8xbf16>
    %cst_6 = arith.constant dense<0.000000e+00> : vector<8x8xf32>
    %16 = tpu.matmul %11, %13, %cst_6 {dimension_numbers = #tpu.dot_dimension_numbers<[1], [1], [0], [0], [0, 0, 1, 0], [], []>} : vector<8x8xbf16>, vector<8x8xbf16>, vector<8x8xf32> -> vector<8x8xf32>
    %cst_7 = arith.constant 0.353553385 : f32
    %17 = vector.broadcast %cst_7 : f32 to vector<8x8xf32>
    %18 = arith.mulf %16, %17 : vector<8x8xf32>
    %19 = vector.broadcast %3 : vector<1x8xf32> to vector<8x8xf32>
    %20 = arith.addf %18, %19 : vector<8x8xf32>
    %21 = arith.addf %20, %9 : vector<8x8xf32>
    %cst_8 = arith.constant dense<0xFF800000> : vector<8xf32>
    %22 = vector.multi_reduction <maximumf>, %21, %cst_8 [1] : vector<8x8xf32> to vector<8xf32>
    %23 = vector.shape_cast %22 : vector<8xf32> to vector<8x1xf32>
    %24 = vector.broadcast %23 : vector<8x1xf32> to vector<8x8xf32>
    %25 = arith.subf %21, %24 : vector<8x8xf32>
    %26 = math.exp %25 : vector<8x8xf32>
    %cst_9 = arith.constant dense<0.000000e+00> : vector<8xf32>
    %27 = vector.multi_reduction <add>, %26, %cst_9 [1] : vector<8x8xf32> to vector<8xf32>
    %28 = vector.shape_cast %27 : vector<8xf32> to vector<8x1xf32>
    %29 = tpu.reciprocal %28 {approx = true} : vector<8x1xf32> -> vector<8x1xf32>
    %30 = vector.broadcast %29 : vector<8x1xf32> to vector<8x8xf32>
    %31 = arith.mulf %26, %30 : vector<8x8xf32>
    %32 = arith.truncf %31 : vector<8x8xf32> to vector<8x8xbf16>
    %cst_10 = arith.constant dense<0.000000e+00> : vector<8x8xf32>
    %33 = tpu.matmul %32, %15, %cst_10 {dimension_numbers = #tpu.dot_dimension_numbers<[1], [0], [0], [1], [0, 0, 1, 1], [], []>} : vector<8x8xbf16>, vector<8x8xbf16>, vector<8x8xf32> -> vector<8x8xf32>
    %34 = vector.extract_strided_slice %1 {offsets = [0, 8], sizes = [8, 8], strides = [1, 1]} : vector<8x96xf32> to vector<8x8xf32>
    %35 = arith.truncf %34 : vector<8x8xf32> to vector<8x8xbf16>
    %36 = vector.extract_strided_slice %1 {offsets = [0, 40], sizes = [8, 8], strides = [1, 1]} : vector<8x96xf32> to vector<8x8xf32>
    %37 = arith.truncf %36 : vector<8x8xf32> to vector<8x8xbf16>
    %38 = vector.extract_strided_slice %1 {offsets = [0, 72], sizes = [8, 8], strides = [1, 1]} : vector<8x96xf32> to vector<8x8xf32>
    %39 = arith.truncf %38 : vector<8x8xf32> to vector<8x8xbf16>
    %cst_11 = arith.constant dense<0.000000e+00> : vector<8x8xf32>
    %40 = tpu.matmul %35, %37, %cst_11 {dimension_numbers = #tpu.dot_dimension_numbers<[1], [1], [0], [0], [0, 0, 1, 0], [], []>} : vector<8x8xbf16>, vector<8x8xbf16>, vector<8x8xf32> -> vector<8x8xf32>
    %cst_12 = arith.constant 0.353553385 : f32
    %41 = vector.broadcast %cst_12 : f32 to vector<8x8xf32>
    %42 = arith.mulf %40, %41 : vector<8x8xf32>
    %43 = vector.broadcast %3 : vector<1x8xf32> to vector<8x8xf32>
    %44 = arith.addf %42, %43 : vector<8x8xf32>
    %45 = arith.addf %44, %9 : vector<8x8xf32>
    %cst_13 = arith.constant dense<0xFF800000> : vector<8xf32>
    %46 = vector.multi_reduction <maximumf>, %45, %cst_13 [1] : vector<8x8xf32> to vector<8xf32>
    %47 = vector.shape_cast %46 : vector<8xf32> to vector<8x1xf32>
    %48 = vector.broadcast %47 : vector<8x1xf32> to vector<8x8xf32>
    %49 = arith.subf %45, %48 : vector<8x8xf32>
    %50 = math.exp %49 : vector<8x8xf32>
    %cst_14 = arith.constant dense<0.000000e+00> : vector<8xf32>
    %51 = vector.multi_reduction <add>, %50, %cst_14 [1] : vector<8x8xf32> to vector<8xf32>
    %52 = vector.shape_cast %51 : vector<8xf32> to vector<8x1xf32>
    %53 = tpu.reciprocal %52 {approx = true} : vector<8x1xf32> -> vector<8x1xf32>
    %54 = vector.broadcast %53 : vector<8x1xf32> to vector<8x8xf32>
    %55 = arith.mulf %50, %54 : vector<8x8xf32>
    %56 = arith.truncf %55 : vector<8x8xf32> to vector<8x8xbf16>
    %cst_15 = arith.constant dense<0.000000e+00> : vector<8x8xf32>
    %57 = tpu.matmul %56, %39, %cst_15 {dimension_numbers = #tpu.dot_dimension_numbers<[1], [0], [0], [1], [0, 0, 1, 1], [], []>} : vector<8x8xbf16>, vector<8x8xbf16>, vector<8x8xf32> -> vector<8x8xf32>
    %58 = vector.extract_strided_slice %1 {offsets = [0, 16], sizes = [8, 8], strides = [1, 1]} : vector<8x96xf32> to vector<8x8xf32>
    %59 = arith.truncf %58 : vector<8x8xf32> to vector<8x8xbf16>
    %60 = vector.extract_strided_slice %1 {offsets = [0, 48], sizes = [8, 8], strides = [1, 1]} : vector<8x96xf32> to vector<8x8xf32>
    %61 = arith.truncf %60 : vector<8x8xf32> to vector<8x8xbf16>
    %62 = vector.extract_strided_slice %1 {offsets = [0, 80], sizes = [8, 8], strides = [1, 1]} : vector<8x96xf32> to vector<8x8xf32>
    %63 = arith.truncf %62 : vector<8x8xf32> to vector<8x8xbf16>
    %cst_16 = arith.constant dense<0.000000e+00> : vector<8x8xf32>
    %64 = tpu.matmul %59, %61, %cst_16 {dimension_numbers = #tpu.dot_dimension_numbers<[1], [1], [0], [0], [0, 0, 1, 0], [], []>} : vector<8x8xbf16>, vector<8x8xbf16>, vector<8x8xf32> -> vector<8x8xf32>
    %cst_17 = arith.constant 0.353553385 : f32
    %65 = vector.broadcast %cst_17 : f32 to vector<8x8xf32>
    %66 = arith.mulf %64, %65 : vector<8x8xf32>
    %67 = vector.broadcast %3 : vector<1x8xf32> to vector<8x8xf32>
    %68 = arith.addf %66, %67 : vector<8x8xf32>
    %69 = arith.addf %68, %9 : vector<8x8xf32>
    %cst_18 = arith.constant dense<0xFF800000> : vector<8xf32>
    %70 = vector.multi_reduction <maximumf>, %69, %cst_18 [1] : vector<8x8xf32> to vector<8xf32>
    %71 = vector.shape_cast %70 : vector<8xf32> to vector<8x1xf32>
    %72 = vector.broadcast %71 : vector<8x1xf32> to vector<8x8xf32>
    %73 = arith.subf %69, %72 : vector<8x8xf32>
    %74 = math.exp %73 : vector<8x8xf32>
    %cst_19 = arith.constant dense<0.000000e+00> : vector<8xf32>
    %75 = vector.multi_reduction <add>, %74, %cst_19 [1] : vector<8x8xf32> to vector<8xf32>
    %76 = vector.shape_cast %75 : vector<8xf32> to vector<8x1xf32>
    %77 = tpu.reciprocal %76 {approx = true} : vector<8x1xf32> -> vector<8x1xf32>
    %78 = vector.broadcast %77 : vector<8x1xf32> to vector<8x8xf32>
    %79 = arith.mulf %74, %78 : vector<8x8xf32>
    %80 = arith.truncf %79 : vector<8x8xf32> to vector<8x8xbf16>
    %cst_20 = arith.constant dense<0.000000e+00> : vector<8x8xf32>
    %81 = tpu.matmul %80, %63, %cst_20 {dimension_numbers = #tpu.dot_dimension_numbers<[1], [0], [0], [1], [0, 0, 1, 1], [], []>} : vector<8x8xbf16>, vector<8x8xbf16>, vector<8x8xf32> -> vector<8x8xf32>
    %82 = vector.extract_strided_slice %1 {offsets = [0, 24], sizes = [8, 8], strides = [1, 1]} : vector<8x96xf32> to vector<8x8xf32>
    %83 = arith.truncf %82 : vector<8x8xf32> to vector<8x8xbf16>
    %84 = vector.extract_strided_slice %1 {offsets = [0, 56], sizes = [8, 8], strides = [1, 1]} : vector<8x96xf32> to vector<8x8xf32>
    %85 = arith.truncf %84 : vector<8x8xf32> to vector<8x8xbf16>
    %86 = vector.extract_strided_slice %1 {offsets = [0, 88], sizes = [8, 8], strides = [1, 1]} : vector<8x96xf32> to vector<8x8xf32>
    %87 = arith.truncf %86 : vector<8x8xf32> to vector<8x8xbf16>
    %cst_21 = arith.constant dense<0.000000e+00> : vector<8x8xf32>
    %88 = tpu.matmul %83, %85, %cst_21 {dimension_numbers = #tpu.dot_dimension_numbers<[1], [1], [0], [0], [0, 0, 1, 0], [], []>} : vector<8x8xbf16>, vector<8x8xbf16>, vector<8x8xf32> -> vector<8x8xf32>
    %cst_22 = arith.constant 0.353553385 : f32
    %89 = vector.broadcast %cst_22 : f32 to vector<8x8xf32>
    %90 = arith.mulf %88, %89 : vector<8x8xf32>
    %91 = vector.broadcast %3 : vector<1x8xf32> to vector<8x8xf32>
    %92 = arith.addf %90, %91 : vector<8x8xf32>
    %93 = arith.addf %92, %9 : vector<8x8xf32>
    %cst_23 = arith.constant dense<0xFF800000> : vector<8xf32>
    %94 = vector.multi_reduction <maximumf>, %93, %cst_23 [1] : vector<8x8xf32> to vector<8xf32>
    %95 = vector.shape_cast %94 : vector<8xf32> to vector<8x1xf32>
    %96 = vector.broadcast %95 : vector<8x1xf32> to vector<8x8xf32>
    %97 = arith.subf %93, %96 : vector<8x8xf32>
    %98 = math.exp %97 : vector<8x8xf32>
    %cst_24 = arith.constant dense<0.000000e+00> : vector<8xf32>
    %99 = vector.multi_reduction <add>, %98, %cst_24 [1] : vector<8x8xf32> to vector<8xf32>
    %100 = vector.shape_cast %99 : vector<8xf32> to vector<8x1xf32>
    %101 = tpu.reciprocal %100 {approx = true} : vector<8x1xf32> -> vector<8x1xf32>
    %102 = vector.broadcast %101 : vector<8x1xf32> to vector<8x8xf32>
    %103 = arith.mulf %98, %102 : vector<8x8xf32>
    %104 = arith.truncf %103 : vector<8x8xf32> to vector<8x8xbf16>
    %cst_25 = arith.constant dense<0.000000e+00> : vector<8x8xf32>
    %105 = tpu.matmul %104, %87, %cst_25 {dimension_numbers = #tpu.dot_dimension_numbers<[1], [0], [0], [1], [0, 0, 1, 1], [], []>} : vector<8x8xbf16>, vector<8x8xbf16>, vector<8x8xf32> -> vector<8x8xf32>
    %106 = tpu.concatenate %33, %57, %81, %105 in 1 : vector<8x8xf32>, vector<8x8xf32>, vector<8x8xf32>, vector<8x8xf32> -> vector<8x32xf32>
    %c0_26 = arith.constant 0 : index
    %c0_27 = arith.constant 0 : index
    %c0_28 = arith.constant 0 : index
    %107 = vector.load %arg3[%c0_26, %c0_27, %c0_28] : memref<1x8x32xf32, #tpu.memory_space<vmem>>, vector<1x8x32xf32>
    %108 = vector.shape_cast %107 : vector<1x8x32xf32> to vector<8x32xf32>
    %109 = vector.shape_cast %106 : vector<8x32xf32> to vector<1x8x32xf32>
    tpu.vector_store %arg3[%c0_26, %c0_27, %c0_28], %109 {strides = array<i32>} : memref<1x8x32xf32, #tpu.memory_space<vmem>>, vector<1x8x32xf32>,
    return
  }
  func.func @transform_0(%arg0: i32) -> (i32, i32, i32) {
    %c0_i32 = arith.constant 0 : i32
    %c0_i32_0 = arith.constant 0 : i32
    %c0_i32_1 = arith.constant 0 : i32
    return %arg0, %c0_i32, %c0_i32_0 : i32, i32, i32
  }
  func.func @transform_1(%arg0: i32) -> (i32, i32, i32) {
    %c0_i32 = arith.constant 0 : i32
    %c0_i32_0 = arith.constant 0 : i32
    %c0_i32_1 = arith.constant 0 : i32
    return %arg0, %c0_i32, %c0_i32_0 : i32, i32, i32
  }
  func.func @transform_2(%arg0: i32) -> (i32, i32, i32) {
    %c0_i32 = arith.constant 0 : i32
    %c0_i32_0 = arith.constant 0 : i32
    %c0_i32_1 = arith.constant 0 : i32
    return %arg0, %c0_i32, %c0_i32_0 : i32, i32, i32
  }
}

module attributes {stable_mosaic.version = 11 : i64} {
  func.func @_layernorm_kernel(%arg0: i32, %arg1: memref<16x32xf32, #tpu.memory_space<vmem>>, %arg2: memref<1x32xf32, #tpu.memory_space<vmem>>, %arg3: memref<1x32xf32, #tpu.memory_space<vmem>>, %arg4: memref<16x32xf32, #tpu.memory_space<vmem>>) attributes {dimension_semantics = [#tpu.dimension_semantics<parallel>], iteration_bounds = array<i64: 1>, scalar_prefetch = 0 : i64, scratch_operands = 0 : i64, tpu.core_type = #tpu.core_type<tc>, window_params = [{transform_indices = @transform_0, window_bounds = array<i64: 16, 32>}, {pipeline_mode = #tpu.pipeline_mode<synchronous>, transform_indices = @transform_1, window_bounds = array<i64: 1, 32>}, {pipeline_mode = #tpu.pipeline_mode<synchronous>, transform_indices = @transform_2, window_bounds = array<i64: 1, 32>}, {transform_indices = @transform_3, window_bounds = array<i64: 16, 32>}]} {
    %c0 = arith.constant 0 : index
    %c0_0 = arith.constant 0 : index
    %0 = vector.load %arg1[%c0, %c0_0] : memref<16x32xf32, #tpu.memory_space<vmem>>, vector<16x32xf32>
    %cst = arith.constant dense<0.000000e+00> : vector<16xf32>
    %1 = vector.multi_reduction <add>, %0, %cst [1] : vector<16x32xf32> to vector<16xf32>
    %2 = vector.shape_cast %1 : vector<16xf32> to vector<16x1xf32>
    %cst_1 = arith.constant 3.200000e+01 : f32
    %3 = vector.broadcast %cst_1 : f32 to vector<16x1xf32>
    %4 = arith.divf %2, %3 : vector<16x1xf32>
    %5 = vector.broadcast %4 : vector<16x1xf32> to vector<16x32xf32>
    %6 = arith.subf %0, %5 : vector<16x32xf32>
    %7 = arith.mulf %6, %6 : vector<16x32xf32>
    %cst_2 = arith.constant dense<0.000000e+00> : vector<16xf32>
    %8 = vector.multi_reduction <add>, %7, %cst_2 [1] : vector<16x32xf32> to vector<16xf32>
    %9 = vector.shape_cast %8 : vector<16xf32> to vector<16x1xf32>
    %cst_3 = arith.constant 3.200000e+01 : f32
    %10 = vector.broadcast %cst_3 : f32 to vector<16x1xf32>
    %11 = arith.divf %9, %10 : vector<16x1xf32>
    %12 = vector.broadcast %4 : vector<16x1xf32> to vector<16x32xf32>
    %13 = arith.subf %0, %12 : vector<16x32xf32>
    %cst_4 = arith.constant 9.99999974E-6 : f32
    %14 = vector.broadcast %cst_4 : f32 to vector<16x1xf32>
    %15 = arith.addf %11, %14 : vector<16x1xf32>
    %16 = math.rsqrt %15 : vector<16x1xf32>
    %17 = vector.broadcast %16 : vector<16x1xf32> to vector<16x32xf32>
    %18 = arith.mulf %13, %17 : vector<16x32xf32>
    %c0_5 = arith.constant 0 : index
    %c0_6 = arith.constant 0 : index
    %19 = vector.load %arg2[%c0_5, %c0_6] : memref<1x32xf32, #tpu.memory_space<vmem>>, vector<1x32xf32>
    %20 = vector.broadcast %19 : vector<1x32xf32> to vector<16x32xf32>
    %21 = arith.mulf %18, %20 : vector<16x32xf32>
    %c0_7 = arith.constant 0 : index
    %c0_8 = arith.constant 0 : index
    %22 = vector.load %arg3[%c0_7, %c0_8] : memref<1x32xf32, #tpu.memory_space<vmem>>, vector<1x32xf32>
    %23 = vector.broadcast %22 : vector<1x32xf32> to vector<16x32xf32>
    %24 = arith.addf %21, %23 : vector<16x32xf32>
    %c0_9 = arith.constant 0 : index
    %c0_10 = arith.constant 0 : index
    %25 = vector.load %arg4[%c0_9, %c0_10] : memref<16x32xf32, #tpu.memory_space<vmem>>, vector<16x32xf32>
    tpu.vector_store %arg4[%c0_9, %c0_10], %24 {strides = array<i32>} : memref<16x32xf32, #tpu.memory_space<vmem>>, vector<16x32xf32>,
    return
  }
  func.func @transform_0(%arg0: i32) -> (i32, i32) {
    %c0_i32 = arith.constant 0 : i32
    %c0_i32_0 = arith.constant 0 : i32
    return %arg0, %c0_i32 : i32, i32
  }
  func.func @transform_1(%arg0: i32) -> (i32, i32) {
    %c0_i32 = arith.constant 0 : i32
    %c0_i32_0 = arith.constant 0 : i32
    %c0_i32_1 = arith.constant 0 : i32
    return %c0_i32, %c0_i32_0 : i32, i32
  }
  func.func @transform_2(%arg0: i32) -> (i32, i32) {
    %c0_i32 = arith.constant 0 : i32
    %c0_i32_0 = arith.constant 0 : i32
    %c0_i32_1 = arith.constant 0 : i32
    return %c0_i32, %c0_i32_0 : i32, i32
  }
  func.func @transform_3(%arg0: i32) -> (i32, i32) {
    %c0_i32 = arith.constant 0 : i32
    %c0_i32_0 = arith.constant 0 : i32
    return %arg0, %c0_i32 : i32, i32
  }
}

module attributes {stable_mosaic.version = 11 : i64} {
  func.func @_ffn_add_ln_kernel(%arg0: i32, %arg1: memref<16x32xf32, #tpu.memory_space<vmem>>, %arg2: memref<32x2048xbf16, #tpu.memory_space<vmem>>, %arg3: memref<1x2048xf32, #tpu.memory_space<vmem>>, %arg4: memref<2048x32xbf16, #tpu.memory_space<vmem>>, %arg5: memref<1x32xf32, #tpu.memory_space<vmem>>, %arg6: memref<16x32xf32, #tpu.memory_space<vmem>>, %arg7: memref<1x32xf32, #tpu.memory_space<vmem>>, %arg8: memref<1x32xf32, #tpu.memory_space<vmem>>, %arg9: memref<16x32xf32, #tpu.memory_space<vmem>>) attributes {dimension_semantics = [#tpu.dimension_semantics<parallel>], iteration_bounds = array<i64: 1>, scalar_prefetch = 0 : i64, scratch_operands = 0 : i64, tpu.core_type = #tpu.core_type<tc>, window_params = [{transform_indices = @transform_0, window_bounds = array<i64: 16, 32>}, {pipeline_mode = #tpu.pipeline_mode<synchronous>, transform_indices = @transform_1, window_bounds = array<i64: 32, 2048>}, {pipeline_mode = #tpu.pipeline_mode<synchronous>, transform_indices = @transform_2, window_bounds = array<i64: 1, 2048>}, {pipeline_mode = #tpu.pipeline_mode<synchronous>, transform_indices = @transform_3, window_bounds = array<i64: 2048, 32>}, {pipeline_mode = #tpu.pipeline_mode<synchronous>, transform_indices = @transform_4, window_bounds = array<i64: 1, 32>}, {transform_indices = @transform_5, window_bounds = array<i64: 16, 32>}, {pipeline_mode = #tpu.pipeline_mode<synchronous>, transform_indices = @transform_6, window_bounds = array<i64: 1, 32>}, {pipeline_mode = #tpu.pipeline_mode<synchronous>, transform_indices = @transform_7, window_bounds = array<i64: 1, 32>}, {transform_indices = @transform_8, window_bounds = array<i64: 16, 32>}]} {
    %c0 = arith.constant 0 : index
    %c0_0 = arith.constant 0 : index
    %0 = vector.load %arg1[%c0, %c0_0] : memref<16x32xf32, #tpu.memory_space<vmem>>, vector<16x32xf32>
    %1 = arith.truncf %0 : vector<16x32xf32> to vector<16x32xbf16>
    %c0_1 = arith.constant 0 : index
    %c0_2 = arith.constant 0 : index
    %2 = vector.load %arg2[%c0_1, %c0_2] : memref<32x2048xbf16, #tpu.memory_space<vmem>>, vector<32x2048xbf16>
    %cst = arith.constant dense<0.000000e+00> : vector<16x2048xf32>
    %3 = tpu.matmul %1, %2, %cst {dimension_numbers = #tpu.dot_dimension_numbers<[1], [0], [0], [1], [0, 0, 1, 1], [], []>} : vector<16x32xbf16>, vector<32x2048xbf16>, vector<16x2048xf32> -> vector<16x2048xf32>
    %c0_3 = arith.constant 0 : index
    %c0_4 = arith.constant 0 : index
    %4 = vector.load %arg3[%c0_3, %c0_4] : memref<1x2048xf32, #tpu.memory_space<vmem>>, vector<1x2048xf32>
    %5 = vector.broadcast %4 : vector<1x2048xf32> to vector<16x2048xf32>
    %6 = arith.addf %3, %5 : vector<16x2048xf32>
    %cst_5 = arith.constant 0.000000e+00 : f32
    %7 = vector.broadcast %cst_5 : f32 to vector<16x2048xf32>
    %8 = arith.maximumf %6, %7 : vector<16x2048xf32>
    %9 = arith.truncf %8 : vector<16x2048xf32> to vector<16x2048xbf16>
    %c0_6 = arith.constant 0 : index
    %c0_7 = arith.constant 0 : index
    %10 = vector.load %arg4[%c0_6, %c0_7] : memref<2048x32xbf16, #tpu.memory_space<vmem>>, vector<2048x32xbf16>
    %cst_8 = arith.constant dense<0.000000e+00> : vector<16x32xf32>
    %11 = tpu.matmul %9, %10, %cst_8 {dimension_numbers = #tpu.dot_dimension_numbers<[1], [0], [0], [1], [0, 0, 1, 1], [], []>} : vector<16x2048xbf16>, vector<2048x32xbf16>, vector<16x32xf32> -> vector<16x32xf32>
    %c0_9 = arith.constant 0 : index
    %c0_10 = arith.constant 0 : index
    %12 = vector.load %arg6[%c0_9, %c0_10] : memref<16x32xf32, #tpu.memory_space<vmem>>, vector<16x32xf32>
    %13 = arith.addf %12, %11 : vector<16x32xf32>
    %c0_11 = arith.constant 0 : index
    %c0_12 = arith.constant 0 : index
    %14 = vector.load %arg5[%c0_11, %c0_12] : memref<1x32xf32, #tpu.memory_space<vmem>>, vector<1x32xf32>
    %15 = vector.broadcast %14 : vector<1x32xf32> to vector<16x32xf32>
    %16 = arith.addf %13, %15 : vector<16x32xf32>
    %cst_13 = arith.constant dense<0.000000e+00> : vector<16xf32>
    %17 = vector.multi_reduction <add>, %16, %cst_13 [1] : vector<16x32xf32> to vector<16xf32>
    %18 = vector.shape_cast %17 : vector<16xf32> to vector<16x1xf32>
    %cst_14 = arith.constant 3.200000e+01 : f32
    %19 = vector.broadcast %cst_14 : f32 to vector<16x1xf32>
    %20 = arith.divf %18, %19 : vector<16x1xf32>
    %21 = vector.broadcast %20 : vector<16x1xf32> to vector<16x32xf32>
    %22 = arith.subf %16, %21 : vector<16x32xf32>
    %23 = arith.mulf %22, %22 : vector<16x32xf32>
    %cst_15 = arith.constant dense<0.000000e+00> : vector<16xf32>
    %24 = vector.multi_reduction <add>, %23, %cst_15 [1] : vector<16x32xf32> to vector<16xf32>
    %25 = vector.shape_cast %24 : vector<16xf32> to vector<16x1xf32>
    %cst_16 = arith.constant 3.200000e+01 : f32
    %26 = vector.broadcast %cst_16 : f32 to vector<16x1xf32>
    %27 = arith.divf %25, %26 : vector<16x1xf32>
    %28 = vector.broadcast %20 : vector<16x1xf32> to vector<16x32xf32>
    %29 = arith.subf %16, %28 : vector<16x32xf32>
    %cst_17 = arith.constant 9.99999974E-6 : f32
    %30 = vector.broadcast %cst_17 : f32 to vector<16x1xf32>
    %31 = arith.addf %27, %30 : vector<16x1xf32>
    %32 = math.rsqrt %31 : vector<16x1xf32>
    %33 = vector.broadcast %32 : vector<16x1xf32> to vector<16x32xf32>
    %34 = arith.mulf %29, %33 : vector<16x32xf32>
    %c0_18 = arith.constant 0 : index
    %c0_19 = arith.constant 0 : index
    %35 = vector.load %arg7[%c0_18, %c0_19] : memref<1x32xf32, #tpu.memory_space<vmem>>, vector<1x32xf32>
    %36 = vector.broadcast %35 : vector<1x32xf32> to vector<16x32xf32>
    %37 = arith.mulf %34, %36 : vector<16x32xf32>
    %c0_20 = arith.constant 0 : index
    %c0_21 = arith.constant 0 : index
    %38 = vector.load %arg8[%c0_20, %c0_21] : memref<1x32xf32, #tpu.memory_space<vmem>>, vector<1x32xf32>
    %39 = vector.broadcast %38 : vector<1x32xf32> to vector<16x32xf32>
    %40 = arith.addf %37, %39 : vector<16x32xf32>
    %c0_22 = arith.constant 0 : index
    %c0_23 = arith.constant 0 : index
    %41 = vector.load %arg9[%c0_22, %c0_23] : memref<16x32xf32, #tpu.memory_space<vmem>>, vector<16x32xf32>
    tpu.vector_store %arg9[%c0_22, %c0_23], %40 {strides = array<i32>} : memref<16x32xf32, #tpu.memory_space<vmem>>, vector<16x32xf32>,
    return
  }
  func.func @transform_0(%arg0: i32) -> (i32, i32) {
    %c0_i32 = arith.constant 0 : i32
    %c0_i32_0 = arith.constant 0 : i32
    return %arg0, %c0_i32 : i32, i32
  }
  func.func @transform_1(%arg0: i32) -> (i32, i32) {
    %c0_i32 = arith.constant 0 : i32
    %c0_i32_0 = arith.constant 0 : i32
    %c0_i32_1 = arith.constant 0 : i32
    return %c0_i32, %c0_i32_0 : i32, i32
  }
  func.func @transform_2(%arg0: i32) -> (i32, i32) {
    %c0_i32 = arith.constant 0 : i32
    %c0_i32_0 = arith.constant 0 : i32
    %c0_i32_1 = arith.constant 0 : i32
    return %c0_i32, %c0_i32_0 : i32, i32
  }
  func.func @transform_3(%arg0: i32) -> (i32, i32) {
    %c0_i32 = arith.constant 0 : i32
    %c0_i32_0 = arith.constant 0 : i32
    %c0_i32_1 = arith.constant 0 : i32
    return %c0_i32, %c0_i32_0 : i32, i32
  }
  func.func @transform_4(%arg0: i32) -> (i32, i32) {
    %c0_i32 = arith.constant 0 : i32
    %c0_i32_0 = arith.constant 0 : i32
    %c0_i32_1 = arith.constant 0 : i32
    return %c0_i32, %c0_i32_0 : i32, i32
  }
  func.func @transform_5(%arg0: i32) -> (i32, i32) {
    %c0_i32 = arith.constant 0 : i32
    %c0_i32_0 = arith.constant 0 : i32
    return %arg0, %c0_i32 : i32, i32
  }
  func.func @transform_6(%arg0: i32) -> (i32, i32) {
    %c0_i32 = arith.constant 0 : i32
    %c0_i32_0 = arith.constant 0 : i32
    %c0_i32_1 = arith.constant 0 : i32
    return %c0_i32, %c0_i32_0 : i32, i32
  }
  func.func @transform_7(%arg0: i32) -> (i32, i32) {
    %c0_i32 = arith.constant 0 : i32
    %c0_i32_0 = arith.constant 0 : i32
    %c0_i32_1 = arith.constant 0 : i32
    return %c0_i32, %c0_i32_0 : i32, i32
  }
  func.func @transform_8(%arg0: i32) -> (i32, i32) {
    %c0_i32 = arith.constant 0 : i32
    %c0_i32_0 = arith.constant 0 : i32
    return %arg0, %c0_i32 : i32, i32
  }
}

module attributes {stable_mosaic.version = 11 : i64} {
  func.func @_ffn_add_ln_kernel(%arg0: i32, %arg1: memref<16x32xf32, #tpu.memory_space<vmem>>, %arg2: memref<32x2048xbf16, #tpu.memory_space<vmem>>, %arg3: memref<1x2048xf32, #tpu.memory_space<vmem>>, %arg4: memref<2048x32xbf16, #tpu.memory_space<vmem>>, %arg5: memref<1x32xf32, #tpu.memory_space<vmem>>, %arg6: memref<16x32xf32, #tpu.memory_space<vmem>>, %arg7: memref<1x32xf32, #tpu.memory_space<vmem>>, %arg8: memref<1x32xf32, #tpu.memory_space<vmem>>, %arg9: memref<16x32xf32, #tpu.memory_space<vmem>>) attributes {dimension_semantics = [#tpu.dimension_semantics<parallel>], iteration_bounds = array<i64: 1>, scalar_prefetch = 0 : i64, scratch_operands = 0 : i64, tpu.core_type = #tpu.core_type<tc>, window_params = [{transform_indices = @transform_0, window_bounds = array<i64: 16, 32>}, {pipeline_mode = #tpu.pipeline_mode<synchronous>, transform_indices = @transform_1, window_bounds = array<i64: 32, 2048>}, {pipeline_mode = #tpu.pipeline_mode<synchronous>, transform_indices = @transform_2, window_bounds = array<i64: 1, 2048>}, {pipeline_mode = #tpu.pipeline_mode<synchronous>, transform_indices = @transform_3, window_bounds = array<i64: 2048, 32>}, {pipeline_mode = #tpu.pipeline_mode<synchronous>, transform_indices = @transform_4, window_bounds = array<i64: 1, 32>}, {transform_indices = @transform_5, window_bounds = array<i64: 16, 32>}, {pipeline_mode = #tpu.pipeline_mode<synchronous>, transform_indices = @transform_6, window_bounds = array<i64: 1, 32>}, {pipeline_mode = #tpu.pipeline_mode<synchronous>, transform_indices = @transform_7, window_bounds = array<i64: 1, 32>}, {transform_indices = @transform_8, window_bounds = array<i64: 16, 32>}]} {
    %c0 = arith.constant 0 : index
    %c0_0 = arith.constant 0 : index
    %0 = vector.load %arg1[%c0, %c0_0] : memref<16x32xf32, #tpu.memory_space<vmem>>, vector<16x32xf32>
    %1 = arith.truncf %0 : vector<16x32xf32> to vector<16x32xbf16>
    %c0_1 = arith.constant 0 : index
    %c0_2 = arith.constant 0 : index
    %2 = vector.load %arg2[%c0_1, %c0_2] : memref<32x2048xbf16, #tpu.memory_space<vmem>>, vector<32x2048xbf16>
    %cst = arith.constant dense<0.000000e+00> : vector<16x2048xf32>
    %3 = tpu.matmul %1, %2, %cst {dimension_numbers = #tpu.dot_dimension_numbers<[1], [0], [0], [1], [0, 0, 1, 1], [], []>} : vector<16x32xbf16>, vector<32x2048xbf16>, vector<16x2048xf32> -> vector<16x2048xf32>
    %c0_3 = arith.constant 0 : index
    %c0_4 = arith.constant 0 : index
    %4 = vector.load %arg3[%c0_3, %c0_4] : memref<1x2048xf32, #tpu.memory_space<vmem>>, vector<1x2048xf32>
    %5 = vector.broadcast %4 : vector<1x2048xf32> to vector<16x2048xf32>
    %6 = arith.addf %3, %5 : vector<16x2048xf32>
    %cst_5 = arith.constant 0.000000e+00 : f32
    %7 = vector.broadcast %cst_5 : f32 to vector<16x2048xf32>
    %8 = arith.maximumf %6, %7 : vector<16x2048xf32>
    %9 = arith.truncf %8 : vector<16x2048xf32> to vector<16x2048xbf16>
    %c0_6 = arith.constant 0 : index
    %c0_7 = arith.constant 0 : index
    %10 = vector.load %arg4[%c0_6, %c0_7] : memref<2048x32xbf16, #tpu.memory_space<vmem>>, vector<2048x32xbf16>
    %cst_8 = arith.constant dense<0.000000e+00> : vector<16x32xf32>
    %11 = tpu.matmul %9, %10, %cst_8 {dimension_numbers = #tpu.dot_dimension_numbers<[1], [0], [0], [1], [0, 0, 1, 1], [], []>} : vector<16x2048xbf16>, vector<2048x32xbf16>, vector<16x32xf32> -> vector<16x32xf32>
    %c0_9 = arith.constant 0 : index
    %c0_10 = arith.constant 0 : index
    %12 = vector.load %arg6[%c0_9, %c0_10] : memref<16x32xf32, #tpu.memory_space<vmem>>, vector<16x32xf32>
    %13 = arith.addf %12, %11 : vector<16x32xf32>
    %c0_11 = arith.constant 0 : index
    %c0_12 = arith.constant 0 : index
    %14 = vector.load %arg5[%c0_11, %c0_12] : memref<1x32xf32, #tpu.memory_space<vmem>>, vector<1x32xf32>
    %15 = vector.broadcast %14 : vector<1x32xf32> to vector<16x32xf32>
    %16 = arith.addf %13, %15 : vector<16x32xf32>
    %cst_13 = arith.constant dense<0.000000e+00> : vector<16xf32>
    %17 = vector.multi_reduction <add>, %16, %cst_13 [1] : vector<16x32xf32> to vector<16xf32>
    %18 = vector.shape_cast %17 : vector<16xf32> to vector<16x1xf32>
    %cst_14 = arith.constant 3.200000e+01 : f32
    %19 = vector.broadcast %cst_14 : f32 to vector<16x1xf32>
    %20 = arith.divf %18, %19 : vector<16x1xf32>
    %21 = vector.broadcast %20 : vector<16x1xf32> to vector<16x32xf32>
    %22 = arith.subf %16, %21 : vector<16x32xf32>
    %23 = arith.mulf %22, %22 : vector<16x32xf32>
    %cst_15 = arith.constant dense<0.000000e+00> : vector<16xf32>
    %24 = vector.multi_reduction <add>, %23, %cst_15 [1] : vector<16x32xf32> to vector<16xf32>
    %25 = vector.shape_cast %24 : vector<16xf32> to vector<16x1xf32>
    %cst_16 = arith.constant 3.200000e+01 : f32
    %26 = vector.broadcast %cst_16 : f32 to vector<16x1xf32>
    %27 = arith.divf %25, %26 : vector<16x1xf32>
    %28 = vector.broadcast %20 : vector<16x1xf32> to vector<16x32xf32>
    %29 = arith.subf %16, %28 : vector<16x32xf32>
    %cst_17 = arith.constant 9.99999974E-6 : f32
    %30 = vector.broadcast %cst_17 : f32 to vector<16x1xf32>
    %31 = arith.addf %27, %30 : vector<16x1xf32>
    %32 = math.rsqrt %31 : vector<16x1xf32>
    %33 = vector.broadcast %32 : vector<16x1xf32> to vector<16x32xf32>
    %34 = arith.mulf %29, %33 : vector<16x32xf32>
    %c0_18 = arith.constant 0 : index
    %c0_19 = arith.constant 0 : index
    %35 = vector.load %arg7[%c0_18, %c0_19] : memref<1x32xf32, #tpu.memory_space<vmem>>, vector<1x32xf32>
    %36 = vector.broadcast %35 : vector<1x32xf32> to vector<16x32xf32>
    %37 = arith.mulf %34, %36 : vector<16x32xf32>
    %c0_20 = arith.constant 0 : index
    %c0_21 = arith.constant 0 : index
    %38 = vector.load %arg8[%c0_20, %c0_21] : memref<1x32xf32, #tpu.memory_space<vmem>>, vector<1x32xf32>
    %39 = vector.broadcast %38 : vector<1x32xf32> to vector<16x32xf32>
    %40 = arith.addf %37, %39 : vector<16x32xf32>
    %c0_22 = arith.constant 0 : index
    %c0_23 = arith.constant 0 : index
    %41 = vector.load %arg9[%c0_22, %c0_23] : memref<16x32xf32, #tpu.memory_space<vmem>>, vector<16x32xf32>
    tpu.vector_store %arg9[%c0_22, %c0_23], %40 {strides = array<i32>} : memref<16x32xf32, #tpu.memory_space<vmem>>, vector<16x32xf32>,
    return
  }
  func.func @transform_0(%arg0: i32) -> (i32, i32) {
    %c0_i32 = arith.constant 0 : i32
    %c0_i32_0 = arith.constant 0 : i32
    return %arg0, %c0_i32 : i32, i32
  }
  func.func @transform_1(%arg0: i32) -> (i32, i32) {
    %c0_i32 = arith.constant 0 : i32
    %c0_i32_0 = arith.constant 0 : i32
    %c0_i32_1 = arith.constant 0 : i32
    return %c0_i32, %c0_i32_0 : i32, i32
  }
  func.func @transform_2(%arg0: i32) -> (i32, i32) {
    %c0_i32 = arith.constant 0 : i32
    %c0_i32_0 = arith.constant 0 : i32
    %c0_i32_1 = arith.constant 0 : i32
    return %c0_i32, %c0_i32_0 : i32, i32
  }
  func.func @transform_3(%arg0: i32) -> (i32, i32) {
    %c0_i32 = arith.constant 0 : i32
    %c0_i32_0 = arith.constant 0 : i32
    %c0_i32_1 = arith.constant 0 : i32
    return %c0_i32, %c0_i32_0 : i32, i32
  }
  func.func @transform_4(%arg0: i32) -> (i32, i32) {
    %c0_i32 = arith.constant 0 : i32
    %c0_i32_0 = arith.constant 0 : i32
    %c0_i32_1 = arith.constant 0 : i32
    return %c0_i32, %c0_i32_0 : i32, i32
  }
  func.func @transform_5(%arg0: i32) -> (i32, i32) {
    %c0_i32 = arith.constant 0 : i32
    %c0_i32_0 = arith.constant 0 : i32
    return %arg0, %c0_i32 : i32, i32
  }
  func.func @transform_6(%arg0: i32) -> (i32, i32) {
    %c0_i32 = arith.constant 0 : i32
    %c0_i32_0 = arith.constant 0 : i32
    %c0_i32_1 = arith.constant 0 : i32
    return %c0_i32, %c0_i32_0 : i32, i32
  }
  func.func @transform_7(%arg0: i32) -> (i32, i32) {
    %c0_i32 = arith.constant 0 : i32
    %c0_i32_0 = arith.constant 0 : i32
    %c0_i32_1 = arith.constant 0 : i32
    return %c0_i32, %c0_i32_0 : i32, i32
  }
  func.func @transform_8(%arg0: i32) -> (i32, i32) {
    %c0_i32 = arith.constant 0 : i32
    %c0_i32_0 = arith.constant 0 : i32
    return %arg0, %c0_i32 : i32, i32
  }
}

module attributes {stable_mosaic.version = 11 : i64} {
  func.func @_cross_attn_kernel(%arg0: i32, %arg1: memref<1x8x32xf32, #tpu.memory_space<vmem>>, %arg2: memref<1x8x64xf32, #tpu.memory_space<vmem>>, %arg3: memref<1x1x8xf32, #tpu.memory_space<vmem>>, %arg4: memref<1x8x32xf32, #tpu.memory_space<vmem>>) attributes {dimension_semantics = [#tpu.dimension_semantics<parallel>], iteration_bounds = array<i64: 2>, scalar_prefetch = 0 : i64, scratch_operands = 0 : i64, tpu.core_type = #tpu.core_type<tc>, window_params = [{transform_indices = @transform_0, window_bounds = array<i64: 1, 8, 32>}, {transform_indices = @transform_1, window_bounds = array<i64: 1, 8, 64>}, {transform_indices = @transform_2, window_bounds = array<i64: 1, 1, 8>}, {transform_indices = @transform_3, window_bounds = array<i64: 1, 8, 32>}]} {
    %c0 = arith.constant 0 : index
    %c0_0 = arith.constant 0 : index
    %c0_1 = arith.constant 0 : index
    %0 = vector.load %arg1[%c0, %c0_0, %c0_1] : memref<1x8x32xf32, #tpu.memory_space<vmem>>, vector<1x8x32xf32>
    %1 = vector.shape_cast %0 : vector<1x8x32xf32> to vector<8x32xf32>
    %c0_2 = arith.constant 0 : index
    %c0_3 = arith.constant 0 : index
    %c0_4 = arith.constant 0 : index
    %2 = vector.load %arg2[%c0_2, %c0_3, %c0_4] : memref<1x8x64xf32, #tpu.memory_space<vmem>>, vector<1x8x64xf32>
    %3 = vector.shape_cast %2 : vector<1x8x64xf32> to vector<8x64xf32>
    %c0_5 = arith.constant 0 : index
    %c0_6 = arith.constant 0 : index
    %c0_7 = arith.constant 0 : index
    %4 = vector.load %arg3[%c0_5, %c0_6, %c0_7] : memref<1x1x8xf32, #tpu.memory_space<vmem>>, vector<1x1x8xf32>
    %5 = vector.shape_cast %4 : vector<1x1x8xf32> to vector<1x8xf32>
    %6 = vector.extract_strided_slice %1 {offsets = [0, 0], sizes = [8, 8], strides = [1, 1]} : vector<8x32xf32> to vector<8x8xf32>
    %7 = arith.truncf %6 : vector<8x8xf32> to vector<8x8xbf16>
    %8 = vector.extract_strided_slice %3 {offsets = [0, 0], sizes = [8, 8], strides = [1, 1]} : vector<8x64xf32> to vector<8x8xf32>
    %9 = arith.truncf %8 : vector<8x8xf32> to vector<8x8xbf16>
    %10 = vector.extract_strided_slice %3 {offsets = [0, 32], sizes = [8, 8], strides = [1, 1]} : vector<8x64xf32> to vector<8x8xf32>
    %11 = arith.truncf %10 : vector<8x8xf32> to vector<8x8xbf16>
    %cst = arith.constant dense<0.000000e+00> : vector<8x8xf32>
    %12 = tpu.matmul %7, %9, %cst {dimension_numbers = #tpu.dot_dimension_numbers<[1], [1], [0], [0], [0, 0, 1, 0], [], []>} : vector<8x8xbf16>, vector<8x8xbf16>, vector<8x8xf32> -> vector<8x8xf32>
    %cst_8 = arith.constant 0.353553385 : f32
    %13 = vector.broadcast %cst_8 : f32 to vector<8x8xf32>
    %14 = arith.mulf %12, %13 : vector<8x8xf32>
    %15 = vector.broadcast %5 : vector<1x8xf32> to vector<8x8xf32>
    %16 = arith.addf %14, %15 : vector<8x8xf32>
    %cst_9 = arith.constant dense<0xFF800000> : vector<8xf32>
    %17 = vector.multi_reduction <maximumf>, %16, %cst_9 [1] : vector<8x8xf32> to vector<8xf32>
    %18 = vector.shape_cast %17 : vector<8xf32> to vector<8x1xf32>
    %19 = vector.broadcast %18 : vector<8x1xf32> to vector<8x8xf32>
    %20 = arith.subf %16, %19 : vector<8x8xf32>
    %21 = math.exp %20 : vector<8x8xf32>
    %cst_10 = arith.constant dense<0.000000e+00> : vector<8xf32>
    %22 = vector.multi_reduction <add>, %21, %cst_10 [1] : vector<8x8xf32> to vector<8xf32>
    %23 = vector.shape_cast %22 : vector<8xf32> to vector<8x1xf32>
    %24 = tpu.reciprocal %23 {approx = true} : vector<8x1xf32> -> vector<8x1xf32>
    %25 = vector.broadcast %24 : vector<8x1xf32> to vector<8x8xf32>
    %26 = arith.mulf %21, %25 : vector<8x8xf32>
    %27 = arith.truncf %26 : vector<8x8xf32> to vector<8x8xbf16>
    %cst_11 = arith.constant dense<0.000000e+00> : vector<8x8xf32>
    %28 = tpu.matmul %27, %11, %cst_11 {dimension_numbers = #tpu.dot_dimension_numbers<[1], [0], [0], [1], [0, 0, 1, 1], [], []>} : vector<8x8xbf16>, vector<8x8xbf16>, vector<8x8xf32> -> vector<8x8xf32>
    %29 = vector.extract_strided_slice %1 {offsets = [0, 8], sizes = [8, 8], strides = [1, 1]} : vector<8x32xf32> to vector<8x8xf32>
    %30 = arith.truncf %29 : vector<8x8xf32> to vector<8x8xbf16>
    %31 = vector.extract_strided_slice %3 {offsets = [0, 8], sizes = [8, 8], strides = [1, 1]} : vector<8x64xf32> to vector<8x8xf32>
    %32 = arith.truncf %31 : vector<8x8xf32> to vector<8x8xbf16>
    %33 = vector.extract_strided_slice %3 {offsets = [0, 40], sizes = [8, 8], strides = [1, 1]} : vector<8x64xf32> to vector<8x8xf32>
    %34 = arith.truncf %33 : vector<8x8xf32> to vector<8x8xbf16>
    %cst_12 = arith.constant dense<0.000000e+00> : vector<8x8xf32>
    %35 = tpu.matmul %30, %32, %cst_12 {dimension_numbers = #tpu.dot_dimension_numbers<[1], [1], [0], [0], [0, 0, 1, 0], [], []>} : vector<8x8xbf16>, vector<8x8xbf16>, vector<8x8xf32> -> vector<8x8xf32>
    %cst_13 = arith.constant 0.353553385 : f32
    %36 = vector.broadcast %cst_13 : f32 to vector<8x8xf32>
    %37 = arith.mulf %35, %36 : vector<8x8xf32>
    %38 = vector.broadcast %5 : vector<1x8xf32> to vector<8x8xf32>
    %39 = arith.addf %37, %38 : vector<8x8xf32>
    %cst_14 = arith.constant dense<0xFF800000> : vector<8xf32>
    %40 = vector.multi_reduction <maximumf>, %39, %cst_14 [1] : vector<8x8xf32> to vector<8xf32>
    %41 = vector.shape_cast %40 : vector<8xf32> to vector<8x1xf32>
    %42 = vector.broadcast %41 : vector<8x1xf32> to vector<8x8xf32>
    %43 = arith.subf %39, %42 : vector<8x8xf32>
    %44 = math.exp %43 : vector<8x8xf32>
    %cst_15 = arith.constant dense<0.000000e+00> : vector<8xf32>
    %45 = vector.multi_reduction <add>, %44, %cst_15 [1] : vector<8x8xf32> to vector<8xf32>
    %46 = vector.shape_cast %45 : vector<8xf32> to vector<8x1xf32>
    %47 = tpu.reciprocal %46 {approx = true} : vector<8x1xf32> -> vector<8x1xf32>
    %48 = vector.broadcast %47 : vector<8x1xf32> to vector<8x8xf32>
    %49 = arith.mulf %44, %48 : vector<8x8xf32>
    %50 = arith.truncf %49 : vector<8x8xf32> to vector<8x8xbf16>
    %cst_16 = arith.constant dense<0.000000e+00> : vector<8x8xf32>
    %51 = tpu.matmul %50, %34, %cst_16 {dimension_numbers = #tpu.dot_dimension_numbers<[1], [0], [0], [1], [0, 0, 1, 1], [], []>} : vector<8x8xbf16>, vector<8x8xbf16>, vector<8x8xf32> -> vector<8x8xf32>
    %52 = vector.extract_strided_slice %1 {offsets = [0, 16], sizes = [8, 8], strides = [1, 1]} : vector<8x32xf32> to vector<8x8xf32>
    %53 = arith.truncf %52 : vector<8x8xf32> to vector<8x8xbf16>
    %54 = vector.extract_strided_slice %3 {offsets = [0, 16], sizes = [8, 8], strides = [1, 1]} : vector<8x64xf32> to vector<8x8xf32>
    %55 = arith.truncf %54 : vector<8x8xf32> to vector<8x8xbf16>
    %56 = vector.extract_strided_slice %3 {offsets = [0, 48], sizes = [8, 8], strides = [1, 1]} : vector<8x64xf32> to vector<8x8xf32>
    %57 = arith.truncf %56 : vector<8x8xf32> to vector<8x8xbf16>
    %cst_17 = arith.constant dense<0.000000e+00> : vector<8x8xf32>
    %58 = tpu.matmul %53, %55, %cst_17 {dimension_numbers = #tpu.dot_dimension_numbers<[1], [1], [0], [0], [0, 0, 1, 0], [], []>} : vector<8x8xbf16>, vector<8x8xbf16>, vector<8x8xf32> -> vector<8x8xf32>
    %cst_18 = arith.constant 0.353553385 : f32
    %59 = vector.broadcast %cst_18 : f32 to vector<8x8xf32>
    %60 = arith.mulf %58, %59 : vector<8x8xf32>
    %61 = vector.broadcast %5 : vector<1x8xf32> to vector<8x8xf32>
    %62 = arith.addf %60, %61 : vector<8x8xf32>
    %cst_19 = arith.constant dense<0xFF800000> : vector<8xf32>
    %63 = vector.multi_reduction <maximumf>, %62, %cst_19 [1] : vector<8x8xf32> to vector<8xf32>
    %64 = vector.shape_cast %63 : vector<8xf32> to vector<8x1xf32>
    %65 = vector.broadcast %64 : vector<8x1xf32> to vector<8x8xf32>
    %66 = arith.subf %62, %65 : vector<8x8xf32>
    %67 = math.exp %66 : vector<8x8xf32>
    %cst_20 = arith.constant dense<0.000000e+00> : vector<8xf32>
    %68 = vector.multi_reduction <add>, %67, %cst_20 [1] : vector<8x8xf32> to vector<8xf32>
    %69 = vector.shape_cast %68 : vector<8xf32> to vector<8x1xf32>
    %70 = tpu.reciprocal %69 {approx = true} : vector<8x1xf32> -> vector<8x1xf32>
    %71 = vector.broadcast %70 : vector<8x1xf32> to vector<8x8xf32>
    %72 = arith.mulf %67, %71 : vector<8x8xf32>
    %73 = arith.truncf %72 : vector<8x8xf32> to vector<8x8xbf16>
    %cst_21 = arith.constant dense<0.000000e+00> : vector<8x8xf32>
    %74 = tpu.matmul %73, %57, %cst_21 {dimension_numbers = #tpu.dot_dimension_numbers<[1], [0], [0], [1], [0, 0, 1, 1], [], []>} : vector<8x8xbf16>, vector<8x8xbf16>, vector<8x8xf32> -> vector<8x8xf32>
    %75 = vector.extract_strided_slice %1 {offsets = [0, 24], sizes = [8, 8], strides = [1, 1]} : vector<8x32xf32> to vector<8x8xf32>
    %76 = arith.truncf %75 : vector<8x8xf32> to vector<8x8xbf16>
    %77 = vector.extract_strided_slice %3 {offsets = [0, 24], sizes = [8, 8], strides = [1, 1]} : vector<8x64xf32> to vector<8x8xf32>
    %78 = arith.truncf %77 : vector<8x8xf32> to vector<8x8xbf16>
    %79 = vector.extract_strided_slice %3 {offsets = [0, 56], sizes = [8, 8], strides = [1, 1]} : vector<8x64xf32> to vector<8x8xf32>
    %80 = arith.truncf %79 : vector<8x8xf32> to vector<8x8xbf16>
    %cst_22 = arith.constant dense<0.000000e+00> : vector<8x8xf32>
    %81 = tpu.matmul %76, %78, %cst_22 {dimension_numbers = #tpu.dot_dimension_numbers<[1], [1], [0], [0], [0, 0, 1, 0], [], []>} : vector<8x8xbf16>, vector<8x8xbf16>, vector<8x8xf32> -> vector<8x8xf32>
    %cst_23 = arith.constant 0.353553385 : f32
    %82 = vector.broadcast %cst_23 : f32 to vector<8x8xf32>
    %83 = arith.mulf %81, %82 : vector<8x8xf32>
    %84 = vector.broadcast %5 : vector<1x8xf32> to vector<8x8xf32>
    %85 = arith.addf %83, %84 : vector<8x8xf32>
    %cst_24 = arith.constant dense<0xFF800000> : vector<8xf32>
    %86 = vector.multi_reduction <maximumf>, %85, %cst_24 [1] : vector<8x8xf32> to vector<8xf32>
    %87 = vector.shape_cast %86 : vector<8xf32> to vector<8x1xf32>
    %88 = vector.broadcast %87 : vector<8x1xf32> to vector<8x8xf32>
    %89 = arith.subf %85, %88 : vector<8x8xf32>
    %90 = math.exp %89 : vector<8x8xf32>
    %cst_25 = arith.constant dense<0.000000e+00> : vector<8xf32>
    %91 = vector.multi_reduction <add>, %90, %cst_25 [1] : vector<8x8xf32> to vector<8xf32>
    %92 = vector.shape_cast %91 : vector<8xf32> to vector<8x1xf32>
    %93 = tpu.reciprocal %92 {approx = true} : vector<8x1xf32> -> vector<8x1xf32>
    %94 = vector.broadcast %93 : vector<8x1xf32> to vector<8x8xf32>
    %95 = arith.mulf %90, %94 : vector<8x8xf32>
    %96 = arith.truncf %95 : vector<8x8xf32> to vector<8x8xbf16>
    %cst_26 = arith.constant dense<0.000000e+00> : vector<8x8xf32>
    %97 = tpu.matmul %96, %80, %cst_26 {dimension_numbers = #tpu.dot_dimension_numbers<[1], [0], [0], [1], [0, 0, 1, 1], [], []>} : vector<8x8xbf16>, vector<8x8xbf16>, vector<8x8xf32> -> vector<8x8xf32>
    %98 = tpu.concatenate %28, %51, %74, %97 in 1 : vector<8x8xf32>, vector<8x8xf32>, vector<8x8xf32>, vector<8x8xf32> -> vector<8x32xf32>
    %c0_27 = arith.constant 0 : index
    %c0_28 = arith.constant 0 : index
    %c0_29 = arith.constant 0 : index
    %99 = vector.load %arg4[%c0_27, %c0_28, %c0_29] : memref<1x8x32xf32, #tpu.memory_space<vmem>>, vector<1x8x32xf32>
    %100 = vector.shape_cast %99 : vector<1x8x32xf32> to vector<8x32xf32>
    %101 = vector.shape_cast %98 : vector<8x32xf32> to vector<1x8x32xf32>
    tpu.vector_store %arg4[%c0_27, %c0_28, %c0_29], %101 {strides = array<i32>} : memref<1x8x32xf32, #tpu.memory_space<vmem>>, vector<1x8x32xf32>,
    return
  }
  func.func @transform_0(%arg0: i32) -> (i32, i32, i32) {
    %c0_i32 = arith.constant 0 : i32
    %c0_i32_0 = arith.constant 0 : i32
    %c0_i32_1 = arith.constant 0 : i32
    return %arg0, %c0_i32, %c0_i32_0 : i32, i32, i32
  }
  func.func @transform_1(%arg0: i32) -> (i32, i32, i32) {
    %c0_i32 = arith.constant 0 : i32
    %c0_i32_0 = arith.constant 0 : i32
    %c0_i32_1 = arith.constant 0 : i32
    return %arg0, %c0_i32, %c0_i32_0 : i32, i32, i32
  }
  func.func @transform_2(%arg0: i32) -> (i32, i32, i32) {
    %c0_i32 = arith.constant 0 : i32
    %c0_i32_0 = arith.constant 0 : i32
    %c0_i32_1 = arith.constant 0 : i32
    return %arg0, %c0_i32, %c0_i32_0 : i32, i32, i32
  }
  func.func @transform_3(%arg0: i32) -> (i32, i32, i32) {
    %c0_i32 = arith.constant 0 : i32
    %c0_i32_0 = arith.constant 0 : i32
    %c0_i32_1 = arith.constant 0 : i32
    return %arg0, %c0_i32, %c0_i32_0 : i32, i32, i32
  }
}

</mosaic_0001>

<llo_original>
// kernel: _lambda_.38
$region0: #{_lambda_.38}
  #allocation0 [shape = 'u32[]', space=smem, size = 0x4, offset = 0x4, fixed_abs, tag = 'smem constant byte address 0x4 - core index']
  #allocation1 [shape = 'u32[72,128]{1,0:T(1,128)}', space=vmem, size = 0x9000, scoped, tag = 'internal scratch']
  %s0 = inlined_call_operand.vmem [shape: f32[16,32], index: 0, kind: input, shape index: {}]
  %s1 = inlined_call_operand.vmem [shape: bf16[32,32], index: 1, kind: input, shape index: {}]
  %s2 = inlined_call_operand.vmem [shape: f32[1,32], index: 2, kind: input, shape index: {}]
  %s3 = inlined_call_operand.vmem [shape: f32[16,32], index: 3, kind: input, shape index: {}]
  %s4 = inlined_call_operand.vmem [shape: f32[1,32], index: 4, kind: input, shape index: {}]
  %s5 = inlined_call_operand.vmem [shape: f32[1,32], index: 5, kind: input, shape index: {}]
  %s6 = inlined_call_operand.vmem [shape: f32[16,32], index: 6, kind: output, shape index: {}]
  %s7 = sld [smem:[#allocation0]]
  $region34: #{_lambda_.38} parent=0
    _
  %s9 = ssub.s32 1, %s7
  %s10 = scalar_select 0, %s9, %s7
  // Predicated region
  $region2: #{_lambda_.38} parent=0 // pred_check
    _
  $region3: #{_lambda_.38} parent=0 // pred_check_branch
    %12 = sbr.rel (0) target = $region5
  $region4: #{_lambda_.38} parent=0 // pred_region
    _
  $region5: #{_lambda_.38} parent=0 // pred_fallthru
    _
  // Predicated region
  $region6: #{_lambda_.38} parent=0 // pred_check
    _
  $region7: #{_lambda_.38} parent=0 // pred_check_branch
    %14 = sbr.rel (0) target = $region9
  $region8: #{_lambda_.38} parent=0 // pred_region
    _
  $region9: #{_lambda_.38} parent=0 // pred_fallthru
    _
  // Predicated region
  $region10: #{_lambda_.38} parent=0 // pred_check
    _
  $region11: #{_lambda_.38} parent=0 // pred_check_branch
    %16 = sbr.rel (0) target = $region13
  $region12: #{_lambda_.38} parent=0 // pred_region
    _
  $region13: #{_lambda_.38} parent=0 // pred_fallthru
    _
  // Predicated region
  $region14: #{_lambda_.38} parent=0 // pred_check
    _
  $region15: #{_lambda_.38} parent=0 // pred_check_branch
    %18 = sbr.rel (0) target = $region17
  $region16: #{_lambda_.38} parent=0 // pred_region
    _
  $region17: #{_lambda_.38} parent=0 // pred_fallthru
    _
  // Predicated region
  $region18: #{_lambda_.38} parent=0 // pred_check
    _
  $region19: #{_lambda_.38} parent=0 // pred_check_branch
    %20 = sbr.rel (0) target = $region21
  $region20: #{_lambda_.38} parent=0 // pred_region
    _
  $region21: #{_lambda_.38} parent=0 // pred_fallthru
    _
  // Predicated region
  $region22: #{_lambda_.38} parent=0 // pred_check
    _
  $region23: #{_lambda_.38} parent=0 // pred_check_branch
    %22 = sbr.rel (0) target = $region25
  $region24: #{_lambda_.38} parent=0 // pred_region
    _
  $region25: #{_lambda_.38} parent=0 // pred_fallthru
    _
  %v24 = vld [vmem:[%s0] sm:$0xff]
  %v25 = vld [vmem:[%s0 + $0x8] sm:$0xff]
  %v26 = vpack.c.bf16 %v25, %v24
  %v27 = vld [vmem:[%s1] sm:$0xf]
  %v28 = vld [vmem:[%s1 + $0x4] sm:$0xf]
  %v29 = vld [vmem:[%s1 + $0x8] sm:$0xf]
  %v30 = vld [vmem:[%s1 + $0xc] sm:$0xf]
  %v35 = vunpack.c.l.b16 %v27
  %v36 = vunpack.c.l.b16 %v28
  %v37 = vunpack.c.l.b16 %v29
  %v38 = vunpack.c.l.b16 %v30
  %v39 = vpack.c.b16 %v36, %v35
  %v40 = vpack.c.b16 %v38, %v37
  %vm43 = vcmask 261120
  %v45 = vsel %vm43, %v26, 0
  %47 = vmatpush.bf16.msra.mxu0 0
  %48 = vmatpush.bf16.msra.mxu0 0
  %49 = vmatpush.bf16.msra.mxu0 0
  %50 = vmatpush.bf16.msra.mxu0 0
  %51 = vmatpush.bf16.msra.mxu0 0
  %52 = vmatpush.bf16.msra.mxu0 0
  %53 = vmatpush.bf16.msra.mxu0 %v40
  %54 = vmatpush.bf16.msra.mxu0 %v39
  %55 = vmatmul.bf16.gmra.mxu0 %v45
  %v56 = vpop.f32.mrf.mxu0
  %v57 = vadd.f32 0.0, %v56
  %v58 = vpop.f32.mrf.mxu0
  %v59 = vadd.f32 0.0, %v58
  %60 = vdwg.mxu0
  %v61 = vld [vmem:[%s3] sm:$0xff]
  %v62 = vld [vmem:[%s3 + $0x8] sm:$0xff]
  %v63 = vadd.f32 %v61, %v57
  %v64 = vadd.f32 %v62, %v59
  %v65 = vld [vmem:[%s2] sm:$0x1]
  %v67 = vperm.slane %v65, 0
  %v69 = vadd.f32 %v63, %v67
  %v70 = vadd.f32 %v64, %v67
  %v71 = vsel %vm43, %v69, 0.0
  %72 = vadd.xlane.f32.xlu0 %v71
  %v73 = vpop.xlane.xlu0 %72
  %v74 = vsel %vm43, %v70, 0.0
  %75 = vadd.xlane.f32.xlu0 %v74
  %v76 = vpop.xlane.xlu0 %75
  %v77 = vrcp.pop 32.0
  %v78 = vmul.f32 32.0, %v77
  %v79 = vsub.f32 1.0, %v78
  %v80 = vmul.f32 %v77, %v79
  %v81 = vadd.f32 %v77, %v80
  %vm82 = vweird.f32 %v77
  %v83 = vsel %vm82, %v77, %v81
  %v84 = vmul.f32 %v73, %v83
  %v85 = vmul.f32 %v76, %v83
  %v86 = vsub.f32 %v69, %v84
  %v87 = vsub.f32 %v70, %v85
  %v88 = vmul.f32 %v86, %v86
  %v89 = vmul.f32 %v87, %v87
  %v90 = vsel %vm43, %v88, 0.0
  %91 = vadd.xlane.f32.xlu0 %v90
  %v92 = vpop.xlane.xlu0 %91
  %v93 = vsel %vm43, %v89, 0.0
  %94 = vadd.xlane.f32.xlu0 %v93
  %v95 = vpop.xlane.xlu0 %94
  %v96 = vmul.f32 %v92, %v83
  %v97 = vmul.f32 %v95, %v83
  %v98 = vadd.f32 %v96, 1e-05
  %v99 = vadd.f32 %v97, 1e-05
  %v100 = vrsqrt.pop %v98
  %v101 = vmul.f32 %v100, %v98
  %v102 = vmul.f32 %v101, %v100
  %v103 = vmul.f32 0.5, %v102
  %v104 = vsub.f32 1.5, %v103
  %v105 = vmul.f32 %v100, %v104
  %vm106 = vweird.f32 %v98
  %vm107 = vweird.f32 %v100
  %vm108 = vmor %vm106, %vm107
  %v109 = vsel %vm108, %v100, %v105
  %v110 = vrsqrt.pop %v99
  %v111 = vmul.f32 %v110, %v99
  %v112 = vmul.f32 %v111, %v110
  %v113 = vmul.f32 0.5, %v112
  %v114 = vsub.f32 1.5, %v113
  %v115 = vmul.f32 %v110, %v114
  %vm116 = vweird.f32 %v99
  %vm117 = vweird.f32 %v110
  %vm118 = vmor %vm116, %vm117
  %v119 = vsel %vm118, %v110, %v115
  %v120 = vmul.f32 %v86, %v109
  %v121 = vmul.f32 %v87, %v119
  %v122 = vld [vmem:[%s4] sm:$0x1]
  %v124 = vperm.slane %v122, 0
  %v126 = vmul.f32 %v120, %v124
  %v127 = vmul.f32 %v121, %v124
  %v128 = vld [vmem:[%s5] sm:$0x1]
  %v130 = vperm.slane %v128, 0
  %v132 = vadd.f32 %v126, %v130
  %v133 = vadd.f32 %v127, %v130
  %134 = vst.msk [vmem:[%s6] sm:$0xff] %vm43, %v132
  %135 = vst.msk [vmem:[%s6 + $0x8] sm:$0xff] %vm43, %v133
  // Predicated region
  $region26: #{_lambda_.38} parent=0 // pred_check
    _
  $region27: #{_lambda_.38} parent=0 // pred_check_branch
    %137 = sbr.rel (0) target = $region29
  $region28: #{_lambda_.38} parent=0 // pred_region
    _
  $region29: #{_lambda_.38} parent=0 // pred_fallthru
    _
  // Predicated region
  $region30: #{_lambda_.38} parent=0 // pred_check
    _
  $region31: #{_lambda_.38} parent=0 // pred_check_branch
    %139 = sbr.rel (0) target = $region33
  $region32: #{_lambda_.38} parent=0 // pred_region
    _
  $region33: #{_lambda_.38} parent=0 // pred_fallthru
    _

// kernel: _lambda_.28
$region0: #{_lambda_.28}
  #allocation0 [shape = 'u32[]', space=smem, size = 0x4, offset = 0x4, fixed_abs, tag = 'smem constant byte address 0x4 - core index']
  #allocation1 [shape = 'u32[72,128]{1,0:T(1,128)}', space=vmem, size = 0x9000, scoped, tag = 'internal scratch']
  %s0 = inlined_call_operand.vmem [shape: f32[2,8,96], index: 0, kind: input, shape index: {}]
  %s1 = inlined_call_operand.vmem [shape: f32[2,1,8], index: 1, kind: input, shape index: {}]
  %s2 = inlined_call_operand.vmem [shape: f32[2,8,32], index: 2, kind: output, shape index: {}]
  %s3 = sld [smem:[#allocation0]]
  $region41: #{_lambda_.28} parent=0
    _
  %s5 = ssub.s32 1, %s3
  %s6 = scalar_select 0, %s5, %s3
  loop: start=0, step=1, limit=4
  $region2: #{_lambda_.28} parent=0 // loop_pre_header
    _
  $region3: #{_lambda_.28} parent=0 // loop_header
    %s8 = sphi 0, %s12
    %p9 = scmp.ge.s32.totalorder %s8, 4
    %s18 = sphi 0, %s20
    %s21 = sphi 0, %s18
    %s22 = sphi 0, %s21
    %s38 = sphi 0, %s22
    %s44 = sphi 0, %s46
    %s47 = sphi 0, %s44
    %s48 = sphi 0, %s47
    %s64 = sphi 0, %s48
    %s70 = sphi 0, %s72
    %s73 = sphi 0, %s70
    %s74 = sphi 0, %s73
    %s90 = sphi 0, %s74
  $region4: #{_lambda_.28} parent=0 // loop_header_branch
    %11 = sbr.rel (%p9) target = $region8
  $region5: #{_lambda_.28} parent=0 // loop_body
    %s13 = ssub.s32 %s8, 1
    %s14 = ssub.s32 %s8, 2
    %s15 = sadd.s32 %s8, 1
    %s16 = ssub.s32 %s8, %s15
    %p17 = scmp.eq.s32.totalorder %s16, 0
    %s19 = sadd.s32 %s18, 1
    %s20 = scalar_select %p17, %s18, %s19
    %p23 = pneg %p17
    %p24 = scmp.eq.s32.totalorder %s8, 1
    %p25 = por %p23, %p24
    %p26 = scmp.ne.s32.totalorder %s18, %s21
    %p27 = scmp.eq.s32.totalorder %s8, 0
    %p28 = por %p26, %p27
    %p29 = scmp.ne.s32.totalorder %s18, %s21
    %p30 = scmp.eq.s32.totalorder %s13, 1
    %p31 = por %p29, %p30
    %p32 = scmp.ne.s32.totalorder %s21, %s22
    %p33 = scmp.eq.s32.totalorder %s13, 0
    %p34 = por %p32, %p33
    %p35 = scmp.ne.s32.totalorder %s21, %s22
    %p36 = scmp.eq.s32.totalorder %s14, 1
    %p37 = por %p35, %p36
    %p39 = scmp.ne.s32.totalorder %s22, %s38
    %p40 = scmp.eq.s32.totalorder %s14, 0
    %p41 = por %p39, %p40
    %s42 = ssub.s32 %s8, %s15
    %p43 = scmp.eq.s32.totalorder %s42, 0
    %s45 = sadd.s32 %s44, 1
    %s46 = scalar_select %p43, %s44, %s45
    %p49 = pneg %p43
    %p50 = scmp.eq.s32.totalorder %s8, 1
    %p51 = por %p49, %p50
    %p52 = scmp.ne.s32.totalorder %s44, %s47
    %p53 = scmp.eq.s32.totalorder %s8, 0
    %p54 = por %p52, %p53
    %p55 = scmp.ne.s32.totalorder %s44, %s47
    %p56 = scmp.eq.s32.totalorder %s13, 1
    %p57 = por %p55, %p56
    %p58 = scmp.ne.s32.totalorder %s47, %s48
    %p59 = scmp.eq.s32.totalorder %s13, 0
    %p60 = por %p58, %p59
    %p61 = scmp.ne.s32.totalorder %s47, %s48
    %p62 = scmp.eq.s32.totalorder %s14, 1
    %p63 = por %p61, %p62
    %p65 = scmp.ne.s32.totalorder %s48, %s64
    %p66 = scmp.eq.s32.totalorder %s14, 0
    %p67 = por %p65, %p66
    %s68 = ssub.s32 %s8, %s15
    %p69 = scmp.eq.s32.totalorder %s68, 0
    %s71 = sadd.s32 %s70, 1
    %s72 = scalar_select %p69, %s70, %s71
    %p75 = pneg %p69
    %p76 = scmp.eq.s32.totalorder %s8, 1
    %p77 = por %p75, %p76
    %p78 = scmp.ne.s32.totalorder %s70, %s73
    %p79 = scmp.eq.s32.totalorder %s8, 0
    %p80 = por %p78, %p79
    %p81 = scmp.ne.s32.totalorder %s70, %s73
    %p82 = scmp.eq.s32.totalorder %s13, 1
    %p83 = por %p81, %p82
    %p84 = scmp.ne.s32.totalorder %s73, %s74
    %p85 = scmp.eq.s32.totalorder %s13, 0
    %p86 = por %p84, %p85
    %p87 = scmp.ne.s32.totalorder %s73, %s74
    %p88 = scmp.eq.s32.totalorder %s14, 1
    %p89 = por %p87, %p88
    %p91 = scmp.ne.s32.totalorder %s74, %s90
    %p92 = scmp.eq.s32.totalorder %s14, 0
    %p93 = por %p91, %p92
    %p94 = scmp.le.s32.totalorder 1, %s8
    %p95 = scmp.lt.s32.totalorder %s8, 3
    %p96 = pnand %p94, %p95
    %p97 = pneg %p96
    // Predicated region
    $region9: #{_lambda_.28} parent=5 // pred_check
      _
    $region10: #{_lambda_.28} parent=5 // pred_check_branch
      %99 = sbr.rel (%p96) target = $region12
    $region11: #{_lambda_.28} parent=5 // pred_region
      %s100 = ssub.s32 %s8, 1
    $region12: #{_lambda_.28} parent=5 // pred_fallthru
      _
    %p101 = scmp.lt.s32.totalorder %s8, 2
    // Predicated region
    $region13: #{_lambda_.28} parent=5 // pred_check
      %p102 = pneg %p101
    $region14: #{_lambda_.28} parent=5 // pred_check_branch
      %104 = sbr.rel (%p102) target = $region16
    $region15: #{_lambda_.28} parent=5 // pred_region
      // Predicated region
      $region17: #{_lambda_.28} parent=15 // pred_check
        %p105 = pneg %p28
      $region18: #{_lambda_.28} parent=15 // pred_check_branch
        %107 = sbr.rel (%p105) target = $region20
      $region19: #{_lambda_.28} parent=15 // pred_region
        %p108 = scmp.lt.s32.totalorder %s8, 1
        %s109 = scalar_select %p108, %s8, 1
        %s110 = smul.addr %s109, 8
        %s111 = scalar_lea.vmem %s0, %s110
      $region20: #{_lambda_.28} parent=15 // pred_fallthru
        _
      // Predicated region
      $region21: #{_lambda_.28} parent=15 // pred_check
        %p112 = pneg %p54
      $region22: #{_lambda_.28} parent=15 // pred_check_branch
        %114 = sbr.rel (%p112) target = $region24
      $region23: #{_lambda_.28} parent=15 // pred_region
        %p115 = scmp.lt.s32.totalorder %s8, 1
        %s116 = scalar_select %p115, %s8, 1
        %s117 = scalar_lea.vmem %s1, %s116
      $region24: #{_lambda_.28} parent=15 // pred_fallthru
        _
    $region16: #{_lambda_.28} parent=5 // pred_fallthru
      _
    %p118 = scmp.le.s32.totalorder 1, %s8
    %p119 = scmp.lt.s32.totalorder %s8, 3
    %p120 = pnand %p118, %p119
    %p121 = pneg %p120
    // Predicated region
    $region25: #{_lambda_.28} parent=5 // pred_check
      _
    $region26: #{_lambda_.28} parent=5 // pred_check_branch
      %123 = sbr.rel (%p120) target = $region28
    $region27: #{_lambda_.28} parent=5 // pred_region
      %s124 = ssub.s32 %s8, 1
      %p125 = scmp.lt.s32.totalorder %s13, 1
      %s126 = scalar_select %p125, %s13, 1
      %s127 = smul.addr %s126, 8
      %s128 = scalar_lea.vmem %s0, %s127
      %p129 = pneg %p34
      %p130 = pneg %p31
      %p131 = scmp.lt.s32.totalorder %s13, 1
      %s132 = scalar_select %p131, %s13, 1
      %s133 = scalar_lea.vmem %s1, %s132
      %p134 = pneg %p60
      %p135 = pneg %p57
      %p136 = pneg %p86
      %p137 = pneg %p83
      %p138 = scmp.lt.s32.totalorder %s13, 1
      %s139 = scalar_select %p138, %s13, 1
      %s140 = smul.addr %s139, 8
      %s141 = scalar_lea.vmem %s2, %s140
      %p142 = scmp.lt.s32.totalorder %s13, 1
      %s143 = scalar_select %p142, %s13, 1
      %s144 = smul.addr %s143, 8
      %s145 = scalar_lea.vmem %s0, %s144
      %p146 = scmp.lt.s32.totalorder %s13, 1
      %s147 = scalar_select %p146, %s13, 1
      %s148 = scalar_lea.vmem %s1, %s147
      %p149 = scmp.lt.s32.totalorder %s13, 1
      %s150 = scalar_select %p149, %s13, 1
      %s151 = smul.addr %s150, 8
      %s152 = scalar_lea.vmem %s2, %s151
      %v154 = vld [vmem:[%s145] sm:$0xff]
      %v155 = vld [vmem:[%s148] sm:$0x1]
      %v156 = vpack.c.bf16 %v154, %v154
      %158 = vrot.lane.b32.xlu0 %v156, 96
      %v159 = vpop.permute.xlu0 %158
      %vm160 = vcmask 64512
      %v162 = vsel %vm160, %v156, 0
      %v165 = vsel %vm160, %v159, 0
      %167 = vmatpush.bf16.xpose.msra.mxu0 0
      %168 = vmatpush.bf16.xpose.msra.mxu0 0
      %169 = vmatpush.bf16.xpose.msra.mxu0 0
      %170 = vmatpush.bf16.xpose.msra.mxu0 0
      %171 = vmatpush.bf16.xpose.msra.mxu0 0
      %172 = vmatpush.bf16.xpose.msra.mxu0 0
      %173 = vmatpush.bf16.xpose.msra.mxu0 0
      %174 = vmatpush.bf16.xpose.msra.mxu0 %v165
      %175 = vmatmul.bf16.gmra.mxu0 %v162
      %v176 = vpop.f32.mrf.mxu0
      %v177 = vadd.f32 0.0, %v176
      %v178 = vpop.f32.mrf.mxu0
      %179 = vdwg.mxu0
      %v180 = vmul.f32 %v177, 0.35355338
      %v182 = vperm.slane %v155, 0
      %v184 = vadd.f32 %v180, %v182
      %v185 = vsel %vm160, %v184, -inf
      %186 = vmax.xlane.f32.xlu0 %v185
      %v187 = vpop.xlane.xlu0 %186
      %v188 = vsub.f32 %v184, %v187
      %v189 = vmul.f32 %v188, 1.442695
      %v190 = vpow.pop %v189
      %v191 = vsel %vm160, %v190, 0.0
      %192 = vadd.xlane.f32.xlu0 %v191
      %v193 = vpop.xlane.xlu0 %192
      %v194 = vrcp.pop %v193
      %v195 = vmul.f32 %v190, %v194
      %v196 = vpack.c.bf16 %v195, %v195
      %197 = vrot.lane.b32.xlu0 %v156, 64
      %v198 = vpop.permute.xlu0 %197
      %v200 = vsel %vm160, %v196, 0
      %vm202 = vcmask 1043456
      %v204 = vsel %vm202, %v198, 0
      %206 = vmatpush.bf16.msra.mxu0 0
      %207 = vmatpush.bf16.msra.mxu0 0
      %208 = vmatpush.bf16.msra.mxu0 0
      %209 = vmatpush.bf16.msra.mxu0 0
      %210 = vmatpush.bf16.msra.mxu0 0
      %211 = vmatpush.bf16.msra.mxu0 0
      %212 = vmatpush.bf16.msra.mxu0 0
      %213 = vmatpush.bf16.msra.mxu0 %v204
      %214 = vmatmul.bf16.gmra.mxu0 %v200
      %v215 = vpop.f32.mrf.mxu0
      %v216 = vadd.f32 0.0, %v215
      %v217 = vpop.f32.mrf.mxu0
      %218 = vdwg.mxu0
      %219 = vrot.lane.b32.xlu0 %v156, 120
      %v220 = vpop.permute.xlu0 %219
      %221 = vrot.lane.b32.xlu0 %v156, 88
      %v222 = vpop.permute.xlu0 %221
      %v224 = vsel %vm160, %v220, 0
      %v227 = vsel %vm160, %v222, 0
      %229 = vmatpush.bf16.xpose.msra.mxu0 0
      %230 = vmatpush.bf16.xpose.msra.mxu0 0
      %231 = vmatpush.bf16.xpose.msra.mxu0 0
      %232 = vmatpush.bf16.xpose.msra.mxu0 0
      %233 = vmatpush.bf16.xpose.msra.mxu0 0
      %234 = vmatpush.bf16.xpose.msra.mxu0 0
      %235 = vmatpush.bf16.xpose.msra.mxu0 0
      %236 = vmatpush.bf16.xpose.msra.mxu0 %v227
      %237 = vmatmul.bf16.gmra.mxu0 %v224
      %v238 = vpop.f32.mrf.mxu0
      %v239 = vadd.f32 0.0, %v238
      %v240 = vpop.f32.mrf.mxu0
      %241 = vdwg.mxu0
      %v242 = vmul.f32 %v239, 0.35355338
      %v243 = vadd.f32 %v242, %v182
      %v244 = vsel %vm160, %v243, -inf
      %245 = vmax.xlane.f32.xlu0 %v244
      %v246 = vpop.xlane.xlu0 %245
      %v247 = vsub.f32 %v243, %v246
      %v248 = vmul.f32 %v247, 1.442695
      %v249 = vpow.pop %v248
      %v250 = vsel %vm160, %v249, 0.0
      %251 = vadd.xlane.f32.xlu0 %v250
      %v252 = vpop.xlane.xlu0 %251
      %v253 = vrcp.pop %v252
      %v254 = vmul.f32 %v249, %v253
      %v255 = vpack.c.bf16 %v254, %v254
      %256 = vrot.lane.b32.xlu0 %v156, 56
      %v257 = vpop.permute.xlu0 %256
      %v259 = vsel %vm160, %v255, 0
      %v262 = vsel %vm202, %v257, 0
      %264 = vmatpush.bf16.msra.mxu0 0
      %265 = vmatpush.bf16.msra.mxu0 0
      %266 = vmatpush.bf16.msra.mxu0 0
      %267 = vmatpush.bf16.msra.mxu0 0
      %268 = vmatpush.bf16.msra.mxu0 0
      %269 = vmatpush.bf16.msra.mxu0 0
      %270 = vmatpush.bf16.msra.mxu0 0
      %271 = vmatpush.bf16.msra.mxu0 %v262
      %272 = vmatmul.bf16.gmra.mxu0 %v259
      %v273 = vpop.f32.mrf.mxu0
      %v274 = vadd.f32 0.0, %v273
      %v275 = vpop.f32.mrf.mxu0
      %276 = vdwg.mxu0
      %277 = vrot.lane.b32.xlu0 %v156, 112
      %v278 = vpop.permute.xlu0 %277
      %279 = vrot.lane.b32.xlu0 %v156, 80
      %v280 = vpop.permute.xlu0 %279
      %v282 = vsel %vm160, %v278, 0
      %v285 = vsel %vm160, %v280, 0
      %287 = vmatpush.bf16.xpose.msra.mxu0 0
      %288 = vmatpush.bf16.xpose.msra.mxu0 0
      %289 = vmatpush.bf16.xpose.msra.mxu0 0
      %290 = vmatpush.bf16.xpose.msra.mxu0 0
      %291 = vmatpush.bf16.xpose.msra.mxu0 0
      %292 = vmatpush.bf16.xpose.msra.mxu0 0
      %293 = vmatpush.bf16.xpose.msra.mxu0 0
      %294 = vmatpush.bf16.xpose.msra.mxu0 %v285
      %295 = vmatmul.bf16.gmra.mxu0 %v282
      %v296 = vpop.f32.mrf.mxu0
      %v297 = vadd.f32 0.0, %v296
      %v298 = vpop.f32.mrf.mxu0
      %299 = vdwg.mxu0
      %v300 = vmul.f32 %v297, 0.35355338
      %v301 = vadd.f32 %v300, %v182
      %v302 = vsel %vm160, %v301, -inf
      %303 = vmax.xlane.f32.xlu0 %v302
      %v304 = vpop.xlane.xlu0 %303
      %v305 = vsub.f32 %v301, %v304
      %v306 = vmul.f32 %v305, 1.442695
      %v307 = vpow.pop %v306
      %v308 = vsel %vm160, %v307, 0.0
      %309 = vadd.xlane.f32.xlu0 %v308
      %v310 = vpop.xlane.xlu0 %309
      %v311 = vrcp.pop %v310
      %v312 = vmul.f32 %v307, %v311
      %v313 = vpack.c.bf16 %v312, %v312
      %314 = vrot.lane.b32.xlu0 %v156, 48
      %v315 = vpop.permute.xlu0 %314
      %v317 = vsel %vm160, %v313, 0
      %v320 = vsel %vm202, %v315, 0
      %322 = vmatpush.bf16.msra.mxu0 0
      %323 = vmatpush.bf16.msra.mxu0 0
      %324 = vmatpush.bf16.msra.mxu0 0
      %325 = vmatpush.bf16.msra.mxu0 0
      %326 = vmatpush.bf16.msra.mxu0 0
      %327 = vmatpush.bf16.msra.mxu0 0
      %328 = vmatpush.bf16.msra.mxu0 0
      %329 = vmatpush.bf16.msra.mxu0 %v320
      %330 = vmatmul.bf16.gmra.mxu0 %v317
      %v331 = vpop.f32.mrf.mxu0
      %v332 = vadd.f32 0.0, %v331
      %v333 = vpop.f32.mrf.mxu0
      %334 = vdwg.mxu0
      %335 = vrot.lane.b32.xlu0 %v156, 104
      %v336 = vpop.permute.xlu0 %335
      %337 = vrot.lane.b32.xlu0 %v156, 72
      %v338 = vpop.permute.xlu0 %337
      %v340 = vsel %vm160, %v336, 0
      %v343 = vsel %vm160, %v338, 0
      %345 = vmatpush.bf16.xpose.msra.mxu0 0
      %346 = vmatpush.bf16.xpose.msra.mxu0 0
      %347 = vmatpush.bf16.xpose.msra.mxu0 0
      %348 = vmatpush.bf16.xpose.msra.mxu0 0
      %349 = vmatpush.bf16.xpose.msra.mxu0 0
      %350 = vmatpush.bf16.xpose.msra.mxu0 0
      %351 = vmatpush.bf16.xpose.msra.mxu0 0
      %352 = vmatpush.bf16.xpose.msra.mxu0 %v343
      %353 = vmatmul.bf16.gmra.mxu0 %v340
      %v354 = vpop.f32.mrf.mxu0
      %v355 = vadd.f32 0.0, %v354
      %v356 = vpop.f32.mrf.mxu0
      %357 = vdwg.mxu0
      %v358 = vmul.f32 %v355, 0.35355338
      %v359 = vadd.f32 %v358, %v182
      %v360 = vsel %vm160, %v359, -inf
      %361 = vmax.xlane.f32.xlu0 %v360
      %v362 = vpop.xlane.xlu0 %361
      %v363 = vsub.f32 %v359, %v362
      %v364 = vmul.f32 %v363, 1.442695
      %v365 = vpow.pop %v364
      %v366 = vsel %vm160, %v365, 0.0
      %367 = vadd.xlane.f32.xlu0 %v366
      %v368 = vpop.xlane.xlu0 %367
      %v369 = vrcp.pop %v368
      %v370 = vmul.f32 %v365, %v369
      %v371 = vpack.c.bf16 %v370, %v370
      %372 = vrot.lane.b32.xlu0 %v156, 40
      %v373 = vpop.permute.xlu0 %372
      %v375 = vsel %vm160, %v371, 0
      %v378 = vsel %vm202, %v373, 0
      %380 = vmatpush.bf16.msra.mxu0 0
      %381 = vmatpush.bf16.msra.mxu0 0
      %382 = vmatpush.bf16.msra.mxu0 0
      %383 = vmatpush.bf16.msra.mxu0 0
      %384 = vmatpush.bf16.msra.mxu0 0
      %385 = vmatpush.bf16.msra.mxu0 0
      %386 = vmatpush.bf16.msra.mxu0 0
      %387 = vmatpush.bf16.msra.mxu0 %v378
      %388 = vmatmul.bf16.gmra.mxu0 %v375
      %v389 = vpop.f32.mrf.mxu0
      %v390 = vadd.f32 0.0, %v389
      %v391 = vpop.f32.mrf.mxu0
      %392 = vdwg.mxu0
      %394 = vrot.lane.b32.xlu0 %v274, 8
      %v395 = vpop.permute.xlu0 %394
      %398 = vrot.lane.b32.xlu0 %v332, 16
      %v399 = vpop.permute.xlu0 %398
      %402 = vrot.lane.b32.xlu0 %v390, 24
      %v403 = vpop.permute.xlu0 %402
      %v405 = vsel %vm160, %v216, %v395
      %vm406 = vcmask 130048
      %v407 = vsel %vm406, %v405, %v399
      %vm408 = vcmask 195584
      %v409 = vsel %vm408, %v407, %v403
      %vm410 = vcmask 261120
      %411 = vst.msk [vmem:[%s152] sm:$0xff] %vm410, %v409
      %p412 = scmp.lt.s32.totalorder %s13, 1
      %s413 = scalar_select %p412, %s13, 1
      %s414 = smul.addr %s413, 8
      %s415 = scalar_lea.vmem %s2, %s414
      // Predicated region
      $region29: #{_lambda_.28} parent=27 // pred_check
        %p416 = pneg %p83
      $region30: #{_lambda_.28} parent=27 // pred_check_branch
        %418 = sbr.rel (%p416) target = $region32
      $region31: #{_lambda_.28} parent=27 // pred_region
        _
      $region32: #{_lambda_.28} parent=27 // pred_fallthru
        _
    $region28: #{_lambda_.28} parent=5 // pred_fallthru
      _
    %p419 = scmp.le.s32.totalorder 2, %s8
    // Predicated region
    $region33: #{_lambda_.28} parent=5 // pred_check
      %p420 = pneg %p419
    $region34: #{_lambda_.28} parent=5 // pred_check_branch
      %422 = sbr.rel (%p420) target = $region36
    $region35: #{_lambda_.28} parent=5 // pred_region
      %s423 = ssub.s32 %s8, 2
      // Predicated region
      $region37: #{_lambda_.28} parent=35 // pred_check
        %p424 = pneg %p89
      $region38: #{_lambda_.28} parent=35 // pred_check_branch
        %426 = sbr.rel (%p424) target = $region40
      $region39: #{_lambda_.28} parent=35 // pred_region
        %p427 = scmp.lt.s32.totalorder %s14, 1
        %s428 = scalar_select %p427, %s14, 1
        %s429 = smul.addr %s428, 8
        %s430 = scalar_lea.vmem %s2, %s429
      $region40: #{_lambda_.28} parent=35 // pred_fallthru
        _
    $region36: #{_lambda_.28} parent=5 // pred_fallthru
      _
  $region6: #{_lambda_.28} parent=0 // loop_footer
    %s12 = sadd.s32 1, %s8
  $region7: #{_lambda_.28} parent=0 // loop_footer_branch
    %7 = sbr.rel target = $region3
  $region8: #{_lambda_.28} parent=0 // loop_exit
    _

// kernel: _lambda_.36
$region0: #{_lambda_.36}
  #allocation0 [shape = 'u32[]', space=smem, size = 0x4, offset = 0x4, fixed_abs, tag = 'smem constant byte address 0x4 - core index']
  #allocation1 [shape = 'u32[72,128]{1,0:T(1,128)}', space=vmem, size = 0x9000, scoped, tag = 'internal scratch']
  %s0 = inlined_call_operand.vmem [shape: f32[16,32], index: 0, kind: input, shape index: {}]
  %s1 = inlined_call_operand.vmem [shape: bf16[32,128], index: 1, kind: input, shape index: {}]
  %s2 = inlined_call_operand.vmem [shape: f32[1,128], index: 2, kind: input, shape index: {}]
  %s3 = inlined_call_operand.vmem [shape: f32[16,128], index: 3, kind: output, shape index: {}]
  %s4 = sld [smem:[#allocation0]]
  $region22: #{_lambda_.36} parent=0
    _
  %s6 = ssub.s32 1, %s4
  %s7 = scalar_select 0, %s6, %s4
  // Predicated region
  $region2: #{_lambda_.36} parent=0 // pred_check
    _
  $region3: #{_lambda_.36} parent=0 // pred_check_branch
    %9 = sbr.rel (0) target = $region5
  $region4: #{_lambda_.36} parent=0 // pred_region
    _
  $region5: #{_lambda_.36} parent=0 // pred_fallthru
    _
  // Predicated region
  $region6: #{_lambda_.36} parent=0 // pred_check
    _
  $region7: #{_lambda_.36} parent=0 // pred_check_branch
    %11 = sbr.rel (0) target = $region9
  $region8: #{_lambda_.36} parent=0 // pred_region
    _
  $region9: #{_lambda_.36} parent=0 // pred_fallthru
    _
  // Predicated region
  $region10: #{_lambda_.36} parent=0 // pred_check
    _
  $region11: #{_lambda_.36} parent=0 // pred_check_branch
    %13 = sbr.rel (0) target = $region13
  $region12: #{_lambda_.36} parent=0 // pred_region
    _
  $region13: #{_lambda_.36} parent=0 // pred_fallthru
    _
  %v15 = vld [vmem:[%s0] sm:$0xff]
  %v16 = vld [vmem:[%s0 + $0x8] sm:$0xff]
  %v17 = vpack.c.bf16 %v16, %v15
  %v18 = vld [vmem:[%s1] sm:$0xf]
  %v19 = vld [vmem:[%s1 + $0x4] sm:$0xf]
  %v20 = vld [vmem:[%s1 + $0x8] sm:$0xf]
  %v21 = vld [vmem:[%s1 + $0xc] sm:$0xf]
  %v22 = vld [vmem:[%s2] sm:$0x1]
  %v24 = vperm.slane %v22, 0
  %v30 = vunpack.c.l.b16 %v18
  %v31 = vunpack.c.l.b16 %v19
  %v32 = vunpack.c.l.b16 %v20
  %v33 = vunpack.c.l.b16 %v21
  %v34 = vpack.c.b16 %v31, %v30
  %v35 = vpack.c.b16 %v33, %v32
  %vm38 = vcmask 261120
  %v40 = vsel %vm38, %v17, 0
  %42 = vmatpush.bf16.msra.mxu0 0
  %43 = vmatpush.bf16.msra.mxu0 0
  %44 = vmatpush.bf16.msra.mxu0 0
  %45 = vmatpush.bf16.msra.mxu0 0
  %46 = vmatpush.bf16.msra.mxu0 0
  %47 = vmatpush.bf16.msra.mxu0 0
  %48 = vmatpush.bf16.msra.mxu0 %v35
  %49 = vmatpush.bf16.msra.mxu0 %v34
  %50 = vmatmul.bf16.gmra.mxu0 %v40
  %v51 = vpop.f32.mrf.mxu0
  %v52 = vadd.f32 %v24, %v51
  %v53 = vpop.f32.mrf.mxu0
  %v54 = vadd.f32 %v24, %v53
  %55 = vdwg.mxu0
  %56 = vst [vmem:[%s3] sm:$0xff] %v52
  %57 = vst [vmem:[%s3 + $0x8] sm:$0xff] %v54
  // Predicated region
  $region14: #{_lambda_.36} parent=0 // pred_check
    _
  $region15: #{_lambda_.36} parent=0 // pred_check_branch
    %59 = sbr.rel (0) target = $region17
  $region16: #{_lambda_.36} parent=0 // pred_region
    _
  $region17: #{_lambda_.36} parent=0 // pred_fallthru
    _
  // Predicated region
  $region18: #{_lambda_.36} parent=0 // pred_check
    _
  $region19: #{_lambda_.36} parent=0 // pred_check_branch
    %61 = sbr.rel (0) target = $region21
  $region20: #{_lambda_.36} parent=0 // pred_region
    _
  $region21: #{_lambda_.36} parent=0 // pred_fallthru
    _

// kernel: _lambda_.37
$region0: #{_lambda_.37}
  #allocation0 [shape = 'u32[]', space=smem, size = 0x4, offset = 0x4, fixed_abs, tag = 'smem constant byte address 0x4 - core index']
  #allocation1 [shape = 'u32[72,128]{1,0:T(1,128)}', space=vmem, size = 0x9000, scoped, tag = 'internal scratch']
  %s0 = inlined_call_operand.vmem [shape: f32[2,8,96], index: 0, kind: input, shape index: {}]
  %s1 = inlined_call_operand.vmem [shape: f32[2,1,8], index: 1, kind: input, shape index: {}]
  %s2 = inlined_call_operand.vmem [shape: f32[2,8,32], index: 2, kind: output, shape index: {}]
  %s3 = sld [smem:[#allocation0]]
  $region41: #{_lambda_.37} parent=0
    _
  %s5 = ssub.s32 1, %s3
  %s6 = scalar_select 0, %s5, %s3
  loop: start=0, step=1, limit=4
  $region2: #{_lambda_.37} parent=0 // loop_pre_header
    _
  $region3: #{_lambda_.37} parent=0 // loop_header
    %s8 = sphi 0, %s12
    %p9 = scmp.ge.s32.totalorder %s8, 4
    %s18 = sphi 0, %s20
    %s21 = sphi 0, %s18
    %s22 = sphi 0, %s21
    %s38 = sphi 0, %s22
    %s44 = sphi 0, %s46
    %s47 = sphi 0, %s44
    %s48 = sphi 0, %s47
    %s64 = sphi 0, %s48
    %s70 = sphi 0, %s72
    %s73 = sphi 0, %s70
    %s74 = sphi 0, %s73
    %s90 = sphi 0, %s74
  $region4: #{_lambda_.37} parent=0 // loop_header_branch
    %11 = sbr.rel (%p9) target = $region8
  $region5: #{_lambda_.37} parent=0 // loop_body
    %s13 = ssub.s32 %s8, 1
    %s14 = ssub.s32 %s8, 2
    %s15 = sadd.s32 %s8, 1
    %s16 = ssub.s32 %s8, %s15
    %p17 = scmp.eq.s32.totalorder %s16, 0
    %s19 = sadd.s32 %s18, 1
    %s20 = scalar_select %p17, %s18, %s19
    %p23 = pneg %p17
    %p24 = scmp.eq.s32.totalorder %s8, 1
    %p25 = por %p23, %p24
    %p26 = scmp.ne.s32.totalorder %s18, %s21
    %p27 = scmp.eq.s32.totalorder %s8, 0
    %p28 = por %p26, %p27
    %p29 = scmp.ne.s32.totalorder %s18, %s21
    %p30 = scmp.eq.s32.totalorder %s13, 1
    %p31 = por %p29, %p30
    %p32 = scmp.ne.s32.totalorder %s21, %s22
    %p33 = scmp.eq.s32.totalorder %s13, 0
    %p34 = por %p32, %p33
    %p35 = scmp.ne.s32.totalorder %s21, %s22
    %p36 = scmp.eq.s32.totalorder %s14, 1
    %p37 = por %p35, %p36
    %p39 = scmp.ne.s32.totalorder %s22, %s38
    %p40 = scmp.eq.s32.totalorder %s14, 0
    %p41 = por %p39, %p40
    %s42 = ssub.s32 %s8, %s15
    %p43 = scmp.eq.s32.totalorder %s42, 0
    %s45 = sadd.s32 %s44, 1
    %s46 = scalar_select %p43, %s44, %s45
    %p49 = pneg %p43
    %p50 = scmp.eq.s32.totalorder %s8, 1
    %p51 = por %p49, %p50
    %p52 = scmp.ne.s32.totalorder %s44, %s47
    %p53 = scmp.eq.s32.totalorder %s8, 0
    %p54 = por %p52, %p53
    %p55 = scmp.ne.s32.totalorder %s44, %s47
    %p56 = scmp.eq.s32.totalorder %s13, 1
    %p57 = por %p55, %p56
    %p58 = scmp.ne.s32.totalorder %s47, %s48
    %p59 = scmp.eq.s32.totalorder %s13, 0
    %p60 = por %p58, %p59
    %p61 = scmp.ne.s32.totalorder %s47, %s48
    %p62 = scmp.eq.s32.totalorder %s14, 1
    %p63 = por %p61, %p62
    %p65 = scmp.ne.s32.totalorder %s48, %s64
    %p66 = scmp.eq.s32.totalorder %s14, 0
    %p67 = por %p65, %p66
    %s68 = ssub.s32 %s8, %s15
    %p69 = scmp.eq.s32.totalorder %s68, 0
    %s71 = sadd.s32 %s70, 1
    %s72 = scalar_select %p69, %s70, %s71
    %p75 = pneg %p69
    %p76 = scmp.eq.s32.totalorder %s8, 1
    %p77 = por %p75, %p76
    %p78 = scmp.ne.s32.totalorder %s70, %s73
    %p79 = scmp.eq.s32.totalorder %s8, 0
    %p80 = por %p78, %p79
    %p81 = scmp.ne.s32.totalorder %s70, %s73
    %p82 = scmp.eq.s32.totalorder %s13, 1
    %p83 = por %p81, %p82
    %p84 = scmp.ne.s32.totalorder %s73, %s74
    %p85 = scmp.eq.s32.totalorder %s13, 0
    %p86 = por %p84, %p85
    %p87 = scmp.ne.s32.totalorder %s73, %s74
    %p88 = scmp.eq.s32.totalorder %s14, 1
    %p89 = por %p87, %p88
    %p91 = scmp.ne.s32.totalorder %s74, %s90
    %p92 = scmp.eq.s32.totalorder %s14, 0
    %p93 = por %p91, %p92
    %p94 = scmp.le.s32.totalorder 1, %s8
    %p95 = scmp.lt.s32.totalorder %s8, 3
    %p96 = pnand %p94, %p95
    %p97 = pneg %p96
    // Predicated region
    $region9: #{_lambda_.37} parent=5 // pred_check
      _
    $region10: #{_lambda_.37} parent=5 // pred_check_branch
      %99 = sbr.rel (%p96) target = $region12
    $region11: #{_lambda_.37} parent=5 // pred_region
      %s100 = ssub.s32 %s8, 1
    $region12: #{_lambda_.37} parent=5 // pred_fallthru
      _
    %p101 = scmp.lt.s32.totalorder %s8, 2
    // Predicated region
    $region13: #{_lambda_.37} parent=5 // pred_check
      %p102 = pneg %p101
    $region14: #{_lambda_.37} parent=5 // pred_check_branch
      %104 = sbr.rel (%p102) target = $region16
    $region15: #{_lambda_.37} parent=5 // pred_region
      // Predicated region
      $region17: #{_lambda_.37} parent=15 // pred_check
        %p105 = pneg %p28
      $region18: #{_lambda_.37} parent=15 // pred_check_branch
        %107 = sbr.rel (%p105) target = $region20
      $region19: #{_lambda_.37} parent=15 // pred_region
        %p108 = scmp.lt.s32.totalorder %s8, 1
        %s109 = scalar_select %p108, %s8, 1
        %s110 = smul.addr %s109, 8
        %s111 = scalar_lea.vmem %s0, %s110
      $region20: #{_lambda_.37} parent=15 // pred_fallthru
        _
      // Predicated region
      $region21: #{_lambda_.37} parent=15 // pred_check
        %p112 = pneg %p54
      $region22: #{_lambda_.37} parent=15 // pred_check_branch
        %114 = sbr.rel (%p112) target = $region24
      $region23: #{_lambda_.37} parent=15 // pred_region
        %p115 = scmp.lt.s32.totalorder %s8, 1
        %s116 = scalar_select %p115, %s8, 1
        %s117 = scalar_lea.vmem %s1, %s116
      $region24: #{_lambda_.37} parent=15 // pred_fallthru
        _
    $region16: #{_lambda_.37} parent=5 // pred_fallthru
      _
    %p118 = scmp.le.s32.totalorder 1, %s8
    %p119 = scmp.lt.s32.totalorder %s8, 3
    %p120 = pnand %p118, %p119
    %p121 = pneg %p120
    // Predicated region
    $region25: #{_lambda_.37} parent=5 // pred_check
      _
    $region26: #{_lambda_.37} parent=5 // pred_check_branch
      %123 = sbr.rel (%p120) target = $region28
    $region27: #{_lambda_.37} parent=5 // pred_region
      %s124 = ssub.s32 %s8, 1
      %p125 = scmp.lt.s32.totalorder %s13, 1
      %s126 = scalar_select %p125, %s13, 1
      %s127 = smul.addr %s126, 8
      %s128 = scalar_lea.vmem %s0, %s127
      %p129 = pneg %p34
      %p130 = pneg %p31
      %p131 = scmp.lt.s32.totalorder %s13, 1
      %s132 = scalar_select %p131, %s13, 1
      %s133 = scalar_lea.vmem %s1, %s132
      %p134 = pneg %p60
      %p135 = pneg %p57
      %p136 = pneg %p86
      %p137 = pneg %p83
      %p138 = scmp.lt.s32.totalorder %s13, 1
      %s139 = scalar_select %p138, %s13, 1
      %s140 = smul.addr %s139, 8
      %s141 = scalar_lea.vmem %s2, %s140
      %p142 = scmp.lt.s32.totalorder %s13, 1
      %s143 = scalar_select %p142, %s13, 1
      %s144 = smul.addr %s143, 8
      %s145 = scalar_lea.vmem %s0, %s144
      %p146 = scmp.lt.s32.totalorder %s13, 1
      %s147 = scalar_select %p146, %s13, 1
      %s148 = scalar_lea.vmem %s1, %s147
      %p149 = scmp.lt.s32.totalorder %s13, 1
      %s150 = scalar_select %p149, %s13, 1
      %s151 = smul.addr %s150, 8
      %s152 = scalar_lea.vmem %s2, %s151
      %v154 = vld [vmem:[%s145] sm:$0xff]
      %v155 = vld [vmem:[%s148] sm:$0x1]
      %v156 = vlaneseq
      %v157 = vshrl.u32 %v156, 7
      %v158 = vlaneseq
      %v159 = vand.u32 %v158, 127
      %vm160 = vcmp.gt.s32.totalorder %v159, %v157
      %v161 = vsel %vm160, -1e+30, 0.0
      %v162 = vpack.c.bf16 %v154, %v154
      %164 = vrot.lane.b32.xlu0 %v162, 96
      %v165 = vpop.permute.xlu0 %164
      %vm166 = vcmask 64512
      %v168 = vsel %vm166, %v162, 0
      %v171 = vsel %vm166, %v165, 0
      %173 = vmatpush.bf16.xpose.msra.mxu0 0
      %174 = vmatpush.bf16.xpose.msra.mxu0 0
      %175 = vmatpush.bf16.xpose.msra.mxu0 0
      %176 = vmatpush.bf16.xpose.msra.mxu0 0
      %177 = vmatpush.bf16.xpose.msra.mxu0 0
      %178 = vmatpush.bf16.xpose.msra.mxu0 0
      %179 = vmatpush.bf16.xpose.msra.mxu0 0
      %180 = vmatpush.bf16.xpose.msra.mxu0 %v171
      %181 = vmatmul.bf16.gmra.mxu0 %v168
      %v182 = vpop.f32.mrf.mxu0
      %v183 = vadd.f32 0.0, %v182
      %v184 = vpop.f32.mrf.mxu0
      %185 = vdwg.mxu0
      %v186 = vmul.f32 %v183, 0.35355338
      %v188 = vperm.slane %v155, 0
      %v190 = vadd.f32 %v186, %v188
      %v191 = vadd.f32 %v190, %v161
      %v192 = vsel %vm166, %v191, -inf
      %193 = vmax.xlane.f32.xlu0 %v192
      %v194 = vpop.xlane.xlu0 %193
      %v195 = vsub.f32 %v191, %v194
      %v196 = vmul.f32 %v195, 1.442695
      %v197 = vpow.pop %v196
      %v198 = vsel %vm166, %v197, 0.0
      %199 = vadd.xlane.f32.xlu0 %v198
      %v200 = vpop.xlane.xlu0 %199
      %v201 = vrcp.pop %v200
      %v202 = vmul.f32 %v197, %v201
      %v203 = vpack.c.bf16 %v202, %v202
      %204 = vrot.lane.b32.xlu0 %v162, 64
      %v205 = vpop.permute.xlu0 %204
      %v207 = vsel %vm166, %v203, 0
      %vm209 = vcmask 1043456
      %v211 = vsel %vm209, %v205, 0
      %213 = vmatpush.bf16.msra.mxu0 0
      %214 = vmatpush.bf16.msra.mxu0 0
      %215 = vmatpush.bf16.msra.mxu0 0
      %216 = vmatpush.bf16.msra.mxu0 0
      %217 = vmatpush.bf16.msra.mxu0 0
      %218 = vmatpush.bf16.msra.mxu0 0
      %219 = vmatpush.bf16.msra.mxu0 0
      %220 = vmatpush.bf16.msra.mxu0 %v211
      %221 = vmatmul.bf16.gmra.mxu0 %v207
      %v222 = vpop.f32.mrf.mxu0
      %v223 = vadd.f32 0.0, %v222
      %v224 = vpop.f32.mrf.mxu0
      %225 = vdwg.mxu0
      %226 = vrot.lane.b32.xlu0 %v162, 120
      %v227 = vpop.permute.xlu0 %226
      %228 = vrot.lane.b32.xlu0 %v162, 88
      %v229 = vpop.permute.xlu0 %228
      %v231 = vsel %vm166, %v227, 0
      %v234 = vsel %vm166, %v229, 0
      %236 = vmatpush.bf16.xpose.msra.mxu0 0
      %237 = vmatpush.bf16.xpose.msra.mxu0 0
      %238 = vmatpush.bf16.xpose.msra.mxu0 0
      %239 = vmatpush.bf16.xpose.msra.mxu0 0
      %240 = vmatpush.bf16.xpose.msra.mxu0 0
      %241 = vmatpush.bf16.xpose.msra.mxu0 0
      %242 = vmatpush.bf16.xpose.msra.mxu0 0
      %243 = vmatpush.bf16.xpose.msra.mxu0 %v234
      %244 = vmatmul.bf16.gmra.mxu0 %v231
      %v245 = vpop.f32.mrf.mxu0
      %v246 = vadd.f32 0.0, %v245
      %v247 = vpop.f32.mrf.mxu0
      %248 = vdwg.mxu0
      %v249 = vmul.f32 %v246, 0.35355338
      %v250 = vadd.f32 %v249, %v188
      %v251 = vadd.f32 %v250, %v161
      %v252 = vsel %vm166, %v251, -inf
      %253 = vmax.xlane.f32.xlu0 %v252
      %v254 = vpop.xlane.xlu0 %253
      %v255 = vsub.f32 %v251, %v254
      %v256 = vmul.f32 %v255, 1.442695
      %v257 = vpow.pop %v256
      %v258 = vsel %vm166, %v257, 0.0
      %259 = vadd.xlane.f32.xlu0 %v258
      %v260 = vpop.xlane.xlu0 %259
      %v261 = vrcp.pop %v260
      %v262 = vmul.f32 %v257, %v261
      %v263 = vpack.c.bf16 %v262, %v262
      %264 = vrot.lane.b32.xlu0 %v162, 56
      %v265 = vpop.permute.xlu0 %264
      %v267 = vsel %vm166, %v263, 0
      %v270 = vsel %vm209, %v265, 0
      %272 = vmatpush.bf16.msra.mxu0 0
      %273 = vmatpush.bf16.msra.mxu0 0
      %274 = vmatpush.bf16.msra.mxu0 0
      %275 = vmatpush.bf16.msra.mxu0 0
      %276 = vmatpush.bf16.msra.mxu0 0
      %277 = vmatpush.bf16.msra.mxu0 0
      %278 = vmatpush.bf16.msra.mxu0 0
      %279 = vmatpush.bf16.msra.mxu0 %v270
      %280 = vmatmul.bf16.gmra.mxu0 %v267
      %v281 = vpop.f32.mrf.mxu0
      %v282 = vadd.f32 0.0, %v281
      %v283 = vpop.f32.mrf.mxu0
      %284 = vdwg.mxu0
      %285 = vrot.lane.b32.xlu0 %v162, 112
      %v286 = vpop.permute.xlu0 %285
      %287 = vrot.lane.b32.xlu0 %v162, 80
      %v288 = vpop.permute.xlu0 %287
      %v290 = vsel %vm166, %v286, 0
      %v293 = vsel %vm166, %v288, 0
      %295 = vmatpush.bf16.xpose.msra.mxu0 0
      %296 = vmatpush.bf16.xpose.msra.mxu0 0
      %297 = vmatpush.bf16.xpose.msra.mxu0 0
      %298 = vmatpush.bf16.xpose.msra.mxu0 0
      %299 = vmatpush.bf16.xpose.msra.mxu0 0
      %300 = vmatpush.bf16.xpose.msra.mxu0 0
      %301 = vmatpush.bf16.xpose.msra.mxu0 0
      %302 = vmatpush.bf16.xpose.msra.mxu0 %v293
      %303 = vmatmul.bf16.gmra.mxu0 %v290
      %v304 = vpop.f32.mrf.mxu0
      %v305 = vadd.f32 0.0, %v304
      %v306 = vpop.f32.mrf.mxu0
      %307 = vdwg.mxu0
      %v308 = vmul.f32 %v305, 0.35355338
      %v309 = vadd.f32 %v308, %v188
      %v310 = vadd.f32 %v309, %v161
      %v311 = vsel %vm166, %v310, -inf
      %312 = vmax.xlane.f32.xlu0 %v311
      %v313 = vpop.xlane.xlu0 %312
      %v314 = vsub.f32 %v310, %v313
      %v315 = vmul.f32 %v314, 1.442695
      %v316 = vpow.pop %v315
      %v317 = vsel %vm166, %v316, 0.0
      %318 = vadd.xlane.f32.xlu0 %v317
      %v319 = vpop.xlane.xlu0 %318
      %v320 = vrcp.pop %v319
      %v321 = vmul.f32 %v316, %v320
      %v322 = vpack.c.bf16 %v321, %v321
      %323 = vrot.lane.b32.xlu0 %v162, 48
      %v324 = vpop.permute.xlu0 %323
      %v326 = vsel %vm166, %v322, 0
      %v329 = vsel %vm209, %v324, 0
      %331 = vmatpush.bf16.msra.mxu0 0
      %332 = vmatpush.bf16.msra.mxu0 0
      %333 = vmatpush.bf16.msra.mxu0 0
      %334 = vmatpush.bf16.msra.mxu0 0
      %335 = vmatpush.bf16.msra.mxu0 0
      %336 = vmatpush.bf16.msra.mxu0 0
      %337 = vmatpush.bf16.msra.mxu0 0
      %338 = vmatpush.bf16.msra.mxu0 %v329
      %339 = vmatmul.bf16.gmra.mxu0 %v326
      %v340 = vpop.f32.mrf.mxu0
      %v341 = vadd.f32 0.0, %v340
      %v342 = vpop.f32.mrf.mxu0
      %343 = vdwg.mxu0
      %344 = vrot.lane.b32.xlu0 %v162, 104
      %v345 = vpop.permute.xlu0 %344
      %346 = vrot.lane.b32.xlu0 %v162, 72
      %v347 = vpop.permute.xlu0 %346
      %v349 = vsel %vm166, %v345, 0
      %v352 = vsel %vm166, %v347, 0
      %354 = vmatpush.bf16.xpose.msra.mxu0 0
      %355 = vmatpush.bf16.xpose.msra.mxu0 0
      %356 = vmatpush.bf16.xpose.msra.mxu0 0
      %357 = vmatpush.bf16.xpose.msra.mxu0 0
      %358 = vmatpush.bf16.xpose.msra.mxu0 0
      %359 = vmatpush.bf16.xpose.msra.mxu0 0
      %360 = vmatpush.bf16.xpose.msra.mxu0 0
      %361 = vmatpush.bf16.xpose.msra.mxu0 %v352
      %362 = vmatmul.bf16.gmra.mxu0 %v349
      %v363 = vpop.f32.mrf.mxu0
      %v364 = vadd.f32 0.0, %v363
      %v365 = vpop.f32.mrf.mxu0
      %366 = vdwg.mxu0
      %v367 = vmul.f32 %v364, 0.35355338
      %v368 = vadd.f32 %v367, %v188
      %v369 = vadd.f32 %v368, %v161
      %v370 = vsel %vm166, %v369, -inf
      %371 = vmax.xlane.f32.xlu0 %v370
      %v372 = vpop.xlane.xlu0 %371
      %v373 = vsub.f32 %v369, %v372
      %v374 = vmul.f32 %v373, 1.442695
      %v375 = vpow.pop %v374
      %v376 = vsel %vm166, %v375, 0.0
      %377 = vadd.xlane.f32.xlu0 %v376
      %v378 = vpop.xlane.xlu0 %377
      %v379 = vrcp.pop %v378
      %v380 = vmul.f32 %v375, %v379
      %v381 = vpack.c.bf16 %v380, %v380
      %382 = vrot.lane.b32.xlu0 %v162, 40
      %v383 = vpop.permute.xlu0 %382
      %v385 = vsel %vm166, %v381, 0
      %v388 = vsel %vm209, %v383, 0
      %390 = vmatpush.bf16.msra.mxu0 0
      %391 = vmatpush.bf16.msra.mxu0 0
      %392 = vmatpush.bf16.msra.mxu0 0
      %393 = vmatpush.bf16.msra.mxu0 0
      %394 = vmatpush.bf16.msra.mxu0 0
      %395 = vmatpush.bf16.msra.mxu0 0
      %396 = vmatpush.bf16.msra.mxu0 0
      %397 = vmatpush.bf16.msra.mxu0 %v388
      %398 = vmatmul.bf16.gmra.mxu0 %v385
      %v399 = vpop.f32.mrf.mxu0
      %v400 = vadd.f32 0.0, %v399
      %v401 = vpop.f32.mrf.mxu0
      %402 = vdwg.mxu0
      %404 = vrot.lane.b32.xlu0 %v282, 8
      %v405 = vpop.permute.xlu0 %404
      %408 = vrot.lane.b32.xlu0 %v341, 16
      %v409 = vpop.permute.xlu0 %408
      %412 = vrot.lane.b32.xlu0 %v400, 24
      %v413 = vpop.permute.xlu0 %412
      %v415 = vsel %vm166, %v223, %v405
      %vm416 = vcmask 130048
      %v417 = vsel %vm416, %v415, %v409
      %vm418 = vcmask 195584
      %v419 = vsel %vm418, %v417, %v413
      %vm420 = vcmask 261120
      %421 = vst.msk [vmem:[%s152] sm:$0xff] %vm420, %v419
      %p422 = scmp.lt.s32.totalorder %s13, 1
      %s423 = scalar_select %p422, %s13, 1
      %s424 = smul.addr %s423, 8
      %s425 = scalar_lea.vmem %s2, %s424
      // Predicated region
      $region29: #{_lambda_.37} parent=27 // pred_check
        %p426 = pneg %p83
      $region30: #{_lambda_.37} parent=27 // pred_check_branch
        %428 = sbr.rel (%p426) target = $region32
      $region31: #{_lambda_.37} parent=27 // pred_region
        _
      $region32: #{_lambda_.37} parent=27 // pred_fallthru
        _
    $region28: #{_lambda_.37} parent=5 // pred_fallthru
      _
    %p429 = scmp.le.s32.totalorder 2, %s8
    // Predicated region
    $region33: #{_lambda_.37} parent=5 // pred_check
      %p430 = pneg %p429
    $region34: #{_lambda_.37} parent=5 // pred_check_branch
      %432 = sbr.rel (%p430) target = $region36
    $region35: #{_lambda_.37} parent=5 // pred_region
      %s433 = ssub.s32 %s8, 2
      // Predicated region
      $region37: #{_lambda_.37} parent=35 // pred_check
        %p434 = pneg %p89
      $region38: #{_lambda_.37} parent=35 // pred_check_branch
        %436 = sbr.rel (%p434) target = $region40
      $region39: #{_lambda_.37} parent=35 // pred_region
        %p437 = scmp.lt.s32.totalorder %s14, 1
        %s438 = scalar_select %p437, %s14, 1
        %s439 = smul.addr %s438, 8
        %s440 = scalar_lea.vmem %s2, %s439
      $region40: #{_lambda_.37} parent=35 // pred_fallthru
        _
    $region36: #{_lambda_.37} parent=5 // pred_fallthru
      _
  $region6: #{_lambda_.37} parent=0 // loop_footer
    %s12 = sadd.s32 1, %s8
  $region7: #{_lambda_.37} parent=0 // loop_footer_branch
    %7 = sbr.rel target = $region3
  $region8: #{_lambda_.37} parent=0 // loop_exit
    _

// kernel: _lambda_.35
$region0: #{_lambda_.35}
  #allocation0 [shape = 'u32[]', space=smem, size = 0x4, offset = 0x4, fixed_abs, tag = 'smem constant byte address 0x4 - core index']
  #allocation1 [shape = 'u32[72,128]{1,0:T(1,128)}', space=vmem, size = 0x9000, scoped, tag = 'internal scratch']
  %s0 = inlined_call_operand.vmem [shape: f32[16,32], index: 0, kind: input, shape index: {}]
  %s1 = inlined_call_operand.vmem [shape: f32[1,32], index: 1, kind: input, shape index: {}]
  %s2 = inlined_call_operand.vmem [shape: f32[1,32], index: 2, kind: input, shape index: {}]
  %s3 = inlined_call_operand.vmem [shape: f32[16,32], index: 3, kind: output, shape index: {}]
  %s4 = sld [smem:[#allocation0]]
  $region22: #{_lambda_.35} parent=0
    _
  %s6 = ssub.s32 1, %s4
  %s7 = scalar_select 0, %s6, %s4
  // Predicated region
  $region2: #{_lambda_.35} parent=0 // pred_check
    _
  $region3: #{_lambda_.35} parent=0 // pred_check_branch
    %9 = sbr.rel (0) target = $region5
  $region4: #{_lambda_.35} parent=0 // pred_region
    _
  $region5: #{_lambda_.35} parent=0 // pred_fallthru
    _
  // Predicated region
  $region6: #{_lambda_.35} parent=0 // pred_check
    _
  $region7: #{_lambda_.35} parent=0 // pred_check_branch
    %11 = sbr.rel (0) target = $region9
  $region8: #{_lambda_.35} parent=0 // pred_region
    _
  $region9: #{_lambda_.35} parent=0 // pred_fallthru
    _
  // Predicated region
  $region10: #{_lambda_.35} parent=0 // pred_check
    _
  $region11: #{_lambda_.35} parent=0 // pred_check_branch
    %13 = sbr.rel (0) target = $region13
  $region12: #{_lambda_.35} parent=0 // pred_region
    _
  $region13: #{_lambda_.35} parent=0 // pred_fallthru
    _
  %v14 = vld [vmem:[%s0] sm:$0xff]
  %v15 = vld [vmem:[%s0 + $0x8] sm:$0xff]
  %vm16 = vcmask 261120
  %v17 = vsel %vm16, %v14, 0.0
  %18 = vadd.xlane.f32.xlu0 %v17
  %v19 = vpop.xlane.xlu0 %18
  %v20 = vsel %vm16, %v15, 0.0
  %21 = vadd.xlane.f32.xlu0 %v20
  %v22 = vpop.xlane.xlu0 %21
  %v23 = vrcp.pop 32.0
  %v24 = vmul.f32 32.0, %v23
  %v25 = vsub.f32 1.0, %v24
  %v26 = vmul.f32 %v23, %v25
  %v27 = vadd.f32 %v23, %v26
  %vm28 = vweird.f32 %v23
  %v29 = vsel %vm28, %v23, %v27
  %v30 = vmul.f32 %v19, %v29
  %v31 = vmul.f32 %v22, %v29
  %v32 = vsub.f32 %v14, %v30
  %v33 = vsub.f32 %v15, %v31
  %v34 = vmul.f32 %v32, %v32
  %v35 = vmul.f32 %v33, %v33
  %v36 = vsel %vm16, %v34, 0.0
  %37 = vadd.xlane.f32.xlu0 %v36
  %v38 = vpop.xlane.xlu0 %37
  %v39 = vsel %vm16, %v35, 0.0
  %40 = vadd.xlane.f32.xlu0 %v39
  %v41 = vpop.xlane.xlu0 %40
  %v42 = vmul.f32 %v38, %v29
  %v43 = vmul.f32 %v41, %v29
  %v44 = vadd.f32 %v42, 1e-05
  %v45 = vadd.f32 %v43, 1e-05
  %v46 = vrsqrt.pop %v44
  %v47 = vmul.f32 %v46, %v44
  %v48 = vmul.f32 %v47, %v46
  %v49 = vmul.f32 0.5, %v48
  %v50 = vsub.f32 1.5, %v49
  %v51 = vmul.f32 %v46, %v50
  %vm52 = vweird.f32 %v44
  %vm53 = vweird.f32 %v46
  %vm54 = vmor %vm52, %vm53
  %v55 = vsel %vm54, %v46, %v51
  %v56 = vrsqrt.pop %v45
  %v57 = vmul.f32 %v56, %v45
  %v58 = vmul.f32 %v57, %v56
  %v59 = vmul.f32 0.5, %v58
  %v60 = vsub.f32 1.5, %v59
  %v61 = vmul.f32 %v56, %v60
  %vm62 = vweird.f32 %v45
  %vm63 = vweird.f32 %v56
  %vm64 = vmor %vm62, %vm63
  %v65 = vsel %vm64, %v56, %v61
  %v66 = vmul.f32 %v32, %v55
  %v67 = vmul.f32 %v33, %v65
  %v68 = vld [vmem:[%s1] sm:$0x1]
  %v70 = vperm.slane %v68, 0
  %v72 = vmul.f32 %v66, %v70
  %v73 = vmul.f32 %v67, %v70
  %v74 = vld [vmem:[%s2] sm:$0x1]
  %v76 = vperm.slane %v74, 0
  %v78 = vadd.f32 %v72, %v76
  %v79 = vadd.f32 %v73, %v76
  %80 = vst.msk [vmem:[%s3] sm:$0xff] %vm16, %v78
  %81 = vst.msk [vmem:[%s3 + $0x8] sm:$0xff] %vm16, %v79
  // Predicated region
  $region14: #{_lambda_.35} parent=0 // pred_check
    _
  $region15: #{_lambda_.35} parent=0 // pred_check_branch
    %83 = sbr.rel (0) target = $region17
  $region16: #{_lambda_.35} parent=0 // pred_region
    _
  $region17: #{_lambda_.35} parent=0 // pred_fallthru
    _
  // Predicated region
  $region18: #{_lambda_.35} parent=0 // pred_check
    _
  $region19: #{_lambda_.35} parent=0 // pred_check_branch
    %85 = sbr.rel (0) target = $region21
  $region20: #{_lambda_.35} parent=0 // pred_region
    _
  $region21: #{_lambda_.35} parent=0 // pred_fallthru
    _

// kernel: _lambda_.41
$region0: #{_lambda_.41}
  #allocation0 [shape = 'u32[]', space=smem, size = 0x4, offset = 0x4, fixed_abs, tag = 'smem constant byte address 0x4 - core index']
  #allocation1 [shape = 'u32[72,128]{1,0:T(1,128)}', space=vmem, size = 0x9000, scoped, tag = 'internal scratch']
  %s0 = inlined_call_operand.vmem [shape: f32[2,8,32], index: 0, kind: input, shape index: {}]
  %s1 = inlined_call_operand.vmem [shape: f32[2,8,64], index: 1, kind: input, shape index: {}]
  %s2 = inlined_call_operand.vmem [shape: f32[2,1,8], index: 2, kind: input, shape index: {}]
  %s3 = inlined_call_operand.vmem [shape: f32[2,8,32], index: 3, kind: output, shape index: {}]
  %s4 = sld [smem:[#allocation0]]
  $region45: #{_lambda_.41} parent=0
    _
  %s6 = ssub.s32 1, %s4
  %s7 = scalar_select 0, %s6, %s4
  loop: start=0, step=1, limit=4
  $region2: #{_lambda_.41} parent=0 // loop_pre_header
    _
  $region3: #{_lambda_.41} parent=0 // loop_header
    %s9 = sphi 0, %s13
    %p10 = scmp.ge.s32.totalorder %s9, 4
    %s19 = sphi 0, %s21
    %s22 = sphi 0, %s19
    %s23 = sphi 0, %s22
    %s39 = sphi 0, %s23
    %s45 = sphi 0, %s47
    %s48 = sphi 0, %s45
    %s49 = sphi 0, %s48
    %s65 = sphi 0, %s49
    %s71 = sphi 0, %s73
    %s74 = sphi 0, %s71
    %s75 = sphi 0, %s74
    %s91 = sphi 0, %s75
    %s97 = sphi 0, %s99
    %s100 = sphi 0, %s97
    %s101 = sphi 0, %s100
    %s117 = sphi 0, %s101
  $region4: #{_lambda_.41} parent=0 // loop_header_branch
    %12 = sbr.rel (%p10) target = $region8
  $region5: #{_lambda_.41} parent=0 // loop_body
    %s14 = ssub.s32 %s9, 1
    %s15 = ssub.s32 %s9, 2
    %s16 = sadd.s32 %s9, 1
    %s17 = ssub.s32 %s9, %s16
    %p18 = scmp.eq.s32.totalorder %s17, 0
    %s20 = sadd.s32 %s19, 1
    %s21 = scalar_select %p18, %s19, %s20
    %p24 = pneg %p18
    %p25 = scmp.eq.s32.totalorder %s9, 1
    %p26 = por %p24, %p25
    %p27 = scmp.ne.s32.totalorder %s19, %s22
    %p28 = scmp.eq.s32.totalorder %s9, 0
    %p29 = por %p27, %p28
    %p30 = scmp.ne.s32.totalorder %s19, %s22
    %p31 = scmp.eq.s32.totalorder %s14, 1
    %p32 = por %p30, %p31
    %p33 = scmp.ne.s32.totalorder %s22, %s23
    %p34 = scmp.eq.s32.totalorder %s14, 0
    %p35 = por %p33, %p34
    %p36 = scmp.ne.s32.totalorder %s22, %s23
    %p37 = scmp.eq.s32.totalorder %s15, 1
    %p38 = por %p36, %p37
    %p40 = scmp.ne.s32.totalorder %s23, %s39
    %p41 = scmp.eq.s32.totalorder %s15, 0
    %p42 = por %p40, %p41
    %s43 = ssub.s32 %s9, %s16
    %p44 = scmp.eq.s32.totalorder %s43, 0
    %s46 = sadd.s32 %s45, 1
    %s47 = scalar_select %p44, %s45, %s46
    %p50 = pneg %p44
    %p51 = scmp.eq.s32.totalorder %s9, 1
    %p52 = por %p50, %p51
    %p53 = scmp.ne.s32.totalorder %s45, %s48
    %p54 = scmp.eq.s32.totalorder %s9, 0
    %p55 = por %p53, %p54
    %p56 = scmp.ne.s32.totalorder %s45, %s48
    %p57 = scmp.eq.s32.totalorder %s14, 1
    %p58 = por %p56, %p57
    %p59 = scmp.ne.s32.totalorder %s48, %s49
    %p60 = scmp.eq.s32.totalorder %s14, 0
    %p61 = por %p59, %p60
    %p62 = scmp.ne.s32.totalorder %s48, %s49
    %p63 = scmp.eq.s32.totalorder %s15, 1
    %p64 = por %p62, %p63
    %p66 = scmp.ne.s32.totalorder %s49, %s65
    %p67 = scmp.eq.s32.totalorder %s15, 0
    %p68 = por %p66, %p67
    %s69 = ssub.s32 %s9, %s16
    %p70 = scmp.eq.s32.totalorder %s69, 0
    %s72 = sadd.s32 %s71, 1
    %s73 = scalar_select %p70, %s71, %s72
    %p76 = pneg %p70
    %p77 = scmp.eq.s32.totalorder %s9, 1
    %p78 = por %p76, %p77
    %p79 = scmp.ne.s32.totalorder %s71, %s74
    %p80 = scmp.eq.s32.totalorder %s9, 0
    %p81 = por %p79, %p80
    %p82 = scmp.ne.s32.totalorder %s71, %s74
    %p83 = scmp.eq.s32.totalorder %s14, 1
    %p84 = por %p82, %p83
    %p85 = scmp.ne.s32.totalorder %s74, %s75
    %p86 = scmp.eq.s32.totalorder %s14, 0
    %p87 = por %p85, %p86
    %p88 = scmp.ne.s32.totalorder %s74, %s75
    %p89 = scmp.eq.s32.totalorder %s15, 1
    %p90 = por %p88, %p89
    %p92 = scmp.ne.s32.totalorder %s75, %s91
    %p93 = scmp.eq.s32.totalorder %s15, 0
    %p94 = por %p92, %p93
    %s95 = ssub.s32 %s9, %s16
    %p96 = scmp.eq.s32.totalorder %s95, 0
    %s98 = sadd.s32 %s97, 1
    %s99 = scalar_select %p96, %s97, %s98
    %p102 = pneg %p96
    %p103 = scmp.eq.s32.totalorder %s9, 1
    %p104 = por %p102, %p103
    %p105 = scmp.ne.s32.totalorder %s97, %s100
    %p106 = scmp.eq.s32.totalorder %s9, 0
    %p107 = por %p105, %p106
    %p108 = scmp.ne.s32.totalorder %s97, %s100
    %p109 = scmp.eq.s32.totalorder %s14, 1
    %p110 = por %p108, %p109
    %p111 = scmp.ne.s32.totalorder %s100, %s101
    %p112 = scmp.eq.s32.totalorder %s14, 0
    %p113 = por %p111, %p112
    %p114 = scmp.ne.s32.totalorder %s100, %s101
    %p115 = scmp.eq.s32.totalorder %s15, 1
    %p116 = por %p114, %p115
    %p118 = scmp.ne.s32.totalorder %s101, %s117
    %p119 = scmp.eq.s32.totalorder %s15, 0
    %p120 = por %p118, %p119
    %p121 = scmp.le.s32.totalorder 1, %s9
    %p122 = scmp.lt.s32.totalorder %s9, 3
    %p123 = pnand %p121, %p122
    %p124 = pneg %p123
    // Predicated region
    $region9: #{_lambda_.41} parent=5 // pred_check
      _
    $region10: #{_lambda_.41} parent=5 // pred_check_branch
      %126 = sbr.rel (%p123) target = $region12
    $region11: #{_lambda_.41} parent=5 // pred_region
      %s127 = ssub.s32 %s9, 1
    $region12: #{_lambda_.41} parent=5 // pred_fallthru
      _
    %p128 = scmp.lt.s32.totalorder %s9, 2
    // Predicated region
    $region13: #{_lambda_.41} parent=5 // pred_check
      %p129 = pneg %p128
    $region14: #{_lambda_.41} parent=5 // pred_check_branch
      %131 = sbr.rel (%p129) target = $region16
    $region15: #{_lambda_.41} parent=5 // pred_region
      // Predicated region
      $region17: #{_lambda_.41} parent=15 // pred_check
        %p132 = pneg %p29
      $region18: #{_lambda_.41} parent=15 // pred_check_branch
        %134 = sbr.rel (%p132) target = $region20
      $region19: #{_lambda_.41} parent=15 // pred_region
        %p135 = scmp.lt.s32.totalorder %s9, 1
        %s136 = scalar_select %p135, %s9, 1
        %s137 = smul.addr %s136, 8
        %s138 = scalar_lea.vmem %s0, %s137
      $region20: #{_lambda_.41} parent=15 // pred_fallthru
        _
      // Predicated region
      $region21: #{_lambda_.41} parent=15 // pred_check
        %p139 = pneg %p55
      $region22: #{_lambda_.41} parent=15 // pred_check_branch
        %141 = sbr.rel (%p139) target = $region24
      $region23: #{_lambda_.41} parent=15 // pred_region
        %p142 = scmp.lt.s32.totalorder %s9, 1
        %s143 = scalar_select %p142, %s9, 1
        %s144 = smul.addr %s143, 8
        %s145 = scalar_lea.vmem %s1, %s144
      $region24: #{_lambda_.41} parent=15 // pred_fallthru
        _
      // Predicated region
      $region25: #{_lambda_.41} parent=15 // pred_check
        %p146 = pneg %p81
      $region26: #{_lambda_.41} parent=15 // pred_check_branch
        %148 = sbr.rel (%p146) target = $region28
      $region27: #{_lambda_.41} parent=15 // pred_region
        %p149 = scmp.lt.s32.totalorder %s9, 1
        %s150 = scalar_select %p149, %s9, 1
        %s151 = scalar_lea.vmem %s2, %s150
      $region28: #{_lambda_.41} parent=15 // pred_fallthru
        _
    $region16: #{_lambda_.41} parent=5 // pred_fallthru
      _
    %p152 = scmp.le.s32.totalorder 1, %s9
    %p153 = scmp.lt.s32.totalorder %s9, 3
    %p154 = pnand %p152, %p153
    %p155 = pneg %p154
    // Predicated region
    $region29: #{_lambda_.41} parent=5 // pred_check
      _
    $region30: #{_lambda_.41} parent=5 // pred_check_branch
      %157 = sbr.rel (%p154) target = $region32
    $region31: #{_lambda_.41} parent=5 // pred_region
      %s158 = ssub.s32 %s9, 1
      %p159 = scmp.lt.s32.totalorder %s14, 1
      %s160 = scalar_select %p159, %s14, 1
      %s161 = smul.addr %s160, 8
      %s162 = scalar_lea.vmem %s0, %s161
      %p163 = pneg %p35
      %p164 = pneg %p32
      %p165 = scmp.lt.s32.totalorder %s14, 1
      %s166 = scalar_select %p165, %s14, 1
      %s167 = smul.addr %s166, 8
      %s168 = scalar_lea.vmem %s1, %s167
      %p169 = pneg %p61
      %p170 = pneg %p58
      %p171 = scmp.lt.s32.totalorder %s14, 1
      %s172 = scalar_select %p171, %s14, 1
      %s173 = scalar_lea.vmem %s2, %s172
      %p174 = pneg %p87
      %p175 = pneg %p84
      %p176 = pneg %p113
      %p177 = pneg %p110
      %p178 = scmp.lt.s32.totalorder %s14, 1
      %s179 = scalar_select %p178, %s14, 1
      %s180 = smul.addr %s179, 8
      %s181 = scalar_lea.vmem %s3, %s180
      %p182 = scmp.lt.s32.totalorder %s14, 1
      %s183 = scalar_select %p182, %s14, 1
      %s184 = smul.addr %s183, 8
      %s185 = scalar_lea.vmem %s0, %s184
      %p186 = scmp.lt.s32.totalorder %s14, 1
      %s187 = scalar_select %p186, %s14, 1
      %s188 = smul.addr %s187, 8
      %s189 = scalar_lea.vmem %s1, %s188
      %p190 = scmp.lt.s32.totalorder %s14, 1
      %s191 = scalar_select %p190, %s14, 1
      %s192 = scalar_lea.vmem %s2, %s191
      %p193 = scmp.lt.s32.totalorder %s14, 1
      %s194 = scalar_select %p193, %s14, 1
      %s195 = smul.addr %s194, 8
      %s196 = scalar_lea.vmem %s3, %s195
      %v198 = vld [vmem:[%s185] sm:$0xff]
      %v199 = vld [vmem:[%s189] sm:$0xff]
      %v200 = vld [vmem:[%s192] sm:$0x1]
      %v201 = vpack.c.bf16 %v198, %v198
      %v202 = vpack.c.bf16 %v199, %v199
      %vm203 = vcmask 64512
      %v205 = vsel %vm203, %v201, 0
      %v208 = vsel %vm203, %v202, 0
      %210 = vmatpush.bf16.xpose.msra.mxu0 0
      %211 = vmatpush.bf16.xpose.msra.mxu0 0
      %212 = vmatpush.bf16.xpose.msra.mxu0 0
      %213 = vmatpush.bf16.xpose.msra.mxu0 0
      %214 = vmatpush.bf16.xpose.msra.mxu0 0
      %215 = vmatpush.bf16.xpose.msra.mxu0 0
      %216 = vmatpush.bf16.xpose.msra.mxu0 0
      %217 = vmatpush.bf16.xpose.msra.mxu0 %v208
      %218 = vmatmul.bf16.gmra.mxu0 %v205
      %v219 = vpop.f32.mrf.mxu0
      %v220 = vadd.f32 0.0, %v219
      %v221 = vpop.f32.mrf.mxu0
      %222 = vdwg.mxu0
      %v223 = vmul.f32 %v220, 0.35355338
      %v225 = vperm.slane %v200, 0
      %v227 = vadd.f32 %v223, %v225
      %v228 = vsel %vm203, %v227, -inf
      %229 = vmax.xlane.f32.xlu0 %v228
      %v230 = vpop.xlane.xlu0 %229
      %v231 = vsub.f32 %v227, %v230
      %v232 = vmul.f32 %v231, 1.442695
      %v233 = vpow.pop %v232
      %v234 = vsel %vm203, %v233, 0.0
      %235 = vadd.xlane.f32.xlu0 %v234
      %v236 = vpop.xlane.xlu0 %235
      %v237 = vrcp.pop %v236
      %v238 = vmul.f32 %v233, %v237
      %v239 = vpack.c.bf16 %v238, %v238
      %241 = vrot.lane.b32.xlu0 %v202, 96
      %v242 = vpop.permute.xlu0 %241
      %v244 = vsel %vm203, %v239, 0
      %vm246 = vcmask 1043456
      %v248 = vsel %vm246, %v242, 0
      %250 = vmatpush.bf16.msra.mxu0 0
      %251 = vmatpush.bf16.msra.mxu0 0
      %252 = vmatpush.bf16.msra.mxu0 0
      %253 = vmatpush.bf16.msra.mxu0 0
      %254 = vmatpush.bf16.msra.mxu0 0
      %255 = vmatpush.bf16.msra.mxu0 0
      %256 = vmatpush.bf16.msra.mxu0 0
      %257 = vmatpush.bf16.msra.mxu0 %v248
      %258 = vmatmul.bf16.gmra.mxu0 %v244
      %v259 = vpop.f32.mrf.mxu0
      %v260 = vadd.f32 0.0, %v259
      %v261 = vpop.f32.mrf.mxu0
      %262 = vdwg.mxu0
      %264 = vrot.lane.b32.xlu0 %v201, 120
      %v265 = vpop.permute.xlu0 %264
      %266 = vrot.lane.b32.xlu0 %v202, 120
      %v267 = vpop.permute.xlu0 %266
      %v269 = vsel %vm203, %v265, 0
      %v272 = vsel %vm203, %v267, 0
      %274 = vmatpush.bf16.xpose.msra.mxu0 0
      %275 = vmatpush.bf16.xpose.msra.mxu0 0
      %276 = vmatpush.bf16.xpose.msra.mxu0 0
      %277 = vmatpush.bf16.xpose.msra.mxu0 0
      %278 = vmatpush.bf16.xpose.msra.mxu0 0
      %279 = vmatpush.bf16.xpose.msra.mxu0 0
      %280 = vmatpush.bf16.xpose.msra.mxu0 0
      %281 = vmatpush.bf16.xpose.msra.mxu0 %v272
      %282 = vmatmul.bf16.gmra.mxu0 %v269
      %v283 = vpop.f32.mrf.mxu0
      %v284 = vadd.f32 0.0, %v283
      %v285 = vpop.f32.mrf.mxu0
      %286 = vdwg.mxu0
      %v287 = vmul.f32 %v284, 0.35355338
      %v288 = vadd.f32 %v287, %v225
      %v289 = vsel %vm203, %v288, -inf
      %290 = vmax.xlane.f32.xlu0 %v289
      %v291 = vpop.xlane.xlu0 %290
      %v292 = vsub.f32 %v288, %v291
      %v293 = vmul.f32 %v292, 1.442695
      %v294 = vpow.pop %v293
      %v295 = vsel %vm203, %v294, 0.0
      %296 = vadd.xlane.f32.xlu0 %v295
      %v297 = vpop.xlane.xlu0 %296
      %v298 = vrcp.pop %v297
      %v299 = vmul.f32 %v294, %v298
      %v300 = vpack.c.bf16 %v299, %v299
      %301 = vrot.lane.b32.xlu0 %v202, 88
      %v302 = vpop.permute.xlu0 %301
      %v304 = vsel %vm203, %v300, 0
      %v307 = vsel %vm246, %v302, 0
      %309 = vmatpush.bf16.msra.mxu0 0
      %310 = vmatpush.bf16.msra.mxu0 0
      %311 = vmatpush.bf16.msra.mxu0 0
      %312 = vmatpush.bf16.msra.mxu0 0
      %313 = vmatpush.bf16.msra.mxu0 0
      %314 = vmatpush.bf16.msra.mxu0 0
      %315 = vmatpush.bf16.msra.mxu0 0
      %316 = vmatpush.bf16.msra.mxu0 %v307
      %317 = vmatmul.bf16.gmra.mxu0 %v304
      %v318 = vpop.f32.mrf.mxu0
      %v319 = vadd.f32 0.0, %v318
      %v320 = vpop.f32.mrf.mxu0
      %321 = vdwg.mxu0
      %322 = vrot.lane.b32.xlu0 %v201, 112
      %v323 = vpop.permute.xlu0 %322
      %324 = vrot.lane.b32.xlu0 %v202, 112
      %v325 = vpop.permute.xlu0 %324
      %v327 = vsel %vm203, %v323, 0
      %v330 = vsel %vm203, %v325, 0
      %332 = vmatpush.bf16.xpose.msra.mxu0 0
      %333 = vmatpush.bf16.xpose.msra.mxu0 0
      %334 = vmatpush.bf16.xpose.msra.mxu0 0
      %335 = vmatpush.bf16.xpose.msra.mxu0 0
      %336 = vmatpush.bf16.xpose.msra.mxu0 0
      %337 = vmatpush.bf16.xpose.msra.mxu0 0
      %338 = vmatpush.bf16.xpose.msra.mxu0 0
      %339 = vmatpush.bf16.xpose.msra.mxu0 %v330
      %340 = vmatmul.bf16.gmra.mxu0 %v327
      %v341 = vpop.f32.mrf.mxu0
      %v342 = vadd.f32 0.0, %v341
      %v343 = vpop.f32.mrf.mxu0
      %344 = vdwg.mxu0
      %v345 = vmul.f32 %v342, 0.35355338
      %v346 = vadd.f32 %v345, %v225
      %v347 = vsel %vm203, %v346, -inf
      %348 = vmax.xlane.f32.xlu0 %v347
      %v349 = vpop.xlane.xlu0 %348
      %v350 = vsub.f32 %v346, %v349
      %v351 = vmul.f32 %v350, 1.442695
      %v352 = vpow.pop %v351
      %v353 = vsel %vm203, %v352, 0.0
      %354 = vadd.xlane.f32.xlu0 %v353
      %v355 = vpop.xlane.xlu0 %354
      %v356 = vrcp.pop %v355
      %v357 = vmul.f32 %v352, %v356
      %v358 = vpack.c.bf16 %v357, %v357
      %359 = vrot.lane.b32.xlu0 %v202, 80
      %v360 = vpop.permute.xlu0 %359
      %v362 = vsel %vm203, %v358, 0
      %v365 = vsel %vm246, %v360, 0
      %367 = vmatpush.bf16.msra.mxu0 0
      %368 = vmatpush.bf16.msra.mxu0 0
      %369 = vmatpush.bf16.msra.mxu0 0
      %370 = vmatpush.bf16.msra.mxu0 0
      %371 = vmatpush.bf16.msra.mxu0 0
      %372 = vmatpush.bf16.msra.mxu0 0
      %373 = vmatpush.bf16.msra.mxu0 0
      %374 = vmatpush.bf16.msra.mxu0 %v365
      %375 = vmatmul.bf16.gmra.mxu0 %v362
      %v376 = vpop.f32.mrf.mxu0
      %v377 = vadd.f32 0.0, %v376
      %v378 = vpop.f32.mrf.mxu0
      %379 = vdwg.mxu0
      %380 = vrot.lane.b32.xlu0 %v201, 104
      %v381 = vpop.permute.xlu0 %380
      %382 = vrot.lane.b32.xlu0 %v202, 104
      %v383 = vpop.permute.xlu0 %382
      %v385 = vsel %vm203, %v381, 0
      %v388 = vsel %vm203, %v383, 0
      %390 = vmatpush.bf16.xpose.msra.mxu0 0
      %391 = vmatpush.bf16.xpose.msra.mxu0 0
      %392 = vmatpush.bf16.xpose.msra.mxu0 0
      %393 = vmatpush.bf16.xpose.msra.mxu0 0
      %394 = vmatpush.bf16.xpose.msra.mxu0 0
      %395 = vmatpush.bf16.xpose.msra.mxu0 0
      %396 = vmatpush.bf16.xpose.msra.mxu0 0
      %397 = vmatpush.bf16.xpose.msra.mxu0 %v388
      %398 = vmatmul.bf16.gmra.mxu0 %v385
      %v399 = vpop.f32.mrf.mxu0
      %v400 = vadd.f32 0.0, %v399
      %v401 = vpop.f32.mrf.mxu0
      %402 = vdwg.mxu0
      %v403 = vmul.f32 %v400, 0.35355338
      %v404 = vadd.f32 %v403, %v225
      %v405 = vsel %vm203, %v404, -inf
      %406 = vmax.xlane.f32.xlu0 %v405
      %v407 = vpop.xlane.xlu0 %406
      %v408 = vsub.f32 %v404, %v407
      %v409 = vmul.f32 %v408, 1.442695
      %v410 = vpow.pop %v409
      %v411 = vsel %vm203, %v410, 0.0
      %412 = vadd.xlane.f32.xlu0 %v411
      %v413 = vpop.xlane.xlu0 %412
      %v414 = vrcp.pop %v413
      %v415 = vmul.f32 %v410, %v414
      %v416 = vpack.c.bf16 %v415, %v415
      %417 = vrot.lane.b32.xlu0 %v202, 72
      %v418 = vpop.permute.xlu0 %417
      %v420 = vsel %vm203, %v416, 0
      %v423 = vsel %vm246, %v418, 0
      %425 = vmatpush.bf16.msra.mxu0 0
      %426 = vmatpush.bf16.msra.mxu0 0
      %427 = vmatpush.bf16.msra.mxu0 0
      %428 = vmatpush.bf16.msra.mxu0 0
      %429 = vmatpush.bf16.msra.mxu0 0
      %430 = vmatpush.bf16.msra.mxu0 0
      %431 = vmatpush.bf16.msra.mxu0 0
      %432 = vmatpush.bf16.msra.mxu0 %v423
      %433 = vmatmul.bf16.gmra.mxu0 %v420
      %v434 = vpop.f32.mrf.mxu0
      %v435 = vadd.f32 0.0, %v434
      %v436 = vpop.f32.mrf.mxu0
      %437 = vdwg.mxu0
      %439 = vrot.lane.b32.xlu0 %v319, 8
      %v440 = vpop.permute.xlu0 %439
      %443 = vrot.lane.b32.xlu0 %v377, 16
      %v444 = vpop.permute.xlu0 %443
      %447 = vrot.lane.b32.xlu0 %v435, 24
      %v448 = vpop.permute.xlu0 %447
      %v450 = vsel %vm203, %v260, %v440
      %vm451 = vcmask 130048
      %v452 = vsel %vm451, %v450, %v444
      %vm453 = vcmask 195584
      %v454 = vsel %vm453, %v452, %v448
      %vm455 = vcmask 261120
      %456 = vst.msk [vmem:[%s196] sm:$0xff] %vm455, %v454
      %p457 = scmp.lt.s32.totalorder %s14, 1
      %s458 = scalar_select %p457, %s14, 1
      %s459 = smul.addr %s458, 8
      %s460 = scalar_lea.vmem %s3, %s459
      // Predicated region
      $region33: #{_lambda_.41} parent=31 // pred_check
        %p461 = pneg %p110
      $region34: #{_lambda_.41} parent=31 // pred_check_branch
        %463 = sbr.rel (%p461) target = $region36
      $region35: #{_lambda_.41} parent=31 // pred_region
        _
      $region36: #{_lambda_.41} parent=31 // pred_fallthru
        _
    $region32: #{_lambda_.41} parent=5 // pred_fallthru
      _
    %p464 = scmp.le.s32.totalorder 2, %s9
    // Predicated region
    $region37: #{_lambda_.41} parent=5 // pred_check
      %p465 = pneg %p464
    $region38: #{_lambda_.41} parent=5 // pred_check_branch
      %467 = sbr.rel (%p465) target = $region40
    $region39: #{_lambda_.41} parent=5 // pred_region
      %s468 = ssub.s32 %s9, 2
      // Predicated region
      $region41: #{_lambda_.41} parent=39 // pred_check
        %p469 = pneg %p116
      $region42: #{_lambda_.41} parent=39 // pred_check_branch
        %471 = sbr.rel (%p469) target = $region44
      $region43: #{_lambda_.41} parent=39 // pred_region
        %p472 = scmp.lt.s32.totalorder %s15, 1
        %s473 = scalar_select %p472, %s15, 1
        %s474 = smul.addr %s473, 8
        %s475 = scalar_lea.vmem %s3, %s474
      $region44: #{_lambda_.41} parent=39 // pred_fallthru
        _
    $region40: #{_lambda_.41} parent=5 // pred_fallthru
      _
  $region6: #{_lambda_.41} parent=0 // loop_footer
    %s13 = sadd.s32 1, %s9
  $region7: #{_lambda_.41} parent=0 // loop_footer_branch
    %8 = sbr.rel target = $region3
  $region8: #{_lambda_.41} parent=0 // loop_exit
    _

// kernel: _lambda_.51
$region0: #{_lambda_.51}
  #allocation0 [shape = 'u32[]', space=smem, size = 0x4, offset = 0x4, fixed_abs, tag = 'smem constant byte address 0x4 - core index']
  #allocation1 [shape = 'u32[72,128]{1,0:T(1,128)}', space=vmem, size = 0x9000, scoped, tag = 'internal scratch']
  %s0 = inlined_call_operand.vmem [shape: f32[16,32], index: 0, kind: input, shape index: {}, may-alias: {0,5}]
  %s1 = inlined_call_operand.vmem [shape: bf16[32,2048], index: 1, kind: input, shape index: {}]
  %s2 = inlined_call_operand.vmem [shape: f32[1,2048], index: 2, kind: input, shape index: {}]
  %s3 = inlined_call_operand.hbm [shape: bf16[2048,32], index: 3, kind: input, shape index: {}]
  %s4 = inlined_call_operand.vmem [shape: f32[1,32], index: 4, kind: input, shape index: {}]
  %s5 = inlined_call_operand.vmem [shape: f32[16,32], index: 5, kind: input, shape index: {}, may-alias: {0,5}]
  %s6 = inlined_call_operand.vmem [shape: f32[1,32], index: 6, kind: input, shape index: {}]
  %s7 = inlined_call_operand.vmem [shape: f32[1,32], index: 7, kind: input, shape index: {}]
  %s8 = inlined_call_operand.vmem [shape: f32[16,32], index: 8, kind: output, shape index: {}]
  %s9 = sld [smem:[#allocation0]]
  $region46: #{_lambda_.51} parent=0
    _
  %s11 = ssub.s32 1, %s9
  %s12 = scalar_select 0, %s11, %s9
  $region1: #{_lambda_.51} parent=0
    #allocation2 [shape = 'u8[524288]{0}', space=vmem, size = 0x80000, scoped, tag = 'input window, operand 3, single buffered']
    #allocation3 [shape = 's32[1]{0}', space=sflag, size = 0x4, scoped, tag = 'scoped memory for _lambda_.51']
    %13 = vsyncpa [#allocation3], 0
    // Predicated region
    $region2: #{_lambda_.51} parent=1 // pred_check
      _
    $region3: #{_lambda_.51} parent=1 // pred_check_branch
      %15 = sbr.rel (0) target = $region5
    $region4: #{_lambda_.51} parent=1 // pred_region
      _
    $region5: #{_lambda_.51} parent=1 // pred_fallthru
      _
    // Predicated region
    $region6: #{_lambda_.51} parent=1 // pred_check
      _
    $region7: #{_lambda_.51} parent=1 // pred_check_branch
      %17 = sbr.rel (0) target = $region9
    $region8: #{_lambda_.51} parent=1 // pred_region
      _
    $region9: #{_lambda_.51} parent=1 // pred_fallthru
      _
    // Predicated region
    $region10: #{_lambda_.51} parent=1 // pred_check
      _
    $region11: #{_lambda_.51} parent=1 // pred_check_branch
      %19 = sbr.rel (0) target = $region13
    $region12: #{_lambda_.51} parent=1 // pred_region
      _
    $region13: #{_lambda_.51} parent=1 // pred_fallthru
      _
    // Predicated region
    $region14: #{_lambda_.51} parent=1 // pred_check
      _
    $region15: #{_lambda_.51} parent=1 // pred_check_branch
      %21 = sbr.rel (0) target = $region17
    $region16: #{_lambda_.51} parent=1 // pred_region
      %23 = vsyncadd [#allocation3], 0
      %s24 = sshll.u32 %s3, 4
      %s25 = int_to_ptr.hbm [resolvable:$true] %s24
      %s26 = sshll.u32 [#allocation2], 4
      %s27 = int_to_ptr.vmem [resolvable:$true] %s26
      %32 = dma.hbm_to_vmem [thread:$0]  %s25, 16384, %s27, [#allocation3], 64, 64, 4
    $region17: #{_lambda_.51} parent=1 // pred_fallthru
      _
    // Predicated region
    $region18: #{_lambda_.51} parent=1 // pred_check
      _
    $region19: #{_lambda_.51} parent=1 // pred_check_branch
      %34 = sbr.rel (0) target = $region21
    $region20: #{_lambda_.51} parent=1 // pred_region
      _
    $region21: #{_lambda_.51} parent=1 // pred_fallthru
      _
    // Predicated region
    $region22: #{_lambda_.51} parent=1 // pred_check
      _
    $region23: #{_lambda_.51} parent=1 // pred_check_branch
      %36 = sbr.rel (0) target = $region25
    $region24: #{_lambda_.51} parent=1 // pred_region
      _
    $region25: #{_lambda_.51} parent=1 // pred_fallthru
      _
    // Predicated region
    $region26: #{_lambda_.51} parent=1 // pred_check
      _
    $region27: #{_lambda_.51} parent=1 // pred_check_branch
      %38 = sbr.rel (0) target = $region29
    $region28: #{_lambda_.51} parent=1 // pred_region
      _
    $region29: #{_lambda_.51} parent=1 // pred_fallthru
      _
    // Predicated region
    $region30: #{_lambda_.51} parent=1 // pred_check
      _
    $region31: #{_lambda_.51} parent=1 // pred_check_branch
      %40 = sbr.rel (0) target = $region33
    $region32: #{_lambda_.51} parent=1 // pred_region
      _
    $region33: #{_lambda_.51} parent=1 // pred_fallthru
      _
    // Predicated region
    $region34: #{_lambda_.51} parent=1 // pred_check
      _
    $region35: #{_lambda_.51} parent=1 // pred_check_branch
      %42 = sbr.rel (0) target = $region37
    $region36: #{_lambda_.51} parent=1 // pred_region
      %44 = dma.done [#allocation3], 16384
    $region37: #{_lambda_.51} parent=1 // pred_fallthru
      _
    %v46 = vld [vmem:[%s0] sm:$0xff]
    %v47 = vld [vmem:[%s0 + $0x8] sm:$0xff]
    %v48 = vpack.c.bf16 %v47, %v46
    %v49 = vld [vmem:[%s1] sm:$0xff]
    %v50 = vld [vmem:[%s1 + $0x8] sm:$0xff]
    %v51 = vld [vmem:[%s1 + $0x10] sm:$0xff]
    %v52 = vld [vmem:[%s1 + $0x18] sm:$0xff]
    %v53 = vld [vmem:[%s1 + $0x20] sm:$0xff]
    %v54 = vld [vmem:[%s1 + $0x28] sm:$0xff]
    %v55 = vld [vmem:[%s1 + $0x30] sm:$0xff]
    %v56 = vld [vmem:[%s1 + $0x38] sm:$0xff]
    %v57 = vld [vmem:[%s1 + $0x40] sm:$0xff]
    %v58 = vld [vmem:[%s1 + $0x48] sm:$0xff]
    %v59 = vld [vmem:[%s1 + $0x50] sm:$0xff]
    %v60 = vld [vmem:[%s1 + $0x58] sm:$0xff]
    %v61 = vld [vmem:[%s1 + $0x60] sm:$0xff]
    %v62 = vld [vmem:[%s1 + $0x68] sm:$0xff]
    %v63 = vld [vmem:[%s1 + $0x70] sm:$0xff]
    %v64 = vld [vmem:[%s1 + $0x78] sm:$0xff]
    %v65 = vld [vmem:[%s1 + $0x80] sm:$0xff]
    %v66 = vld [vmem:[%s1 + $0x88] sm:$0xff]
    %v67 = vld [vmem:[%s1 + $0x90] sm:$0xff]
    %v68 = vld [vmem:[%s1 + $0x98] sm:$0xff]
    %v69 = vld [vmem:[%s1 + $0xa0] sm:$0xff]
    %v70 = vld [vmem:[%s1 + $0xa8] sm:$0xff]
    %v71 = vld [vmem:[%s1 + $0xb0] sm:$0xff]
    %v72 = vld [vmem:[%s1 + $0xb8] sm:$0xff]
    %v73 = vld [vmem:[%s1 + $0xc0] sm:$0xff]
    %v74 = vld [vmem:[%s1 + $0xc8] sm:$0xff]
    %v75 = vld [vmem:[%s1 + $0xd0] sm:$0xff]
    %v76 = vld [vmem:[%s1 + $0xd8] sm:$0xff]
    %v77 = vld [vmem:[%s1 + $0xe0] sm:$0xff]
    %v78 = vld [vmem:[%s1 + $0xe8] sm:$0xff]
    %v79 = vld [vmem:[%s1 + $0xf0] sm:$0xff]
    %v80 = vld [vmem:[%s1 + $0xf8] sm:$0xff]
    %v81 = vld [vmem:[%s2] sm:$0xff]
    %v82 = vld [vmem:[%s2 + $0x8] sm:$0xff]
    %v85 = vperm.slane %v81, 0
    %v86 = vperm.slane %v81, 1
    %v87 = vperm.slane %v81, 2
    %v88 = vperm.slane %v81, 3
    %v89 = vperm.slane %v81, 4
    %v90 = vperm.slane %v81, 5
    %v91 = vperm.slane %v81, 6
    %v92 = vperm.slane %v81, 7
    %v93 = vperm.slane %v82, 0
    %v94 = vperm.slane %v82, 1
    %v95 = vperm.slane %v82, 2
    %v96 = vperm.slane %v82, 3
    %v97 = vperm.slane %v82, 4
    %v98 = vperm.slane %v82, 5
    %v99 = vperm.slane %v82, 6
    %v100 = vperm.slane %v82, 7
    %v149 = vunpack.c.l.b16 %v49
    %v150 = vunpack.c.h.b16 %v49
    %v151 = vunpack.c.l.b16 %v50
    %v152 = vunpack.c.h.b16 %v50
    %v153 = vunpack.c.l.b16 %v51
    %v154 = vunpack.c.h.b16 %v51
    %v155 = vunpack.c.l.b16 %v52
    %v156 = vunpack.c.h.b16 %v52
    %v157 = vunpack.c.l.b16 %v53
    %v158 = vunpack.c.h.b16 %v53
    %v159 = vunpack.c.l.b16 %v54
    %v160 = vunpack.c.h.b16 %v54
    %v161 = vunpack.c.l.b16 %v55
    %v162 = vunpack.c.h.b16 %v55
    %v163 = vunpack.c.l.b16 %v56
    %v164 = vunpack.c.h.b16 %v56
    %v165 = vunpack.c.l.b16 %v57
    %v166 = vunpack.c.h.b16 %v57
    %v167 = vunpack.c.l.b16 %v58
    %v168 = vunpack.c.h.b16 %v58
    %v169 = vunpack.c.l.b16 %v59
    %v170 = vunpack.c.h.b16 %v59
    %v171 = vunpack.c.l.b16 %v60
    %v172 = vunpack.c.h.b16 %v60
    %v173 = vunpack.c.l.b16 %v61
    %v174 = vunpack.c.h.b16 %v61
    %v175 = vunpack.c.l.b16 %v62
    %v176 = vunpack.c.h.b16 %v62
    %v177 = vunpack.c.l.b16 %v63
    %v178 = vunpack.c.h.b16 %v63
    %v179 = vunpack.c.l.b16 %v64
    %v180 = vunpack.c.h.b16 %v64
    %v181 = vunpack.c.l.b16 %v65
    %v182 = vunpack.c.h.b16 %v65
    %v183 = vunpack.c.l.b16 %v66
    %v184 = vunpack.c.h.b16 %v66
    %v185 = vunpack.c.l.b16 %v67
    %v186 = vunpack.c.h.b16 %v67
    %v187 = vunpack.c.l.b16 %v68
    %v188 = vunpack.c.h.b16 %v68
    %v189 = vunpack.c.l.b16 %v69
    %v190 = vunpack.c.h.b16 %v69
    %v191 = vunpack.c.l.b16 %v70
    %v192 = vunpack.c.h.b16 %v70
    %v193 = vunpack.c.l.b16 %v71
    %v194 = vunpack.c.h.b16 %v71
    %v195 = vunpack.c.l.b16 %v72
    %v196 = vunpack.c.h.b16 %v72
    %v197 = vunpack.c.l.b16 %v73
    %v198 = vunpack.c.h.b16 %v73
    %v199 = vunpack.c.l.b16 %v74
    %v200 = vunpack.c.h.b16 %v74
    %v201 = vunpack.c.l.b16 %v75
    %v202 = vunpack.c.h.b16 %v75
    %v203 = vunpack.c.l.b16 %v76
    %v204 = vunpack.c.h.b16 %v76
    %v205 = vunpack.c.l.b16 %v77
    %v206 = vunpack.c.h.b16 %v77
    %v207 = vunpack.c.l.b16 %v78
    %v208 = vunpack.c.h.b16 %v78
    %v209 = vunpack.c.l.b16 %v79
    %v210 = vunpack.c.h.b16 %v79
    %v211 = vunpack.c.l.b16 %v80
    %v212 = vunpack.c.h.b16 %v80
    %v213 = vpack.c.b16 %v165, %v149
    %v214 = vpack.c.b16 %v166, %v150
    %v215 = vpack.c.b16 %v167, %v151
    %v216 = vpack.c.b16 %v168, %v152
    %v217 = vpack.c.b16 %v169, %v153
    %v218 = vpack.c.b16 %v170, %v154
    %v219 = vpack.c.b16 %v171, %v155
    %v220 = vpack.c.b16 %v172, %v156
    %v221 = vpack.c.b16 %v173, %v157
    %v222 = vpack.c.b16 %v174, %v158
    %v223 = vpack.c.b16 %v175, %v159
    %v224 = vpack.c.b16 %v176, %v160
    %v225 = vpack.c.b16 %v177, %v161
    %v226 = vpack.c.b16 %v178, %v162
    %v227 = vpack.c.b16 %v179, %v163
    %v228 = vpack.c.b16 %v180, %v164
    %v229 = vpack.c.b16 %v197, %v181
    %v230 = vpack.c.b16 %v198, %v182
    %v231 = vpack.c.b16 %v199, %v183
    %v232 = vpack.c.b16 %v200, %v184
    %v233 = vpack.c.b16 %v201, %v185
    %v234 = vpack.c.b16 %v202, %v186
    %v235 = vpack.c.b16 %v203, %v187
    %v236 = vpack.c.b16 %v204, %v188
    %v237 = vpack.c.b16 %v205, %v189
    %v238 = vpack.c.b16 %v206, %v190
    %v239 = vpack.c.b16 %v207, %v191
    %v240 = vpack.c.b16 %v208, %v192
    %v241 = vpack.c.b16 %v209, %v193
    %v242 = vpack.c.b16 %v210, %v194
    %v243 = vpack.c.b16 %v211, %v195
    %v244 = vpack.c.b16 %v212, %v196
    %vm277 = vcmask 261120
    %v279 = vsel %vm277, %v48, 0
    %281 = vmatpush.bf16.msra.mxu0 0
    %282 = vmatpush.bf16.msra.mxu0 0
    %283 = vmatpush.bf16.msra.mxu0 0
    %284 = vmatpush.bf16.msra.mxu0 0
    %285 = vmatpush.bf16.msra.mxu0 0
    %286 = vmatpush.bf16.msra.mxu0 0
    %287 = vmatpush.bf16.msra.mxu0 %v229
    %288 = vmatpush.bf16.msra.mxu0 %v213
    %289 = vmatmul.bf16.gmra.mxu0 %v279
    %v290 = vpop.f32.mrf.mxu0
    %v291 = vadd.f32 %v85, %v290
    %v292 = vpop.f32.mrf.mxu0
    %v293 = vadd.f32 %v85, %v292
    %294 = vdwg.mxu0
    %295 = vmatpush.bf16.msra.mxu0 0
    %296 = vmatpush.bf16.msra.mxu0 0
    %297 = vmatpush.bf16.msra.mxu0 0
    %298 = vmatpush.bf16.msra.mxu0 0
    %299 = vmatpush.bf16.msra.mxu0 0
    %300 = vmatpush.bf16.msra.mxu0 0
    %301 = vmatpush.bf16.msra.mxu0 %v230
    %302 = vmatpush.bf16.msra.mxu0 %v214
    %303 = vmatmul.bf16.gmra.mxu0 %v279
    %v304 = vpop.f32.mrf.mxu0
    %v305 = vadd.f32 %v86, %v304
    %v306 = vpop.f32.mrf.mxu0
    %v307 = vadd.f32 %v86, %v306
    %308 = vdwg.mxu0
    %309 = vmatpush.bf16.msra.mxu0 0
    %310 = vmatpush.bf16.msra.mxu0 0
    %311 = vmatpush.bf16.msra.mxu0 0
    %312 = vmatpush.bf16.msra.mxu0 0
    %313 = vmatpush.bf16.msra.mxu0 0
    %314 = vmatpush.bf16.msra.mxu0 0
    %315 = vmatpush.bf16.msra.mxu0 %v231
    %316 = vmatpush.bf16.msra.mxu0 %v215
    %317 = vmatmul.bf16.gmra.mxu0 %v279
    %v318 = vpop.f32.mrf.mxu0
    %v319 = vadd.f32 %v87, %v318
    %v320 = vpop.f32.mrf.mxu0
    %v321 = vadd.f32 %v87, %v320
    %322 = vdwg.mxu0
    %323 = vmatpush.bf16.msra.mxu0 0
    %324 = vmatpush.bf16.msra.mxu0 0
    %325 = vmatpush.bf16.msra.mxu0 0
    %326 = vmatpush.bf16.msra.mxu0 0
    %327 = vmatpush.bf16.msra.mxu0 0
    %328 = vmatpush.bf16.msra.mxu0 0
    %329 = vmatpush.bf16.msra.mxu0 %v232
    %330 = vmatpush.bf16.msra.mxu0 %v216
    %331 = vmatmul.bf16.gmra.mxu0 %v279
    %v332 = vpop.f32.mrf.mxu0
    %v333 = vadd.f32 %v88, %v332
    %v334 = vpop.f32.mrf.mxu0
    %v335 = vadd.f32 %v88, %v334
    %336 = vdwg.mxu0
    %337 = vmatpush.bf16.msra.mxu0 0
    %338 = vmatpush.bf16.msra.mxu0 0
    %339 = vmatpush.bf16.msra.mxu0 0
    %340 = vmatpush.bf16.msra.mxu0 0
    %341 = vmatpush.bf16.msra.mxu0 0
    %342 = vmatpush.bf16.msra.mxu0 0
    %343 = vmatpush.bf16.msra.mxu0 %v233
    %344 = vmatpush.bf16.msra.mxu0 %v217
    %345 = vmatmul.bf16.gmra.mxu0 %v279
    %v346 = vpop.f32.mrf.mxu0
    %v347 = vadd.f32 %v89, %v346
    %v348 = vpop.f32.mrf.mxu0
    %v349 = vadd.f32 %v89, %v348
    %350 = vdwg.mxu0
    %351 = vmatpush.bf16.msra.mxu0 0
    %352 = vmatpush.bf16.msra.mxu0 0
    %353 = vmatpush.bf16.msra.mxu0 0
    %354 = vmatpush.bf16.msra.mxu0 0
    %355 = vmatpush.bf16.msra.mxu0 0
    %356 = vmatpush.bf16.msra.mxu0 0
    %357 = vmatpush.bf16.msra.mxu0 %v234
    %358 = vmatpush.bf16.msra.mxu0 %v218
    %359 = vmatmul.bf16.gmra.mxu0 %v279
    %v360 = vpop.f32.mrf.mxu0
    %v361 = vadd.f32 %v90, %v360
    %v362 = vpop.f32.mrf.mxu0
    %v363 = vadd.f32 %v90, %v362
    %364 = vdwg.mxu0
    %365 = vmatpush.bf16.msra.mxu0 0
    %366 = vmatpush.bf16.msra.mxu0 0
    %367 = vmatpush.bf16.msra.mxu0 0
    %368 = vmatpush.bf16.msra.mxu0 0
    %369 = vmatpush.bf16.msra.mxu0 0
    %370 = vmatpush.bf16.msra.mxu0 0
    %371 = vmatpush.bf16.msra.mxu0 %v235
    %372 = vmatpush.bf16.msra.mxu0 %v219
    %373 = vmatmul.bf16.gmra.mxu0 %v279
    %v374 = vpop.f32.mrf.mxu0
    %v375 = vadd.f32 %v91, %v374
    %v376 = vpop.f32.mrf.mxu0
    %v377 = vadd.f32 %v91, %v376
    %378 = vdwg.mxu0
    %379 = vmatpush.bf16.msra.mxu0 0
    %380 = vmatpush.bf16.msra.mxu0 0
    %381 = vmatpush.bf16.msra.mxu0 0
    %382 = vmatpush.bf16.msra.mxu0 0
    %383 = vmatpush.bf16.msra.mxu0 0
    %384 = vmatpush.bf16.msra.mxu0 0
    %385 = vmatpush.bf16.msra.mxu0 %v236
    %386 = vmatpush.bf16.msra.mxu0 %v220
    %387 = vmatmul.bf16.gmra.mxu0 %v279
    %v388 = vpop.f32.mrf.mxu0
    %v389 = vadd.f32 %v92, %v388
    %v390 = vpop.f32.mrf.mxu0
    %v391 = vadd.f32 %v92, %v390
    %392 = vdwg.mxu0
    %393 = vmatpush.bf16.msra.mxu0 0
    %394 = vmatpush.bf16.msra.mxu0 0
    %395 = vmatpush.bf16.msra.mxu0 0
    %396 = vmatpush.bf16.msra.mxu0 0
    %397 = vmatpush.bf16.msra.mxu0 0
    %398 = vmatpush.bf16.msra.mxu0 0
    %399 = vmatpush.bf16.msra.mxu0 %v237
    %400 = vmatpush.bf16.msra.mxu0 %v221
    %401 = vmatmul.bf16.gmra.mxu0 %v279
    %v402 = vpop.f32.mrf.mxu0
    %v403 = vadd.f32 %v93, %v402
    %v404 = vpop.f32.mrf.mxu0
    %v405 = vadd.f32 %v93, %v404
    %406 = vdwg.mxu0
    %407 = vmatpush.bf16.msra.mxu0 0
    %408 = vmatpush.bf16.msra.mxu0 0
    %409 = vmatpush.bf16.msra.mxu0 0
    %410 = vmatpush.bf16.msra.mxu0 0
    %411 = vmatpush.bf16.msra.mxu0 0
    %412 = vmatpush.bf16.msra.mxu0 0
    %413 = vmatpush.bf16.msra.mxu0 %v238
    %414 = vmatpush.bf16.msra.mxu0 %v222
    %415 = vmatmul.bf16.gmra.mxu0 %v279
    %v416 = vpop.f32.mrf.mxu0
    %v417 = vadd.f32 %v94, %v416
    %v418 = vpop.f32.mrf.mxu0
    %v419 = vadd.f32 %v94, %v418
    %420 = vdwg.mxu0
    %421 = vmatpush.bf16.msra.mxu0 0
    %422 = vmatpush.bf16.msra.mxu0 0
    %423 = vmatpush.bf16.msra.mxu0 0
    %424 = vmatpush.bf16.msra.mxu0 0
    %425 = vmatpush.bf16.msra.mxu0 0
    %426 = vmatpush.bf16.msra.mxu0 0
    %427 = vmatpush.bf16.msra.mxu0 %v239
    %428 = vmatpush.bf16.msra.mxu0 %v223
    %429 = vmatmul.bf16.gmra.mxu0 %v279
    %v430 = vpop.f32.mrf.mxu0
    %v431 = vadd.f32 %v95, %v430
    %v432 = vpop.f32.mrf.mxu0
    %v433 = vadd.f32 %v95, %v432
    %434 = vdwg.mxu0
    %435 = vmatpush.bf16.msra.mxu0 0
    %436 = vmatpush.bf16.msra.mxu0 0
    %437 = vmatpush.bf16.msra.mxu0 0
    %438 = vmatpush.bf16.msra.mxu0 0
    %439 = vmatpush.bf16.msra.mxu0 0
    %440 = vmatpush.bf16.msra.mxu0 0
    %441 = vmatpush.bf16.msra.mxu0 %v240
    %442 = vmatpush.bf16.msra.mxu0 %v224
    %443 = vmatmul.bf16.gmra.mxu0 %v279
    %v444 = vpop.f32.mrf.mxu0
    %v445 = vadd.f32 %v96, %v444
    %v446 = vpop.f32.mrf.mxu0
    %v447 = vadd.f32 %v96, %v446
    %448 = vdwg.mxu0
    %449 = vmatpush.bf16.msra.mxu0 0
    %450 = vmatpush.bf16.msra.mxu0 0
    %451 = vmatpush.bf16.msra.mxu0 0
    %452 = vmatpush.bf16.msra.mxu0 0
    %453 = vmatpush.bf16.msra.mxu0 0
    %454 = vmatpush.bf16.msra.mxu0 0
    %455 = vmatpush.bf16.msra.mxu0 %v241
    %456 = vmatpush.bf16.msra.mxu0 %v225
    %457 = vmatmul.bf16.gmra.mxu0 %v279
    %v458 = vpop.f32.mrf.mxu0
    %v459 = vadd.f32 %v97, %v458
    %v460 = vpop.f32.mrf.mxu0
    %v461 = vadd.f32 %v97, %v460
    %462 = vdwg.mxu0
    %463 = vmatpush.bf16.msra.mxu0 0
    %464 = vmatpush.bf16.msra.mxu0 0
    %465 = vmatpush.bf16.msra.mxu0 0
    %466 = vmatpush.bf16.msra.mxu0 0
    %467 = vmatpush.bf16.msra.mxu0 0
    %468 = vmatpush.bf16.msra.mxu0 0
    %469 = vmatpush.bf16.msra.mxu0 %v242
    %470 = vmatpush.bf16.msra.mxu0 %v226
    %471 = vmatmul.bf16.gmra.mxu0 %v279
    %v472 = vpop.f32.mrf.mxu0
    %v473 = vadd.f32 %v98, %v472
    %v474 = vpop.f32.mrf.mxu0
    %v475 = vadd.f32 %v98, %v474
    %476 = vdwg.mxu0
    %477 = vmatpush.bf16.msra.mxu0 0
    %478 = vmatpush.bf16.msra.mxu0 0
    %479 = vmatpush.bf16.msra.mxu0 0
    %480 = vmatpush.bf16.msra.mxu0 0
    %481 = vmatpush.bf16.msra.mxu0 0
    %482 = vmatpush.bf16.msra.mxu0 0
    %483 = vmatpush.bf16.msra.mxu0 %v243
    %484 = vmatpush.bf16.msra.mxu0 %v227
    %485 = vmatmul.bf16.gmra.mxu0 %v279
    %v486 = vpop.f32.mrf.mxu0
    %v487 = vadd.f32 %v99, %v486
    %v488 = vpop.f32.mrf.mxu0
    %v489 = vadd.f32 %v99, %v488
    %490 = vdwg.mxu0
    %491 = vmatpush.bf16.msra.mxu0 0
    %492 = vmatpush.bf16.msra.mxu0 0
    %493 = vmatpush.bf16.msra.mxu0 0
    %494 = vmatpush.bf16.msra.mxu0 0
    %495 = vmatpush.bf16.msra.mxu0 0
    %496 = vmatpush.bf16.msra.mxu0 0
    %497 = vmatpush.bf16.msra.mxu0 %v244
    %498 = vmatpush.bf16.msra.mxu0 %v228
    %499 = vmatmul.bf16.gmra.mxu0 %v279
    %v500 = vpop.f32.mrf.mxu0
    %v501 = vadd.f32 %v100, %v500
    %v502 = vpop.f32.mrf.mxu0
    %v503 = vadd.f32 %v100, %v502
    %504 = vdwg.mxu0
    %v505 = vmax.f32 %v291, 0.0
    %v506 = vmax.f32 %v305, 0.0
    %v507 = vmax.f32 %v319, 0.0
    %v508 = vmax.f32 %v333, 0.0
    %v509 = vmax.f32 %v347, 0.0
    %v510 = vmax.f32 %v361, 0.0
    %v511 = vmax.f32 %v375, 0.0
    %v512 = vmax.f32 %v389, 0.0
    %v513 = vmax.f32 %v403, 0.0
    %v514 = vmax.f32 %v417, 0.0
    %v515 = vmax.f32 %v431, 0.0
    %v516 = vmax.f32 %v445, 0.0
    %v517 = vmax.f32 %v459, 0.0
    %v518 = vmax.f32 %v473, 0.0
    %v519 = vmax.f32 %v487, 0.0
    %v520 = vmax.f32 %v501, 0.0
    %v521 = vmax.f32 %v293, 0.0
    %v522 = vmax.f32 %v307, 0.0
    %v523 = vmax.f32 %v321, 0.0
    %v524 = vmax.f32 %v335, 0.0
    %v525 = vmax.f32 %v349, 0.0
    %v526 = vmax.f32 %v363, 0.0
    %v527 = vmax.f32 %v377, 0.0
    %v528 = vmax.f32 %v391, 0.0
    %v529 = vmax.f32 %v405, 0.0
    %v530 = vmax.f32 %v419, 0.0
    %v531 = vmax.f32 %v433, 0.0
    %v532 = vmax.f32 %v447, 0.0
    %v533 = vmax.f32 %v461, 0.0
    %v534 = vmax.f32 %v475, 0.0
    %v535 = vmax.f32 %v489, 0.0
    %v536 = vmax.f32 %v503, 0.0
    %v537 = vpack.c.bf16 %v521, %v505
    %v538 = vpack.c.bf16 %v522, %v506
    %v539 = vpack.c.bf16 %v523, %v507
    %v540 = vpack.c.bf16 %v524, %v508
    %v541 = vpack.c.bf16 %v525, %v509
    %v542 = vpack.c.bf16 %v526, %v510
    %v543 = vpack.c.bf16 %v527, %v511
    %v544 = vpack.c.bf16 %v528, %v512
    %v545 = vpack.c.bf16 %v529, %v513
    %v546 = vpack.c.bf16 %v530, %v514
    %v547 = vpack.c.bf16 %v531, %v515
    %v548 = vpack.c.bf16 %v532, %v516
    %v549 = vpack.c.bf16 %v533, %v517
    %v550 = vpack.c.bf16 %v534, %v518
    %v551 = vpack.c.bf16 %v535, %v519
    %v552 = vpack.c.bf16 %v536, %v520
    %v553 = vld [vmem:[#allocation2] sm:$0xf]
    %v554 = vld [vmem:[#allocation2 + $0x4] sm:$0xf]
    %v555 = vld [vmem:[#allocation2 + $0x8] sm:$0xf]
    %v556 = vld [vmem:[#allocation2 + $0xc] sm:$0xf]
    %v557 = vld [vmem:[#allocation2 + $0x10] sm:$0xf]
    %v558 = vld [vmem:[#allocation2 + $0x14] sm:$0xf]
    %v559 = vld [vmem:[#allocation2 + $0x18] sm:$0xf]
    %v560 = vld [vmem:[#allocation2 + $0x1c] sm:$0xf]
    %v561 = vld [vmem:[#allocation2 + $0x20] sm:$0xf]
    %v562 = vld [vmem:[#allocation2 + $0x24] sm:$0xf]
    %v563 = vld [vmem:[#allocation2 + $0x28] sm:$0xf]
    %v564 = vld [vmem:[#allocation2 + $0x2c] sm:$0xf]
    %v565 = vld [vmem:[#allocation2 + $0x30] sm:$0xf]
    %v566 = vld [vmem:[#allocation2 + $0x34] sm:$0xf]
    %v567 = vld [vmem:[#allocation2 + $0x38] sm:$0xf]
    %v568 = vld [vmem:[#allocation2 + $0x3c] sm:$0xf]
    %v569 = vld [vmem:[#allocation2 + $0x40] sm:$0xf]
    %v570 = vld [vmem:[#allocation2 + $0x44] sm:$0xf]
    %v571 = vld [vmem:[#allocation2 + $0x48] sm:$0xf]
    %v572 = vld [vmem:[#allocation2 + $0x4c] sm:$0xf]
    %v573 = vld [vmem:[#allocation2 + $0x50] sm:$0xf]
    %v574 = vld [vmem:[#allocation2 + $0x54] sm:$0xf]
    %v575 = vld [vmem:[#allocation2 + $0x58] sm:$0xf]
    %v576 = vld [vmem:[#allocation2 + $0x5c] sm:$0xf]
    %v577 = vld [vmem:[#allocation2 + $0x60] sm:$0xf]
    %v578 = vld [vmem:[#allocation2 + $0x64] sm:$0xf]
    %v579 = vld [vmem:[#allocation2 + $0x68] sm:$0xf]
    %v580 = vld [vmem:[#allocation2 + $0x6c] sm:$0xf]
    %v581 = vld [vmem:[#allocation2 + $0x70] sm:$0xf]
    %v582 = vld [vmem:[#allocation2 + $0x74] sm:$0xf]
    %v583 = vld [vmem:[#allocation2 + $0x78] sm:$0xf]
    %v584 = vld [vmem:[#allocation2 + $0x7c] sm:$0xf]
    %v585 = vld [vmem:[#allocation2 + $0x80] sm:$0xf]
    %v586 = vld [vmem:[#allocation2 + $0x84] sm:$0xf]
    %v587 = vld [vmem:[#allocation2 + $0x88] sm:$0xf]
    %v588 = vld [vmem:[#allocation2 + $0x8c] sm:$0xf]
    %v589 = vld [vmem:[#allocation2 + $0x90] sm:$0xf]
    %v590 = vld [vmem:[#allocation2 + $0x94] sm:$0xf]
    %v591 = vld [vmem:[#allocation2 + $0x98] sm:$0xf]
    %v592 = vld [vmem:[#allocation2 + $0x9c] sm:$0xf]
    %v593 = vld [vmem:[#allocation2 + $0xa0] sm:$0xf]
    %v594 = vld [vmem:[#allocation2 + $0xa4] sm:$0xf]
    %v595 = vld [vmem:[#allocation2 + $0xa8] sm:$0xf]
    %v596 = vld [vmem:[#allocation2 + $0xac] sm:$0xf]
    %v597 = vld [vmem:[#allocation2 + $0xb0] sm:$0xf]
    %v598 = vld [vmem:[#allocation2 + $0xb4] sm:$0xf]
    %v599 = vld [vmem:[#allocation2 + $0xb8] sm:$0xf]
    %v600 = vld [vmem:[#allocation2 + $0xbc] sm:$0xf]
    %v601 = vld [vmem:[#allocation2 + $0xc0] sm:$0xf]
    %v602 = vld [vmem:[#allocation2 + $0xc4] sm:$0xf]
    %v603 = vld [vmem:[#allocation2 + $0xc8] sm:$0xf]
    %v604 = vld [vmem:[#allocation2 + $0xcc] sm:$0xf]
    %v605 = vld [vmem:[#allocation2 + $0xd0] sm:$0xf]
    %v606 = vld [vmem:[#allocation2 + $0xd4] sm:$0xf]
    %v607 = vld [vmem:[#allocation2 + $0xd8] sm:$0xf]
    %v608 = vld [vmem:[#allocation2 + $0xdc] sm:$0xf]
    %v609 = vld [vmem:[#allocation2 + $0xe0] sm:$0xf]
    %v610 = vld [vmem:[#allocation2 + $0xe4] sm:$0xf]
    %v611 = vld [vmem:[#allocation2 + $0xe8] sm:$0xf]
    %v612 = vld [vmem:[#allocation2 + $0xec] sm:$0xf]
    %v613 = vld [vmem:[#allocation2 + $0xf0] sm:$0xf]
    %v614 = vld [vmem:[#allocation2 + $0xf4] sm:$0xf]
    %v615 = vld [vmem:[#allocation2 + $0xf8] sm:$0xf]
    %v616 = vld [vmem:[#allocation2 + $0xfc] sm:$0xf]
    %v617 = vld [vmem:[#allocation2 + $0x100] sm:$0xf]
    %v618 = vld [vmem:[#allocation2 + $0x104] sm:$0xf]
    %v619 = vld [vmem:[#allocation2 + $0x108] sm:$0xf]
    %v620 = vld [vmem:[#allocation2 + $0x10c] sm:$0xf]
    %v621 = vld [vmem:[#allocation2 + $0x110] sm:$0xf]
    %v622 = vld [vmem:[#allocation2 + $0x114] sm:$0xf]
    %v623 = vld [vmem:[#allocation2 + $0x118] sm:$0xf]
    %v624 = vld [vmem:[#allocation2 + $0x11c] sm:$0xf]
    %v625 = vld [vmem:[#allocation2 + $0x120] sm:$0xf]
    %v626 = vld [vmem:[#allocation2 + $0x124] sm:$0xf]
    %v627 = vld [vmem:[#allocation2 + $0x128] sm:$0xf]
    %v628 = vld [vmem:[#allocation2 + $0x12c] sm:$0xf]
    %v629 = vld [vmem:[#allocation2 + $0x130] sm:$0xf]
    %v630 = vld [vmem:[#allocation2 + $0x134] sm:$0xf]
    %v631 = vld [vmem:[#allocation2 + $0x138] sm:$0xf]
    %v632 = vld [vmem:[#allocation2 + $0x13c] sm:$0xf]
    %v633 = vld [vmem:[#allocation2 + $0x140] sm:$0xf]
    %v634 = vld [vmem:[#allocation2 + $0x144] sm:$0xf]
    %v635 = vld [vmem:[#allocation2 + $0x148] sm:$0xf]
    %v636 = vld [vmem:[#allocation2 + $0x14c] sm:$0xf]
    %v637 = vld [vmem:[#allocation2 + $0x150] sm:$0xf]
    %v638 = vld [vmem:[#allocation2 + $0x154] sm:$0xf]
    %v639 = vld [vmem:[#allocation2 + $0x158] sm:$0xf]
    %v640 = vld [vmem:[#allocation2 + $0x15c] sm:$0xf]
    %v641 = vld [vmem:[#allocation2 + $0x160] sm:$0xf]
    %v642 = vld [vmem:[#allocation2 + $0x164] sm:$0xf]
    %v643 = vld [vmem:[#allocation2 + $0x168] sm:$0xf]
    %v644 = vld [vmem:[#allocation2 + $0x16c] sm:$0xf]
    %v645 = vld [vmem:[#allocation2 + $0x170] sm:$0xf]
    %v646 = vld [vmem:[#allocation2 + $0x174] sm:$0xf]
    %v647 = vld [vmem:[#allocation2 + $0x178] sm:$0xf]
    %v648 = vld [vmem:[#allocation2 + $0x17c] sm:$0xf]
    %v649 = vld [vmem:[#allocation2 + $0x180] sm:$0xf]
    %v650 = vld [vmem:[#allocation2 + $0x184] sm:$0xf]
    %v651 = vld [vmem:[#allocation2 + $0x188] sm:$0xf]
    %v652 = vld [vmem:[#allocation2 + $0x18c] sm:$0xf]
    %v653 = vld [vmem:[#allocation2 + $0x190] sm:$0xf]
    %v654 = vld [vmem:[#allocation2 + $0x194] sm:$0xf]
    %v655 = vld [vmem:[#allocation2 + $0x198] sm:$0xf]
    %v656 = vld [vmem:[#allocation2 + $0x19c] sm:$0xf]
    %v657 = vld [vmem:[#allocation2 + $0x1a0] sm:$0xf]
    %v658 = vld [vmem:[#allocation2 + $0x1a4] sm:$0xf]
    %v659 = vld [vmem:[#allocation2 + $0x1a8] sm:$0xf]
    %v660 = vld [vmem:[#allocation2 + $0x1ac] sm:$0xf]
    %v661 = vld [vmem:[#allocation2 + $0x1b0] sm:$0xf]
    %v662 = vld [vmem:[#allocation2 + $0x1b4] sm:$0xf]
    %v663 = vld [vmem:[#allocation2 + $0x1b8] sm:$0xf]
    %v664 = vld [vmem:[#allocation2 + $0x1bc] sm:$0xf]
    %v665 = vld [vmem:[#allocation2 + $0x1c0] sm:$0xf]
    %v666 = vld [vmem:[#allocation2 + $0x1c4] sm:$0xf]
    %v667 = vld [vmem:[#allocation2 + $0x1c8] sm:$0xf]
    %v668 = vld [vmem:[#allocation2 + $0x1cc] sm:$0xf]
    %v669 = vld [vmem:[#allocation2 + $0x1d0] sm:$0xf]
    %v670 = vld [vmem:[#allocation2 + $0x1d4] sm:$0xf]
    %v671 = vld [vmem:[#allocation2 + $0x1d8] sm:$0xf]
    %v672 = vld [vmem:[#allocation2 + $0x1dc] sm:$0xf]
    %v673 = vld [vmem:[#allocation2 + $0x1e0] sm:$0xf]
    %v674 = vld [vmem:[#allocation2 + $0x1e4] sm:$0xf]
    %v675 = vld [vmem:[#allocation2 + $0x1e8] sm:$0xf]
    %v676 = vld [vmem:[#allocation2 + $0x1ec] sm:$0xf]
    %v677 = vld [vmem:[#allocation2 + $0x1f0] sm:$0xf]
    %v678 = vld [vmem:[#allocation2 + $0x1f4] sm:$0xf]
    %v679 = vld [vmem:[#allocation2 + $0x1f8] sm:$0xf]
    %v680 = vld [vmem:[#allocation2 + $0x1fc] sm:$0xf]
    %v681 = vld [vmem:[#allocation2 + $0x200] sm:$0xf]
    %v682 = vld [vmem:[#allocation2 + $0x204] sm:$0xf]
    %v683 = vld [vmem:[#allocation2 + $0x208] sm:$0xf]
    %v684 = vld [vmem:[#allocation2 + $0x20c] sm:$0xf]
    %v685 = vld [vmem:[#allocation2 + $0x210] sm:$0xf]
    %v686 = vld [vmem:[#allocation2 + $0x214] sm:$0xf]
    %v687 = vld [vmem:[#allocation2 + $0x218] sm:$0xf]
    %v688 = vld [vmem:[#allocation2 + $0x21c] sm:$0xf]
    %v689 = vld [vmem:[#allocation2 + $0x220] sm:$0xf]
    %v690 = vld [vmem:[#allocation2 + $0x224] sm:$0xf]
    %v691 = vld [vmem:[#allocation2 + $0x228] sm:$0xf]
    %v692 = vld [vmem:[#allocation2 + $0x22c] sm:$0xf]
    %v693 = vld [vmem:[#allocation2 + $0x230] sm:$0xf]
    %v694 = vld [vmem:[#allocation2 + $0x234] sm:$0xf]
    %v695 = vld [vmem:[#allocation2 + $0x238] sm:$0xf]
    %v696 = vld [vmem:[#allocation2 + $0x23c] sm:$0xf]
    %v697 = vld [vmem:[#allocation2 + $0x240] sm:$0xf]
    %v698 = vld [vmem:[#allocation2 + $0x244] sm:$0xf]
    %v699 = vld [vmem:[#allocation2 + $0x248] sm:$0xf]
    %v700 = vld [vmem:[#allocation2 + $0x24c] sm:$0xf]
    %v701 = vld [vmem:[#allocation2 + $0x250] sm:$0xf]
    %v702 = vld [vmem:[#allocation2 + $0x254] sm:$0xf]
    %v703 = vld [vmem:[#allocation2 + $0x258] sm:$0xf]
    %v704 = vld [vmem:[#allocation2 + $0x25c] sm:$0xf]
    %v705 = vld [vmem:[#allocation2 + $0x260] sm:$0xf]
    %v706 = vld [vmem:[#allocation2 + $0x264] sm:$0xf]
    %v707 = vld [vmem:[#allocation2 + $0x268] sm:$0xf]
    %v708 = vld [vmem:[#allocation2 + $0x26c] sm:$0xf]
    %v709 = vld [vmem:[#allocation2 + $0x270] sm:$0xf]
    %v710 = vld [vmem:[#allocation2 + $0x274] sm:$0xf]
    %v711 = vld [vmem:[#allocation2 + $0x278] sm:$0xf]
    %v712 = vld [vmem:[#allocation2 + $0x27c] sm:$0xf]
    %v713 = vld [vmem:[#allocation2 + $0x280] sm:$0xf]
    %v714 = vld [vmem:[#allocation2 + $0x284] sm:$0xf]
    %v715 = vld [vmem:[#allocation2 + $0x288] sm:$0xf]
    %v716 = vld [vmem:[#allocation2 + $0x28c] sm:$0xf]
    %v717 = vld [vmem:[#allocation2 + $0x290] sm:$0xf]
    %v718 = vld [vmem:[#allocation2 + $0x294] sm:$0xf]
    %v719 = vld [vmem:[#allocation2 + $0x298] sm:$0xf]
    %v720 = vld [vmem:[#allocation2 + $0x29c] sm:$0xf]
    %v721 = vld [vmem:[#allocation2 + $0x2a0] sm:$0xf]
    %v722 = vld [vmem:[#allocation2 + $0x2a4] sm:$0xf]
    %v723 = vld [vmem:[#allocation2 + $0x2a8] sm:$0xf]
    %v724 = vld [vmem:[#allocation2 + $0x2ac] sm:$0xf]
    %v725 = vld [vmem:[#allocation2 + $0x2b0] sm:$0xf]
    %v726 = vld [vmem:[#allocation2 + $0x2b4] sm:$0xf]
    %v727 = vld [vmem:[#allocation2 + $0x2b8] sm:$0xf]
    %v728 = vld [vmem:[#allocation2 + $0x2bc] sm:$0xf]
    %v729 = vld [vmem:[#allocation2 + $0x2c0] sm:$0xf]
    %v730 = vld [vmem:[#allocation2 + $0x2c4] sm:$0xf]
    %v731 = vld [vmem:[#allocation2 + $0x2c8] sm:$0xf]
    %v732 = vld [vmem:[#allocation2 + $0x2cc] sm:$0xf]
    %v733 = vld [vmem:[#allocation2 + $0x2d0] sm:$0xf]
    %v734 = vld [vmem:[#allocation2 + $0x2d4] sm:$0xf]
    %v735 = vld [vmem:[#allocation2 + $0x2d8] sm:$0xf]
    %v736 = vld [vmem:[#allocation2 + $0x2dc] sm:$0xf]
    %v737 = vld [vmem:[#allocation2 + $0x2e0] sm:$0xf]
    %v738 = vld [vmem:[#allocation2 + $0x2e4] sm:$0xf]
    %v739 = vld [vmem:[#allocation2 + $0x2e8] sm:$0xf]
    %v740 = vld [vmem:[#allocation2 + $0x2ec] sm:$0xf]
    %v741 = vld [vmem:[#allocation2 + $0x2f0] sm:$0xf]
    %v742 = vld [vmem:[#allocation2 + $0x2f4] sm:$0xf]
    %v743 = vld [vmem:[#allocation2 + $0x2f8] sm:$0xf]
    %v744 = vld [vmem:[#allocation2 + $0x2fc] sm:$0xf]
    %v745 = vld [vmem:[#allocation2 + $0x300] sm:$0xf]
    %v746 = vld [vmem:[#allocation2 + $0x304] sm:$0xf]
    %v747 = vld [vmem:[#allocation2 + $0x308] sm:$0xf]
    %v748 = vld [vmem:[#allocation2 + $0x30c] sm:$0xf]
    %v749 = vld [vmem:[#allocation2 + $0x310] sm:$0xf]
    %v750 = vld [vmem:[#allocation2 + $0x314] sm:$0xf]
    %v751 = vld [vmem:[#allocation2 + $0x318] sm:$0xf]
    %v752 = vld [vmem:[#allocation2 + $0x31c] sm:$0xf]
    %v753 = vld [vmem:[#allocation2 + $0x320] sm:$0xf]
    %v754 = vld [vmem:[#allocation2 + $0x324] sm:$0xf]
    %v755 = vld [vmem:[#allocation2 + $0x328] sm:$0xf]
    %v756 = vld [vmem:[#allocation2 + $0x32c] sm:$0xf]
    %v757 = vld [vmem:[#allocation2 + $0x330] sm:$0xf]
    %v758 = vld [vmem:[#allocation2 + $0x334] sm:$0xf]
    %v759 = vld [vmem:[#allocation2 + $0x338] sm:$0xf]
    %v760 = vld [vmem:[#allocation2 + $0x33c] sm:$0xf]
    %v761 = vld [vmem:[#allocation2 + $0x340] sm:$0xf]
    %v762 = vld [vmem:[#allocation2 + $0x344] sm:$0xf]
    %v763 = vld [vmem:[#allocation2 + $0x348] sm:$0xf]
    %v764 = vld [vmem:[#allocation2 + $0x34c] sm:$0xf]
    %v765 = vld [vmem:[#allocation2 + $0x350] sm:$0xf]
    %v766 = vld [vmem:[#allocation2 + $0x354] sm:$0xf]
    %v767 = vld [vmem:[#allocation2 + $0x358] sm:$0xf]
    %v768 = vld [vmem:[#allocation2 + $0x35c] sm:$0xf]
    %v769 = vld [vmem:[#allocation2 + $0x360] sm:$0xf]
    %v770 = vld [vmem:[#allocation2 + $0x364] sm:$0xf]
    %v771 = vld [vmem:[#allocation2 + $0x368] sm:$0xf]
    %v772 = vld [vmem:[#allocation2 + $0x36c] sm:$0xf]
    %v773 = vld [vmem:[#allocation2 + $0x370] sm:$0xf]
    %v774 = vld [vmem:[#allocation2 + $0x374] sm:$0xf]
    %v775 = vld [vmem:[#allocation2 + $0x378] sm:$0xf]
    %v776 = vld [vmem:[#allocation2 + $0x37c] sm:$0xf]
    %v777 = vld [vmem:[#allocation2 + $0x380] sm:$0xf]
    %v778 = vld [vmem:[#allocation2 + $0x384] sm:$0xf]
    %v779 = vld [vmem:[#allocation2 + $0x388] sm:$0xf]
    %v780 = vld [vmem:[#allocation2 + $0x38c] sm:$0xf]
    %v781 = vld [vmem:[#allocation2 + $0x390] sm:$0xf]
    %v782 = vld [vmem:[#allocation2 + $0x394] sm:$0xf]
    %v783 = vld [vmem:[#allocation2 + $0x398] sm:$0xf]
    %v784 = vld [vmem:[#allocation2 + $0x39c] sm:$0xf]
    %v785 = vld [vmem:[#allocation2 + $0x3a0] sm:$0xf]
    %v786 = vld [vmem:[#allocation2 + $0x3a4] sm:$0xf]
    %v787 = vld [vmem:[#allocation2 + $0x3a8] sm:$0xf]
    %v788 = vld [vmem:[#allocation2 + $0x3ac] sm:$0xf]
    %v789 = vld [vmem:[#allocation2 + $0x3b0] sm:$0xf]
    %v790 = vld [vmem:[#allocation2 + $0x3b4] sm:$0xf]
    %v791 = vld [vmem:[#allocation2 + $0x3b8] sm:$0xf]
    %v792 = vld [vmem:[#allocation2 + $0x3bc] sm:$0xf]
    %v793 = vld [vmem:[#allocation2 + $0x3c0] sm:$0xf]
    %v794 = vld [vmem:[#allocation2 + $0x3c4] sm:$0xf]
    %v795 = vld [vmem:[#allocation2 + $0x3c8] sm:$0xf]
    %v796 = vld [vmem:[#allocation2 + $0x3cc] sm:$0xf]
    %v797 = vld [vmem:[#allocation2 + $0x3d0] sm:$0xf]
    %v798 = vld [vmem:[#allocation2 + $0x3d4] sm:$0xf]
    %v799 = vld [vmem:[#allocation2 + $0x3d8] sm:$0xf]
    %v800 = vld [vmem:[#allocation2 + $0x3dc] sm:$0xf]
    %v801 = vld [vmem:[#allocation2 + $0x3e0] sm:$0xf]
    %v802 = vld [vmem:[#allocation2 + $0x3e4] sm:$0xf]
    %v803 = vld [vmem:[#allocation2 + $0x3e8] sm:$0xf]
    %v804 = vld [vmem:[#allocation2 + $0x3ec] sm:$0xf]
    %v805 = vld [vmem:[#allocation2 + $0x3f0] sm:$0xf]
    %v806 = vld [vmem:[#allocation2 + $0x3f4] sm:$0xf]
    %v807 = vld [vmem:[#allocation2 + $0x3f8] sm:$0xf]
    %v808 = vld [vmem:[#allocation2 + $0x3fc] sm:$0xf]
    %v1065 = vunpack.c.l.b16 %v553
    %v1066 = vunpack.c.l.b16 %v554
    %v1067 = vunpack.c.l.b16 %v555
    %v1068 = vunpack.c.l.b16 %v556
    %v1069 = vunpack.c.l.b16 %v557
    %v1070 = vunpack.c.l.b16 %v558
    %v1071 = vunpack.c.l.b16 %v559
    %v1072 = vunpack.c.l.b16 %v560
    %v1073 = vunpack.c.l.b16 %v561
    %v1074 = vunpack.c.l.b16 %v562
    %v1075 = vunpack.c.l.b16 %v563
    %v1076 = vunpack.c.l.b16 %v564
    %v1077 = vunpack.c.l.b16 %v565
    %v1078 = vunpack.c.l.b16 %v566
    %v1079 = vunpack.c.l.b16 %v567
    %v1080 = vunpack.c.l.b16 %v568
    %v1081 = vunpack.c.l.b16 %v569
    %v1082 = vunpack.c.l.b16 %v570
    %v1083 = vunpack.c.l.b16 %v571
    %v1084 = vunpack.c.l.b16 %v572
    %v1085 = vunpack.c.l.b16 %v573
    %v1086 = vunpack.c.l.b16 %v574
    %v1087 = vunpack.c.l.b16 %v575
    %v1088 = vunpack.c.l.b16 %v576
    %v1089 = vunpack.c.l.b16 %v577
    %v1090 = vunpack.c.l.b16 %v578
    %v1091 = vunpack.c.l.b16 %v579
    %v1092 = vunpack.c.l.b16 %v580
    %v1093 = vunpack.c.l.b16 %v581
    %v1094 = vunpack.c.l.b16 %v582
    %v1095 = vunpack.c.l.b16 %v583
    %v1096 = vunpack.c.l.b16 %v584
    %v1097 = vunpack.c.l.b16 %v585
    %v1098 = vunpack.c.l.b16 %v586
    %v1099 = vunpack.c.l.b16 %v587
    %v1100 = vunpack.c.l.b16 %v588
    %v1101 = vunpack.c.l.b16 %v589
    %v1102 = vunpack.c.l.b16 %v590
    %v1103 = vunpack.c.l.b16 %v591
    %v1104 = vunpack.c.l.b16 %v592
    %v1105 = vunpack.c.l.b16 %v593
    %v1106 = vunpack.c.l.b16 %v594
    %v1107 = vunpack.c.l.b16 %v595
    %v1108 = vunpack.c.l.b16 %v596
    %v1109 = vunpack.c.l.b16 %v597
    %v1110 = vunpack.c.l.b16 %v598
    %v1111 = vunpack.c.l.b16 %v599
    %v1112 = vunpack.c.l.b16 %v600
    %v1113 = vunpack.c.l.b16 %v601
    %v1114 = vunpack.c.l.b16 %v602
    %v1115 = vunpack.c.l.b16 %v603
    %v1116 = vunpack.c.l.b16 %v604
    %v1117 = vunpack.c.l.b16 %v605
    %v1118 = vunpack.c.l.b16 %v606
    %v1119 = vunpack.c.l.b16 %v607
    %v1120 = vunpack.c.l.b16 %v608
    %v1121 = vunpack.c.l.b16 %v609
    %v1122 = vunpack.c.l.b16 %v610
    %v1123 = vunpack.c.l.b16 %v611
    %v1124 = vunpack.c.l.b16 %v612
    %v1125 = vunpack.c.l.b16 %v613
    %v1126 = vunpack.c.l.b16 %v614
    %v1127 = vunpack.c.l.b16 %v615
    %v1128 = vunpack.c.l.b16 %v616
    %v1129 = vunpack.c.l.b16 %v617
    %v1130 = vunpack.c.l.b16 %v618
    %v1131 = vunpack.c.l.b16 %v619
    %v1132 = vunpack.c.l.b16 %v620
    %v1133 = vunpack.c.l.b16 %v621
    %v1134 = vunpack.c.l.b16 %v622
    %v1135 = vunpack.c.l.b16 %v623
    %v1136 = vunpack.c.l.b16 %v624
    %v1137 = vunpack.c.l.b16 %v625
    %v1138 = vunpack.c.l.b16 %v626
    %v1139 = vunpack.c.l.b16 %v627
    %v1140 = vunpack.c.l.b16 %v628
    %v1141 = vunpack.c.l.b16 %v629
    %v1142 = vunpack.c.l.b16 %v630
    %v1143 = vunpack.c.l.b16 %v631
    %v1144 = vunpack.c.l.b16 %v632
    %v1145 = vunpack.c.l.b16 %v633
    %v1146 = vunpack.c.l.b16 %v634
    %v1147 = vunpack.c.l.b16 %v635
    %v1148 = vunpack.c.l.b16 %v636
    %v1149 = vunpack.c.l.b16 %v637
    %v1150 = vunpack.c.l.b16 %v638
    %v1151 = vunpack.c.l.b16 %v639
    %v1152 = vunpack.c.l.b16 %v640
    %v1153 = vunpack.c.l.b16 %v641
    %v1154 = vunpack.c.l.b16 %v642
    %v1155 = vunpack.c.l.b16 %v643
    %v1156 = vunpack.c.l.b16 %v644
    %v1157 = vunpack.c.l.b16 %v645
    %v1158 = vunpack.c.l.b16 %v646
    %v1159 = vunpack.c.l.b16 %v647
    %v1160 = vunpack.c.l.b16 %v648
    %v1161 = vunpack.c.l.b16 %v649
    %v1162 = vunpack.c.l.b16 %v650
    %v1163 = vunpack.c.l.b16 %v651
    %v1164 = vunpack.c.l.b16 %v652
    %v1165 = vunpack.c.l.b16 %v653
    %v1166 = vunpack.c.l.b16 %v654
    %v1167 = vunpack.c.l.b16 %v655
    %v1168 = vunpack.c.l.b16 %v656
    %v1169 = vunpack.c.l.b16 %v657
    %v1170 = vunpack.c.l.b16 %v658
    %v1171 = vunpack.c.l.b16 %v659
    %v1172 = vunpack.c.l.b16 %v660
    %v1173 = vunpack.c.l.b16 %v661
    %v1174 = vunpack.c.l.b16 %v662
    %v1175 = vunpack.c.l.b16 %v663
    %v1176 = vunpack.c.l.b16 %v664
    %v1177 = vunpack.c.l.b16 %v665
    %v1178 = vunpack.c.l.b16 %v666
    %v1179 = vunpack.c.l.b16 %v667
    %v1180 = vunpack.c.l.b16 %v668
    %v1181 = vunpack.c.l.b16 %v669
    %v1182 = vunpack.c.l.b16 %v670
    %v1183 = vunpack.c.l.b16 %v671
    %v1184 = vunpack.c.l.b16 %v672
    %v1185 = vunpack.c.l.b16 %v673
    %v1186 = vunpack.c.l.b16 %v674
    %v1187 = vunpack.c.l.b16 %v675
    %v1188 = vunpack.c.l.b16 %v676
    %v1189 = vunpack.c.l.b16 %v677
    %v1190 = vunpack.c.l.b16 %v678
    %v1191 = vunpack.c.l.b16 %v679
    %v1192 = vunpack.c.l.b16 %v680
    %v1193 = vunpack.c.l.b16 %v681
    %v1194 = vunpack.c.l.b16 %v682
    %v1195 = vunpack.c.l.b16 %v683
    %v1196 = vunpack.c.l.b16 %v684
    %v1197 = vunpack.c.l.b16 %v685
    %v1198 = vunpack.c.l.b16 %v686
    %v1199 = vunpack.c.l.b16 %v687
    %v1200 = vunpack.c.l.b16 %v688
    %v1201 = vunpack.c.l.b16 %v689
    %v1202 = vunpack.c.l.b16 %v690
    %v1203 = vunpack.c.l.b16 %v691
    %v1204 = vunpack.c.l.b16 %v692
    %v1205 = vunpack.c.l.b16 %v693
    %v1206 = vunpack.c.l.b16 %v694
    %v1207 = vunpack.c.l.b16 %v695
    %v1208 = vunpack.c.l.b16 %v696
    %v1209 = vunpack.c.l.b16 %v697
    %v1210 = vunpack.c.l.b16 %v698
    %v1211 = vunpack.c.l.b16 %v699
    %v1212 = vunpack.c.l.b16 %v700
    %v1213 = vunpack.c.l.b16 %v701
    %v1214 = vunpack.c.l.b16 %v702
    %v1215 = vunpack.c.l.b16 %v703
    %v1216 = vunpack.c.l.b16 %v704
    %v1217 = vunpack.c.l.b16 %v705
    %v1218 = vunpack.c.l.b16 %v706
    %v1219 = vunpack.c.l.b16 %v707
    %v1220 = vunpack.c.l.b16 %v708
    %v1221 = vunpack.c.l.b16 %v709
    %v1222 = vunpack.c.l.b16 %v710
    %v1223 = vunpack.c.l.b16 %v711
    %v1224 = vunpack.c.l.b16 %v712
    %v1225 = vunpack.c.l.b16 %v713
    %v1226 = vunpack.c.l.b16 %v714
    %v1227 = vunpack.c.l.b16 %v715
    %v1228 = vunpack.c.l.b16 %v716
    %v1229 = vunpack.c.l.b16 %v717
    %v1230 = vunpack.c.l.b16 %v718
    %v1231 = vunpack.c.l.b16 %v719
    %v1232 = vunpack.c.l.b16 %v720
    %v1233 = vunpack.c.l.b16 %v721
    %v1234 = vunpack.c.l.b16 %v722
    %v1235 = vunpack.c.l.b16 %v723
    %v1236 = vunpack.c.l.b16 %v724
    %v1237 = vunpack.c.l.b16 %v725
    %v1238 = vunpack.c.l.b16 %v726
    %v1239 = vunpack.c.l.b16 %v727
    %v1240 = vunpack.c.l.b16 %v728
    %v1241 = vunpack.c.l.b16 %v729
    %v1242 = vunpack.c.l.b16 %v730
    %v1243 = vunpack.c.l.b16 %v731
    %v1244 = vunpack.c.l.b16 %v732
    %v1245 = vunpack.c.l.b16 %v733
    %v1246 = vunpack.c.l.b16 %v734
    %v1247 = vunpack.c.l.b16 %v735
    %v1248 = vunpack.c.l.b16 %v736
    %v1249 = vunpack.c.l.b16 %v737
    %v1250 = vunpack.c.l.b16 %v738
    %v1251 = vunpack.c.l.b16 %v739
    %v1252 = vunpack.c.l.b16 %v740
    %v1253 = vunpack.c.l.b16 %v741
    %v1254 = vunpack.c.l.b16 %v742
    %v1255 = vunpack.c.l.b16 %v743
    %v1256 = vunpack.c.l.b16 %v744
    %v1257 = vunpack.c.l.b16 %v745
    %v1258 = vunpack.c.l.b16 %v746
    %v1259 = vunpack.c.l.b16 %v747
    %v1260 = vunpack.c.l.b16 %v748
    %v1261 = vunpack.c.l.b16 %v749
    %v1262 = vunpack.c.l.b16 %v750
    %v1263 = vunpack.c.l.b16 %v751
    %v1264 = vunpack.c.l.b16 %v752
    %v1265 = vunpack.c.l.b16 %v753
    %v1266 = vunpack.c.l.b16 %v754
    %v1267 = vunpack.c.l.b16 %v755
    %v1268 = vunpack.c.l.b16 %v756
    %v1269 = vunpack.c.l.b16 %v757
    %v1270 = vunpack.c.l.b16 %v758
    %v1271 = vunpack.c.l.b16 %v759
    %v1272 = vunpack.c.l.b16 %v760
    %v1273 = vunpack.c.l.b16 %v761
    %v1274 = vunpack.c.l.b16 %v762
    %v1275 = vunpack.c.l.b16 %v763
    %v1276 = vunpack.c.l.b16 %v764
    %v1277 = vunpack.c.l.b16 %v765
    %v1278 = vunpack.c.l.b16 %v766
    %v1279 = vunpack.c.l.b16 %v767
    %v1280 = vunpack.c.l.b16 %v768
    %v1281 = vunpack.c.l.b16 %v769
    %v1282 = vunpack.c.l.b16 %v770
    %v1283 = vunpack.c.l.b16 %v771
    %v1284 = vunpack.c.l.b16 %v772
    %v1285 = vunpack.c.l.b16 %v773
    %v1286 = vunpack.c.l.b16 %v774
    %v1287 = vunpack.c.l.b16 %v775
    %v1288 = vunpack.c.l.b16 %v776
    %v1289 = vunpack.c.l.b16 %v777
    %v1290 = vunpack.c.l.b16 %v778
    %v1291 = vunpack.c.l.b16 %v779
    %v1292 = vunpack.c.l.b16 %v780
    %v1293 = vunpack.c.l.b16 %v781
    %v1294 = vunpack.c.l.b16 %v782
    %v1295 = vunpack.c.l.b16 %v783
    %v1296 = vunpack.c.l.b16 %v784
    %v1297 = vunpack.c.l.b16 %v785
    %v1298 = vunpack.c.l.b16 %v786
    %v1299 = vunpack.c.l.b16 %v787
    %v1300 = vunpack.c.l.b16 %v788
    %v1301 = vunpack.c.l.b16 %v789
    %v1302 = vunpack.c.l.b16 %v790
    %v1303 = vunpack.c.l.b16 %v791
    %v1304 = vunpack.c.l.b16 %v792
    %v1305 = vunpack.c.l.b16 %v793
    %v1306 = vunpack.c.l.b16 %v794
    %v1307 = vunpack.c.l.b16 %v795
    %v1308 = vunpack.c.l.b16 %v796
    %v1309 = vunpack.c.l.b16 %v797
    %v1310 = vunpack.c.l.b16 %v798
    %v1311 = vunpack.c.l.b16 %v799
    %v1312 = vunpack.c.l.b16 %v800
    %v1313 = vunpack.c.l.b16 %v801
    %v1314 = vunpack.c.l.b16 %v802
    %v1315 = vunpack.c.l.b16 %v803
    %v1316 = vunpack.c.l.b16 %v804
    %v1317 = vunpack.c.l.b16 %v805
    %v1318 = vunpack.c.l.b16 %v806
    %v1319 = vunpack.c.l.b16 %v807
    %v1320 = vunpack.c.l.b16 %v808
    %v1321 = vpack.c.b16 %v1066, %v1065
    %v1322 = vpack.c.b16 %v1068, %v1067
    %v1323 = vpack.c.b16 %v1070, %v1069
    %v1324 = vpack.c.b16 %v1072, %v1071
    %v1325 = vpack.c.b16 %v1074, %v1073
    %v1326 = vpack.c.b16 %v1076, %v1075
    %v1327 = vpack.c.b16 %v1078, %v1077
    %v1328 = vpack.c.b16 %v1080, %v1079
    %v1329 = vpack.c.b16 %v1082, %v1081
    %v1330 = vpack.c.b16 %v1084, %v1083
    %v1331 = vpack.c.b16 %v1086, %v1085
    %v1332 = vpack.c.b16 %v1088, %v1087
    %v1333 = vpack.c.b16 %v1090, %v1089
    %v1334 = vpack.c.b16 %v1092, %v1091
    %v1335 = vpack.c.b16 %v1094, %v1093
    %v1336 = vpack.c.b16 %v1096, %v1095
    %v1337 = vpack.c.b16 %v1098, %v1097
    %v1338 = vpack.c.b16 %v1100, %v1099
    %v1339 = vpack.c.b16 %v1102, %v1101
    %v1340 = vpack.c.b16 %v1104, %v1103
    %v1341 = vpack.c.b16 %v1106, %v1105
    %v1342 = vpack.c.b16 %v1108, %v1107
    %v1343 = vpack.c.b16 %v1110, %v1109
    %v1344 = vpack.c.b16 %v1112, %v1111
    %v1345 = vpack.c.b16 %v1114, %v1113
    %v1346 = vpack.c.b16 %v1116, %v1115
    %v1347 = vpack.c.b16 %v1118, %v1117
    %v1348 = vpack.c.b16 %v1120, %v1119
    %v1349 = vpack.c.b16 %v1122, %v1121
    %v1350 = vpack.c.b16 %v1124, %v1123
    %v1351 = vpack.c.b16 %v1126, %v1125
    %v1352 = vpack.c.b16 %v1128, %v1127
    %v1353 = vpack.c.b16 %v1130, %v1129
    %v1354 = vpack.c.b16 %v1132, %v1131
    %v1355 = vpack.c.b16 %v1134, %v1133
    %v1356 = vpack.c.b16 %v1136, %v1135
    %v1357 = vpack.c.b16 %v1138, %v1137
    %v1358 = vpack.c.b16 %v1140, %v1139
    %v1359 = vpack.c.b16 %v1142, %v1141
    %v1360 = vpack.c.b16 %v1144, %v1143
    %v1361 = vpack.c.b16 %v1146, %v1145
    %v1362 = vpack.c.b16 %v1148, %v1147
    %v1363 = vpack.c.b16 %v1150, %v1149
    %v1364 = vpack.c.b16 %v1152, %v1151
    %v1365 = vpack.c.b16 %v1154, %v1153
    %v1366 = vpack.c.b16 %v1156, %v1155
    %v1367 = vpack.c.b16 %v1158, %v1157
    %v1368 = vpack.c.b16 %v1160, %v1159
    %v1369 = vpack.c.b16 %v1162, %v1161
    %v1370 = vpack.c.b16 %v1164, %v1163
    %v1371 = vpack.c.b16 %v1166, %v1165
    %v1372 = vpack.c.b16 %v1168, %v1167
    %v1373 = vpack.c.b16 %v1170, %v1169
    %v1374 = vpack.c.b16 %v1172, %v1171
    %v1375 = vpack.c.b16 %v1174, %v1173
    %v1376 = vpack.c.b16 %v1176, %v1175
    %v1377 = vpack.c.b16 %v1178, %v1177
    %v1378 = vpack.c.b16 %v1180, %v1179
    %v1379 = vpack.c.b16 %v1182, %v1181
    %v1380 = vpack.c.b16 %v1184, %v1183
    %v1381 = vpack.c.b16 %v1186, %v1185
    %v1382 = vpack.c.b16 %v1188, %v1187
    %v1383 = vpack.c.b16 %v1190, %v1189
    %v1384 = vpack.c.b16 %v1192, %v1191
    %v1385 = vpack.c.b16 %v1194, %v1193
    %v1386 = vpack.c.b16 %v1196, %v1195
    %v1387 = vpack.c.b16 %v1198, %v1197
    %v1388 = vpack.c.b16 %v1200, %v1199
    %v1389 = vpack.c.b16 %v1202, %v1201
    %v1390 = vpack.c.b16 %v1204, %v1203
    %v1391 = vpack.c.b16 %v1206, %v1205
    %v1392 = vpack.c.b16 %v1208, %v1207
    %v1393 = vpack.c.b16 %v1210, %v1209
    %v1394 = vpack.c.b16 %v1212, %v1211
    %v1395 = vpack.c.b16 %v1214, %v1213
    %v1396 = vpack.c.b16 %v1216, %v1215
    %v1397 = vpack.c.b16 %v1218, %v1217
    %v1398 = vpack.c.b16 %v1220, %v1219
    %v1399 = vpack.c.b16 %v1222, %v1221
    %v1400 = vpack.c.b16 %v1224, %v1223
    %v1401 = vpack.c.b16 %v1226, %v1225
    %v1402 = vpack.c.b16 %v1228, %v1227
    %v1403 = vpack.c.b16 %v1230, %v1229
    %v1404 = vpack.c.b16 %v1232, %v1231
    %v1405 = vpack.c.b16 %v1234, %v1233
    %v1406 = vpack.c.b16 %v1236, %v1235
    %v1407 = vpack.c.b16 %v1238, %v1237
    %v1408 = vpack.c.b16 %v1240, %v1239
    %v1409 = vpack.c.b16 %v1242, %v1241
    %v1410 = vpack.c.b16 %v1244, %v1243
    %v1411 = vpack.c.b16 %v1246, %v1245
    %v1412 = vpack.c.b16 %v1248, %v1247
    %v1413 = vpack.c.b16 %v1250, %v1249
    %v1414 = vpack.c.b16 %v1252, %v1251
    %v1415 = vpack.c.b16 %v1254, %v1253
    %v1416 = vpack.c.b16 %v1256, %v1255
    %v1417 = vpack.c.b16 %v1258, %v1257
    %v1418 = vpack.c.b16 %v1260, %v1259
    %v1419 = vpack.c.b16 %v1262, %v1261
    %v1420 = vpack.c.b16 %v1264, %v1263
    %v1421 = vpack.c.b16 %v1266, %v1265
    %v1422 = vpack.c.b16 %v1268, %v1267
    %v1423 = vpack.c.b16 %v1270, %v1269
    %v1424 = vpack.c.b16 %v1272, %v1271
    %v1425 = vpack.c.b16 %v1274, %v1273
    %v1426 = vpack.c.b16 %v1276, %v1275
    %v1427 = vpack.c.b16 %v1278, %v1277
    %v1428 = vpack.c.b16 %v1280, %v1279
    %v1429 = vpack.c.b16 %v1282, %v1281
    %v1430 = vpack.c.b16 %v1284, %v1283
    %v1431 = vpack.c.b16 %v1286, %v1285
    %v1432 = vpack.c.b16 %v1288, %v1287
    %v1433 = vpack.c.b16 %v1290, %v1289
    %v1434 = vpack.c.b16 %v1292, %v1291
    %v1435 = vpack.c.b16 %v1294, %v1293
    %v1436 = vpack.c.b16 %v1296, %v1295
    %v1437 = vpack.c.b16 %v1298, %v1297
    %v1438 = vpack.c.b16 %v1300, %v1299
    %v1439 = vpack.c.b16 %v1302, %v1301
    %v1440 = vpack.c.b16 %v1304, %v1303
    %v1441 = vpack.c.b16 %v1306, %v1305
    %v1442 = vpack.c.b16 %v1308, %v1307
    %v1443 = vpack.c.b16 %v1310, %v1309
    %v1444 = vpack.c.b16 %v1312, %v1311
    %v1445 = vpack.c.b16 %v1314, %v1313
    %v1446 = vpack.c.b16 %v1316, %v1315
    %v1447 = vpack.c.b16 %v1318, %v1317
    %v1448 = vpack.c.b16 %v1320, %v1319
    %1577 = vmatpush.bf16.msra.mxu0 %v1328
    %1578 = vmatpush.bf16.msra.mxu0 %v1327
    %1579 = vmatpush.bf16.msra.mxu0 %v1326
    %1580 = vmatpush.bf16.msra.mxu0 %v1325
    %1581 = vmatpush.bf16.msra.mxu0 %v1324
    %1582 = vmatpush.bf16.msra.mxu0 %v1323
    %1583 = vmatpush.bf16.msra.mxu0 %v1322
    %1584 = vmatpush.bf16.msra.mxu0 %v1321
    %1585 = vmatmul.bf16.gmra.mxu0 %v537
    %v1586 = vpop.f32.mrf.mxu0
    %v1587 = vadd.f32 0.0, %v1586
    %v1588 = vpop.f32.mrf.mxu0
    %v1589 = vadd.f32 0.0, %v1588
    %1590 = vdwg.mxu0
    %1591 = vmatpush.bf16.msra.mxu0 %v1336
    %1592 = vmatpush.bf16.msra.mxu0 %v1335
    %1593 = vmatpush.bf16.msra.mxu0 %v1334
    %1594 = vmatpush.bf16.msra.mxu0 %v1333
    %1595 = vmatpush.bf16.msra.mxu0 %v1332
    %1596 = vmatpush.bf16.msra.mxu0 %v1331
    %1597 = vmatpush.bf16.msra.mxu0 %v1330
    %1598 = vmatpush.bf16.msra.mxu0 %v1329
    %1599 = vmatmul.bf16.gmra.mxu0 %v538
    %v1600 = vpop.f32.mrf.mxu0
    %v1601 = vadd.f32 %v1587, %v1600
    %v1602 = vpop.f32.mrf.mxu0
    %v1603 = vadd.f32 %v1589, %v1602
    %1604 = vdwg.mxu0
    %1605 = vmatpush.bf16.msra.mxu0 %v1344
    %1606 = vmatpush.bf16.msra.mxu0 %v1343
    %1607 = vmatpush.bf16.msra.mxu0 %v1342
    %1608 = vmatpush.bf16.msra.mxu0 %v1341
    %1609 = vmatpush.bf16.msra.mxu0 %v1340
    %1610 = vmatpush.bf16.msra.mxu0 %v1339
    %1611 = vmatpush.bf16.msra.mxu0 %v1338
    %1612 = vmatpush.bf16.msra.mxu0 %v1337
    %1613 = vmatmul.bf16.gmra.mxu0 %v539
    %v1614 = vpop.f32.mrf.mxu0
    %v1615 = vadd.f32 %v1601, %v1614
    %v1616 = vpop.f32.mrf.mxu0
    %v1617 = vadd.f32 %v1603, %v1616
    %1618 = vdwg.mxu0
    %1619 = vmatpush.bf16.msra.mxu0 %v1352
    %1620 = vmatpush.bf16.msra.mxu0 %v1351
    %1621 = vmatpush.bf16.msra.mxu0 %v1350
    %1622 = vmatpush.bf16.msra.mxu0 %v1349
    %1623 = vmatpush.bf16.msra.mxu0 %v1348
    %1624 = vmatpush.bf16.msra.mxu0 %v1347
    %1625 = vmatpush.bf16.msra.mxu0 %v1346
    %1626 = vmatpush.bf16.msra.mxu0 %v1345
    %1627 = vmatmul.bf16.gmra.mxu0 %v540
    %v1628 = vpop.f32.mrf.mxu0
    %v1629 = vadd.f32 %v1615, %v1628
    %v1630 = vpop.f32.mrf.mxu0
    %v1631 = vadd.f32 %v1617, %v1630
    %1632 = vdwg.mxu0
    %1633 = vmatpush.bf16.msra.mxu0 %v1360
    %1634 = vmatpush.bf16.msra.mxu0 %v1359
    %1635 = vmatpush.bf16.msra.mxu0 %v1358
    %1636 = vmatpush.bf16.msra.mxu0 %v1357
    %1637 = vmatpush.bf16.msra.mxu0 %v1356
    %1638 = vmatpush.bf16.msra.mxu0 %v1355
    %1639 = vmatpush.bf16.msra.mxu0 %v1354
    %1640 = vmatpush.bf16.msra.mxu0 %v1353
    %1641 = vmatmul.bf16.gmra.mxu0 %v541
    %v1642 = vpop.f32.mrf.mxu0
    %v1643 = vadd.f32 %v1629, %v1642
    %v1644 = vpop.f32.mrf.mxu0
    %v1645 = vadd.f32 %v1631, %v1644
    %1646 = vdwg.mxu0
    %1647 = vmatpush.bf16.msra.mxu0 %v1368
    %1648 = vmatpush.bf16.msra.mxu0 %v1367
    %1649 = vmatpush.bf16.msra.mxu0 %v1366
    %1650 = vmatpush.bf16.msra.mxu0 %v1365
    %1651 = vmatpush.bf16.msra.mxu0 %v1364
    %1652 = vmatpush.bf16.msra.mxu0 %v1363
    %1653 = vmatpush.bf16.msra.mxu0 %v1362
    %1654 = vmatpush.bf16.msra.mxu0 %v1361
    %1655 = vmatmul.bf16.gmra.mxu0 %v542
    %v1656 = vpop.f32.mrf.mxu0
    %v1657 = vadd.f32 %v1643, %v1656
    %v1658 = vpop.f32.mrf.mxu0
    %v1659 = vadd.f32 %v1645, %v1658
    %1660 = vdwg.mxu0
    %1661 = vmatpush.bf16.msra.mxu0 %v1376
    %1662 = vmatpush.bf16.msra.mxu0 %v1375
    %1663 = vmatpush.bf16.msra.mxu0 %v1374
    %1664 = vmatpush.bf16.msra.mxu0 %v1373
    %1665 = vmatpush.bf16.msra.mxu0 %v1372
    %1666 = vmatpush.bf16.msra.mxu0 %v1371
    %1667 = vmatpush.bf16.msra.mxu0 %v1370
    %1668 = vmatpush.bf16.msra.mxu0 %v1369
    %1669 = vmatmul.bf16.gmra.mxu0 %v543
    %v1670 = vpop.f32.mrf.mxu0
    %v1671 = vadd.f32 %v1657, %v1670
    %v1672 = vpop.f32.mrf.mxu0
    %v1673 = vadd.f32 %v1659, %v1672
    %1674 = vdwg.mxu0
    %1675 = vmatpush.bf16.msra.mxu0 %v1384
    %1676 = vmatpush.bf16.msra.mxu0 %v1383
    %1677 = vmatpush.bf16.msra.mxu0 %v1382
    %1678 = vmatpush.bf16.msra.mxu0 %v1381
    %1679 = vmatpush.bf16.msra.mxu0 %v1380
    %1680 = vmatpush.bf16.msra.mxu0 %v1379
    %1681 = vmatpush.bf16.msra.mxu0 %v1378
    %1682 = vmatpush.bf16.msra.mxu0 %v1377
    %1683 = vmatmul.bf16.gmra.mxu0 %v544
    %v1684 = vpop.f32.mrf.mxu0
    %v1685 = vadd.f32 %v1671, %v1684
    %v1686 = vpop.f32.mrf.mxu0
    %v1687 = vadd.f32 %v1673, %v1686
    %1688 = vdwg.mxu0
    %1689 = vmatpush.bf16.msra.mxu0 %v1392
    %1690 = vmatpush.bf16.msra.mxu0 %v1391
    %1691 = vmatpush.bf16.msra.mxu0 %v1390
    %1692 = vmatpush.bf16.msra.mxu0 %v1389
    %1693 = vmatpush.bf16.msra.mxu0 %v1388
    %1694 = vmatpush.bf16.msra.mxu0 %v1387
    %1695 = vmatpush.bf16.msra.mxu0 %v1386
    %1696 = vmatpush.bf16.msra.mxu0 %v1385
    %1697 = vmatmul.bf16.gmra.mxu0 %v545
    %v1698 = vpop.f32.mrf.mxu0
    %v1699 = vadd.f32 %v1685, %v1698
    %v1700 = vpop.f32.mrf.mxu0
    %v1701 = vadd.f32 %v1687, %v1700
    %1702 = vdwg.mxu0
    %1703 = vmatpush.bf16.msra.mxu0 %v1400
    %1704 = vmatpush.bf16.msra.mxu0 %v1399
    %1705 = vmatpush.bf16.msra.mxu0 %v1398
    %1706 = vmatpush.bf16.msra.mxu0 %v1397
    %1707 = vmatpush.bf16.msra.mxu0 %v1396
    %1708 = vmatpush.bf16.msra.mxu0 %v1395
    %1709 = vmatpush.bf16.msra.mxu0 %v1394
    %1710 = vmatpush.bf16.msra.mxu0 %v1393
    %1711 = vmatmul.bf16.gmra.mxu0 %v546
    %v1712 = vpop.f32.mrf.mxu0
    %v1713 = vadd.f32 %v1699, %v1712
    %v1714 = vpop.f32.mrf.mxu0
    %v1715 = vadd.f32 %v1701, %v1714
    %1716 = vdwg.mxu0
    %1717 = vmatpush.bf16.msra.mxu0 %v1408
    %1718 = vmatpush.bf16.msra.mxu0 %v1407
    %1719 = vmatpush.bf16.msra.mxu0 %v1406
    %1720 = vmatpush.bf16.msra.mxu0 %v1405
    %1721 = vmatpush.bf16.msra.mxu0 %v1404
    %1722 = vmatpush.bf16.msra.mxu0 %v1403
    %1723 = vmatpush.bf16.msra.mxu0 %v1402
    %1724 = vmatpush.bf16.msra.mxu0 %v1401
    %1725 = vmatmul.bf16.gmra.mxu0 %v547
    %v1726 = vpop.f32.mrf.mxu0
    %v1727 = vadd.f32 %v1713, %v1726
    %v1728 = vpop.f32.mrf.mxu0
    %v1729 = vadd.f32 %v1715, %v1728
    %1730 = vdwg.mxu0
    %1731 = vmatpush.bf16.msra.mxu0 %v1416
    %1732 = vmatpush.bf16.msra.mxu0 %v1415
    %1733 = vmatpush.bf16.msra.mxu0 %v1414
    %1734 = vmatpush.bf16.msra.mxu0 %v1413
    %1735 = vmatpush.bf16.msra.mxu0 %v1412
    %1736 = vmatpush.bf16.msra.mxu0 %v1411
    %1737 = vmatpush.bf16.msra.mxu0 %v1410
    %1738 = vmatpush.bf16.msra.mxu0 %v1409
    %1739 = vmatmul.bf16.gmra.mxu0 %v548
    %v1740 = vpop.f32.mrf.mxu0
    %v1741 = vadd.f32 %v1727, %v1740
    %v1742 = vpop.f32.mrf.mxu0
    %v1743 = vadd.f32 %v1729, %v1742
    %1744 = vdwg.mxu0
    %1745 = vmatpush.bf16.msra.mxu0 %v1424
    %1746 = vmatpush.bf16.msra.mxu0 %v1423
    %1747 = vmatpush.bf16.msra.mxu0 %v1422
    %1748 = vmatpush.bf16.msra.mxu0 %v1421
    %1749 = vmatpush.bf16.msra.mxu0 %v1420
    %1750 = vmatpush.bf16.msra.mxu0 %v1419
    %1751 = vmatpush.bf16.msra.mxu0 %v1418
    %1752 = vmatpush.bf16.msra.mxu0 %v1417
    %1753 = vmatmul.bf16.gmra.mxu0 %v549
    %v1754 = vpop.f32.mrf.mxu0
    %v1755 = vadd.f32 %v1741, %v1754
    %v1756 = vpop.f32.mrf.mxu0
    %v1757 = vadd.f32 %v1743, %v1756
    %1758 = vdwg.mxu0
    %1759 = vmatpush.bf16.msra.mxu0 %v1432
    %1760 = vmatpush.bf16.msra.mxu0 %v1431
    %1761 = vmatpush.bf16.msra.mxu0 %v1430
    %1762 = vmatpush.bf16.msra.mxu0 %v1429
    %1763 = vmatpush.bf16.msra.mxu0 %v1428
    %1764 = vmatpush.bf16.msra.mxu0 %v1427
    %1765 = vmatpush.bf16.msra.mxu0 %v1426
    %1766 = vmatpush.bf16.msra.mxu0 %v1425
    %1767 = vmatmul.bf16.gmra.mxu0 %v550
    %v1768 = vpop.f32.mrf.mxu0
    %v1769 = vadd.f32 %v1755, %v1768
    %v1770 = vpop.f32.mrf.mxu0
    %v1771 = vadd.f32 %v1757, %v1770
    %1772 = vdwg.mxu0
    %1773 = vmatpush.bf16.msra.mxu0 %v1440
    %1774 = vmatpush.bf16.msra.mxu0 %v1439
    %1775 = vmatpush.bf16.msra.mxu0 %v1438
    %1776 = vmatpush.bf16.msra.mxu0 %v1437
    %1777 = vmatpush.bf16.msra.mxu0 %v1436
    %1778 = vmatpush.bf16.msra.mxu0 %v1435
    %1779 = vmatpush.bf16.msra.mxu0 %v1434
    %1780 = vmatpush.bf16.msra.mxu0 %v1433
    %1781 = vmatmul.bf16.gmra.mxu0 %v551
    %v1782 = vpop.f32.mrf.mxu0
    %v1783 = vadd.f32 %v1769, %v1782
    %v1784 = vpop.f32.mrf.mxu0
    %v1785 = vadd.f32 %v1771, %v1784
    %1786 = vdwg.mxu0
    %1787 = vmatpush.bf16.msra.mxu0 %v1448
    %1788 = vmatpush.bf16.msra.mxu0 %v1447
    %1789 = vmatpush.bf16.msra.mxu0 %v1446
    %1790 = vmatpush.bf16.msra.mxu0 %v1445
    %1791 = vmatpush.bf16.msra.mxu0 %v1444
    %1792 = vmatpush.bf16.msra.mxu0 %v1443
    %1793 = vmatpush.bf16.msra.mxu0 %v1442
    %1794 = vmatpush.bf16.msra.mxu0 %v1441
    %1795 = vmatmul.bf16.gmra.mxu0 %v552
    %v1796 = vpop.f32.mrf.mxu0
    %v1797 = vadd.f32 %v1783, %v1796
    %v1798 = vpop.f32.mrf.mxu0
    %v1799 = vadd.f32 %v1785, %v1798
    %1800 = vdwg.mxu0
    %v1801 = vld [vmem:[%s5] sm:$0xff]
    %v1802 = vld [vmem:[%s5 + $0x8] sm:$0xff]
    %v1803 = vadd.f32 %v1801, %v1797
    %v1804 = vadd.f32 %v1802, %v1799
    %v1805 = vld [vmem:[%s4] sm:$0x1]
    %v1807 = vperm.slane %v1805, 0
    %v1809 = vadd.f32 %v1803, %v1807
    %v1810 = vadd.f32 %v1804, %v1807
    %v1811 = vsel %vm277, %v1809, 0.0
    %1812 = vadd.xlane.f32.xlu0 %v1811
    %v1813 = vpop.xlane.xlu0 %1812
    %v1814 = vsel %vm277, %v1810, 0.0
    %1815 = vadd.xlane.f32.xlu0 %v1814
    %v1816 = vpop.xlane.xlu0 %1815
    %v1817 = vrcp.pop 32.0
    %v1818 = vmul.f32 32.0, %v1817
    %v1819 = vsub.f32 1.0, %v1818
    %v1820 = vmul.f32 %v1817, %v1819
    %v1821 = vadd.f32 %v1817, %v1820
    %vm1822 = vweird.f32 %v1817
    %v1823 = vsel %vm1822, %v1817, %v1821
    %v1824 = vmul.f32 %v1813, %v1823
    %v1825 = vmul.f32 %v1816, %v1823
    %v1826 = vsub.f32 %v1809, %v1824
    %v1827 = vsub.f32 %v1810, %v1825
    %v1828 = vmul.f32 %v1826, %v1826
    %v1829 = vmul.f32 %v1827, %v1827
    %v1830 = vsel %vm277, %v1828, 0.0
    %1831 = vadd.xlane.f32.xlu0 %v1830
    %v1832 = vpop.xlane.xlu0 %1831
    %v1833 = vsel %vm277, %v1829, 0.0
    %1834 = vadd.xlane.f32.xlu0 %v1833
    %v1835 = vpop.xlane.xlu0 %1834
    %v1836 = vmul.f32 %v1832, %v1823
    %v1837 = vmul.f32 %v1835, %v1823
    %v1838 = vadd.f32 %v1836, 1e-05
    %v1839 = vadd.f32 %v1837, 1e-05
    %v1840 = vrsqrt.pop %v1838
    %v1841 = vmul.f32 %v1840, %v1838
    %v1842 = vmul.f32 %v1841, %v1840
    %v1843 = vmul.f32 0.5, %v1842
    %v1844 = vsub.f32 1.5, %v1843
    %v1845 = vmul.f32 %v1840, %v1844
    %vm1846 = vweird.f32 %v1838
    %vm1847 = vweird.f32 %v1840
    %vm1848 = vmor %vm1846, %vm1847
    %v1849 = vsel %vm1848, %v1840, %v1845
    %v1850 = vrsqrt.pop %v1839
    %v1851 = vmul.f32 %v1850, %v1839
    %v1852 = vmul.f32 %v1851, %v1850
    %v1853 = vmul.f32 0.5, %v1852
    %v1854 = vsub.f32 1.5, %v1853
    %v1855 = vmul.f32 %v1850, %v1854
    %vm1856 = vweird.f32 %v1839
    %vm1857 = vweird.f32 %v1850
    %vm1858 = vmor %vm1856, %vm1857
    %v1859 = vsel %vm1858, %v1850, %v1855
    %v1860 = vmul.f32 %v1826, %v1849
    %v1861 = vmul.f32 %v1827, %v1859
    %v1862 = vld [vmem:[%s6] sm:$0x1]
    %v1864 = vperm.slane %v1862, 0
    %v1866 = vmul.f32 %v1860, %v1864
    %v1867 = vmul.f32 %v1861, %v1864
    %v1868 = vld [vmem:[%s7] sm:$0x1]
    %v1870 = vperm.slane %v1868, 0
    %v1872 = vadd.f32 %v1866, %v1870
    %v1873 = vadd.f32 %v1867, %v1870
    %1874 = vst.msk [vmem:[%s8] sm:$0xff] %vm277, %v1872
    %1875 = vst.msk [vmem:[%s8 + $0x8] sm:$0xff] %vm277, %v1873
    // Predicated region
    $region38: #{_lambda_.51} parent=1 // pred_check
      _
    $region39: #{_lambda_.51} parent=1 // pred_check_branch
      %1877 = sbr.rel (0) target = $region41
    $region40: #{_lambda_.51} parent=1 // pred_region
      _
    $region41: #{_lambda_.51} parent=1 // pred_fallthru
      _
    // Predicated region
    $region42: #{_lambda_.51} parent=1 // pred_check
      _
    $region43: #{_lambda_.51} parent=1 // pred_check_branch
      %1879 = sbr.rel (0) target = $region45
    $region44: #{_lambda_.51} parent=1 // pred_region
      _
    $region45: #{_lambda_.51} parent=1 // pred_fallthru
      _
    %1880 = vsyncpa [#allocation3], 1

// kernel: _lambda_.30
$region0: #{_lambda_.30}
  #allocation0 [shape = 'u32[]', space=smem, size = 0x4, offset = 0x4, fixed_abs, tag = 'smem constant byte address 0x4 - core index']
  #allocation1 [shape = 'u32[72,128]{1,0:T(1,128)}', space=vmem, size = 0x9000, scoped, tag = 'internal scratch']
  %s0 = inlined_call_operand.vmem [shape: f32[16,32], index: 0, kind: input, shape index: {}, may-alias: {0,5}]
  %s1 = inlined_call_operand.hbm [shape: bf16[32,2048], index: 1, kind: input, shape index: {}]
  %s2 = inlined_call_operand.vmem [shape: f32[1,2048], index: 2, kind: input, shape index: {}]
  %s3 = inlined_call_operand.hbm [shape: bf16[2048,32], index: 3, kind: input, shape index: {}]
  %s4 = inlined_call_operand.vmem [shape: f32[1,32], index: 4, kind: input, shape index: {}]
  %s5 = inlined_call_operand.vmem [shape: f32[16,32], index: 5, kind: input, shape index: {}, may-alias: {0,5}]
  %s6 = inlined_call_operand.vmem [shape: f32[1,32], index: 6, kind: input, shape index: {}]
  %s7 = inlined_call_operand.vmem [shape: f32[1,32], index: 7, kind: input, shape index: {}]
  %s8 = inlined_call_operand.vmem [shape: f32[16,32], index: 8, kind: output, shape index: {}]
  %s9 = sld [smem:[#allocation0]]
  $region50: #{_lambda_.30} parent=0
    _
  %s11 = ssub.s32 1, %s9
  %s12 = scalar_select 0, %s11, %s9
  $region1: #{_lambda_.30} parent=0
    #allocation2 [shape = 'u8[131072]{0}', space=vmem, size = 0x20000, scoped, tag = 'input window, operand 1, single buffered']
    #allocation3 [shape = 's32[1]{0}', space=sflag, size = 0x4, scoped, tag = 'scoped memory for _lambda_.30']
    #allocation4 [shape = 'u8[524288]{0}', space=vmem, size = 0x80000, scoped, tag = 'input window, operand 3, single buffered']
    #allocation5 [shape = 's32[1]{0}', space=sflag, size = 0x4, scoped, tag = 'scoped memory for _lambda_.30']
    %13 = vsyncpa [#allocation3], 0
    %14 = vsyncpa [#allocation5], 0
    // Predicated region
    $region2: #{_lambda_.30} parent=1 // pred_check
      _
    $region3: #{_lambda_.30} parent=1 // pred_check_branch
      %16 = sbr.rel (0) target = $region5
    $region4: #{_lambda_.30} parent=1 // pred_region
      _
    $region5: #{_lambda_.30} parent=1 // pred_fallthru
      _
    // Predicated region
    $region6: #{_lambda_.30} parent=1 // pred_check
      _
    $region7: #{_lambda_.30} parent=1 // pred_check_branch
      %18 = sbr.rel (0) target = $region9
    $region8: #{_lambda_.30} parent=1 // pred_region
      %20 = vsyncadd [#allocation3], 0
      %s21 = sshll.u32 %s1, 4
      %s22 = int_to_ptr.hbm [resolvable:$true] %s21
      %s23 = sshll.u32 [#allocation2], 4
      %s24 = int_to_ptr.vmem [resolvable:$true] %s23
      %29 = dma.hbm_to_vmem [thread:$0]  %s22, 4096, %s24, [#allocation3], 1024, 1024, 64
    $region9: #{_lambda_.30} parent=1 // pred_fallthru
      _
    // Predicated region
    $region10: #{_lambda_.30} parent=1 // pred_check
      _
    $region11: #{_lambda_.30} parent=1 // pred_check_branch
      %31 = sbr.rel (0) target = $region13
    $region12: #{_lambda_.30} parent=1 // pred_region
      _
    $region13: #{_lambda_.30} parent=1 // pred_fallthru
      _
    // Predicated region
    $region14: #{_lambda_.30} parent=1 // pred_check
      _
    $region15: #{_lambda_.30} parent=1 // pred_check_branch
      %33 = sbr.rel (0) target = $region17
    $region16: #{_lambda_.30} parent=1 // pred_region
      %35 = vsyncadd [#allocation5], 0
      %s36 = sshll.u32 %s3, 4
      %s37 = int_to_ptr.hbm [resolvable:$true] %s36
      %s38 = sshll.u32 [#allocation4], 4
      %s39 = int_to_ptr.vmem [resolvable:$true] %s38
      %44 = dma.hbm_to_vmem [thread:$0]  %s37, 16384, %s39, [#allocation5], 64, 64, 4
    $region17: #{_lambda_.30} parent=1 // pred_fallthru
      _
    // Predicated region
    $region18: #{_lambda_.30} parent=1 // pred_check
      _
    $region19: #{_lambda_.30} parent=1 // pred_check_branch
      %46 = sbr.rel (0) target = $region21
    $region20: #{_lambda_.30} parent=1 // pred_region
      _
    $region21: #{_lambda_.30} parent=1 // pred_fallthru
      _
    // Predicated region
    $region22: #{_lambda_.30} parent=1 // pred_check
      _
    $region23: #{_lambda_.30} parent=1 // pred_check_branch
      %48 = sbr.rel (0) target = $region25
    $region24: #{_lambda_.30} parent=1 // pred_region
      _
    $region25: #{_lambda_.30} parent=1 // pred_fallthru
      _
    // Predicated region
    $region26: #{_lambda_.30} parent=1 // pred_check
      _
    $region27: #{_lambda_.30} parent=1 // pred_check_branch
      %50 = sbr.rel (0) target = $region29
    $region28: #{_lambda_.30} parent=1 // pred_region
      _
    $region29: #{_lambda_.30} parent=1 // pred_fallthru
      _
    // Predicated region
    $region30: #{_lambda_.30} parent=1 // pred_check
      _
    $region31: #{_lambda_.30} parent=1 // pred_check_branch
      %52 = sbr.rel (0) target = $region33
    $region32: #{_lambda_.30} parent=1 // pred_region
      _
    $region33: #{_lambda_.30} parent=1 // pred_fallthru
      _
    // Predicated region
    $region34: #{_lambda_.30} parent=1 // pred_check
      _
    $region35: #{_lambda_.30} parent=1 // pred_check_branch
      %54 = sbr.rel (0) target = $region37
    $region36: #{_lambda_.30} parent=1 // pred_region
      %56 = dma.done [#allocation3], 4096
    $region37: #{_lambda_.30} parent=1 // pred_fallthru
      _
    // Predicated region
    $region38: #{_lambda_.30} parent=1 // pred_check
      _
    $region39: #{_lambda_.30} parent=1 // pred_check_branch
      %58 = sbr.rel (0) target = $region41
    $region40: #{_lambda_.30} parent=1 // pred_region
      %60 = dma.done [#allocation5], 16384
    $region41: #{_lambda_.30} parent=1 // pred_fallthru
      _
    %v62 = vld [vmem:[%s0] sm:$0xff]
    %v63 = vld [vmem:[%s0 + $0x8] sm:$0xff]
    %v64 = vpack.c.bf16 %v63, %v62
    %v65 = vld [vmem:[#allocation2] sm:$0xff]
    %v66 = vld [vmem:[#allocation2 + $0x8] sm:$0xff]
    %v67 = vld [vmem:[#allocation2 + $0x10] sm:$0xff]
    %v68 = vld [vmem:[#allocation2 + $0x18] sm:$0xff]
    %v69 = vld [vmem:[#allocation2 + $0x20] sm:$0xff]
    %v70 = vld [vmem:[#allocation2 + $0x28] sm:$0xff]
    %v71 = vld [vmem:[#allocation2 + $0x30] sm:$0xff]
    %v72 = vld [vmem:[#allocation2 + $0x38] sm:$0xff]
    %v73 = vld [vmem:[#allocation2 + $0x40] sm:$0xff]
    %v74 = vld [vmem:[#allocation2 + $0x48] sm:$0xff]
    %v75 = vld [vmem:[#allocation2 + $0x50] sm:$0xff]
    %v76 = vld [vmem:[#allocation2 + $0x58] sm:$0xff]
    %v77 = vld [vmem:[#allocation2 + $0x60] sm:$0xff]
    %v78 = vld [vmem:[#allocation2 + $0x68] sm:$0xff]
    %v79 = vld [vmem:[#allocation2 + $0x70] sm:$0xff]
    %v80 = vld [vmem:[#allocation2 + $0x78] sm:$0xff]
    %v81 = vld [vmem:[#allocation2 + $0x80] sm:$0xff]
    %v82 = vld [vmem:[#allocation2 + $0x88] sm:$0xff]
    %v83 = vld [vmem:[#allocation2 + $0x90] sm:$0xff]
    %v84 = vld [vmem:[#allocation2 + $0x98] sm:$0xff]
    %v85 = vld [vmem:[#allocation2 + $0xa0] sm:$0xff]
    %v86 = vld [vmem:[#allocation2 + $0xa8] sm:$0xff]
    %v87 = vld [vmem:[#allocation2 + $0xb0] sm:$0xff]
    %v88 = vld [vmem:[#allocation2 + $0xb8] sm:$0xff]
    %v89 = vld [vmem:[#allocation2 + $0xc0] sm:$0xff]
    %v90 = vld [vmem:[#allocation2 + $0xc8] sm:$0xff]
    %v91 = vld [vmem:[#allocation2 + $0xd0] sm:$0xff]
    %v92 = vld [vmem:[#allocation2 + $0xd8] sm:$0xff]
    %v93 = vld [vmem:[#allocation2 + $0xe0] sm:$0xff]
    %v94 = vld [vmem:[#allocation2 + $0xe8] sm:$0xff]
    %v95 = vld [vmem:[#allocation2 + $0xf0] sm:$0xff]
    %v96 = vld [vmem:[#allocation2 + $0xf8] sm:$0xff]
    %v97 = vld [vmem:[%s2] sm:$0xff]
    %v98 = vld [vmem:[%s2 + $0x8] sm:$0xff]
    %v101 = vperm.slane %v97, 0
    %v102 = vperm.slane %v97, 1
    %v103 = vperm.slane %v97, 2
    %v104 = vperm.slane %v97, 3
    %v105 = vperm.slane %v97, 4
    %v106 = vperm.slane %v97, 5
    %v107 = vperm.slane %v97, 6
    %v108 = vperm.slane %v97, 7
    %v109 = vperm.slane %v98, 0
    %v110 = vperm.slane %v98, 1
    %v111 = vperm.slane %v98, 2
    %v112 = vperm.slane %v98, 3
    %v113 = vperm.slane %v98, 4
    %v114 = vperm.slane %v98, 5
    %v115 = vperm.slane %v98, 6
    %v116 = vperm.slane %v98, 7
    %v165 = vunpack.c.l.b16 %v65
    %v166 = vunpack.c.h.b16 %v65
    %v167 = vunpack.c.l.b16 %v66
    %v168 = vunpack.c.h.b16 %v66
    %v169 = vunpack.c.l.b16 %v67
    %v170 = vunpack.c.h.b16 %v67
    %v171 = vunpack.c.l.b16 %v68
    %v172 = vunpack.c.h.b16 %v68
    %v173 = vunpack.c.l.b16 %v69
    %v174 = vunpack.c.h.b16 %v69
    %v175 = vunpack.c.l.b16 %v70
    %v176 = vunpack.c.h.b16 %v70
    %v177 = vunpack.c.l.b16 %v71
    %v178 = vunpack.c.h.b16 %v71
    %v179 = vunpack.c.l.b16 %v72
    %v180 = vunpack.c.h.b16 %v72
    %v181 = vunpack.c.l.b16 %v73
    %v182 = vunpack.c.h.b16 %v73
    %v183 = vunpack.c.l.b16 %v74
    %v184 = vunpack.c.h.b16 %v74
    %v185 = vunpack.c.l.b16 %v75
    %v186 = vunpack.c.h.b16 %v75
    %v187 = vunpack.c.l.b16 %v76
    %v188 = vunpack.c.h.b16 %v76
    %v189 = vunpack.c.l.b16 %v77
    %v190 = vunpack.c.h.b16 %v77
    %v191 = vunpack.c.l.b16 %v78
    %v192 = vunpack.c.h.b16 %v78
    %v193 = vunpack.c.l.b16 %v79
    %v194 = vunpack.c.h.b16 %v79
    %v195 = vunpack.c.l.b16 %v80
    %v196 = vunpack.c.h.b16 %v80
    %v197 = vunpack.c.l.b16 %v81
    %v198 = vunpack.c.h.b16 %v81
    %v199 = vunpack.c.l.b16 %v82
    %v200 = vunpack.c.h.b16 %v82
    %v201 = vunpack.c.l.b16 %v83
    %v202 = vunpack.c.h.b16 %v83
    %v203 = vunpack.c.l.b16 %v84
    %v204 = vunpack.c.h.b16 %v84
    %v205 = vunpack.c.l.b16 %v85
    %v206 = vunpack.c.h.b16 %v85
    %v207 = vunpack.c.l.b16 %v86
    %v208 = vunpack.c.h.b16 %v86
    %v209 = vunpack.c.l.b16 %v87
    %v210 = vunpack.c.h.b16 %v87
    %v211 = vunpack.c.l.b16 %v88
    %v212 = vunpack.c.h.b16 %v88
    %v213 = vunpack.c.l.b16 %v89
    %v214 = vunpack.c.h.b16 %v89
    %v215 = vunpack.c.l.b16 %v90
    %v216 = vunpack.c.h.b16 %v90
    %v217 = vunpack.c.l.b16 %v91
    %v218 = vunpack.c.h.b16 %v91
    %v219 = vunpack.c.l.b16 %v92
    %v220 = vunpack.c.h.b16 %v92
    %v221 = vunpack.c.l.b16 %v93
    %v222 = vunpack.c.h.b16 %v93
    %v223 = vunpack.c.l.b16 %v94
    %v224 = vunpack.c.h.b16 %v94
    %v225 = vunpack.c.l.b16 %v95
    %v226 = vunpack.c.h.b16 %v95
    %v227 = vunpack.c.l.b16 %v96
    %v228 = vunpack.c.h.b16 %v96
    %v229 = vpack.c.b16 %v181, %v165
    %v230 = vpack.c.b16 %v182, %v166
    %v231 = vpack.c.b16 %v183, %v167
    %v232 = vpack.c.b16 %v184, %v168
    %v233 = vpack.c.b16 %v185, %v169
    %v234 = vpack.c.b16 %v186, %v170
    %v235 = vpack.c.b16 %v187, %v171
    %v236 = vpack.c.b16 %v188, %v172
    %v237 = vpack.c.b16 %v189, %v173
    %v238 = vpack.c.b16 %v190, %v174
    %v239 = vpack.c.b16 %v191, %v175
    %v240 = vpack.c.b16 %v192, %v176
    %v241 = vpack.c.b16 %v193, %v177
    %v242 = vpack.c.b16 %v194, %v178
    %v243 = vpack.c.b16 %v195, %v179
    %v244 = vpack.c.b16 %v196, %v180
    %v245 = vpack.c.b16 %v213, %v197
    %v246 = vpack.c.b16 %v214, %v198
    %v247 = vpack.c.b16 %v215, %v199
    %v248 = vpack.c.b16 %v216, %v200
    %v249 = vpack.c.b16 %v217, %v201
    %v250 = vpack.c.b16 %v218, %v202
    %v251 = vpack.c.b16 %v219, %v203
    %v252 = vpack.c.b16 %v220, %v204
    %v253 = vpack.c.b16 %v221, %v205
    %v254 = vpack.c.b16 %v222, %v206
    %v255 = vpack.c.b16 %v223, %v207
    %v256 = vpack.c.b16 %v224, %v208
    %v257 = vpack.c.b16 %v225, %v209
    %v258 = vpack.c.b16 %v226, %v210
    %v259 = vpack.c.b16 %v227, %v211
    %v260 = vpack.c.b16 %v228, %v212
    %vm293 = vcmask 261120
    %v295 = vsel %vm293, %v64, 0
    %297 = vmatpush.bf16.msra.mxu0 0
    %298 = vmatpush.bf16.msra.mxu0 0
    %299 = vmatpush.bf16.msra.mxu0 0
    %300 = vmatpush.bf16.msra.mxu0 0
    %301 = vmatpush.bf16.msra.mxu0 0
    %302 = vmatpush.bf16.msra.mxu0 0
    %303 = vmatpush.bf16.msra.mxu0 %v245
    %304 = vmatpush.bf16.msra.mxu0 %v229
    %305 = vmatmul.bf16.gmra.mxu0 %v295
    %v306 = vpop.f32.mrf.mxu0
    %v307 = vadd.f32 %v101, %v306
    %v308 = vpop.f32.mrf.mxu0
    %v309 = vadd.f32 %v101, %v308
    %310 = vdwg.mxu0
    %311 = vmatpush.bf16.msra.mxu0 0
    %312 = vmatpush.bf16.msra.mxu0 0
    %313 = vmatpush.bf16.msra.mxu0 0
    %314 = vmatpush.bf16.msra.mxu0 0
    %315 = vmatpush.bf16.msra.mxu0 0
    %316 = vmatpush.bf16.msra.mxu0 0
    %317 = vmatpush.bf16.msra.mxu0 %v246
    %318 = vmatpush.bf16.msra.mxu0 %v230
    %319 = vmatmul.bf16.gmra.mxu0 %v295
    %v320 = vpop.f32.mrf.mxu0
    %v321 = vadd.f32 %v102, %v320
    %v322 = vpop.f32.mrf.mxu0
    %v323 = vadd.f32 %v102, %v322
    %324 = vdwg.mxu0
    %325 = vmatpush.bf16.msra.mxu0 0
    %326 = vmatpush.bf16.msra.mxu0 0
    %327 = vmatpush.bf16.msra.mxu0 0
    %328 = vmatpush.bf16.msra.mxu0 0
    %329 = vmatpush.bf16.msra.mxu0 0
    %330 = vmatpush.bf16.msra.mxu0 0
    %331 = vmatpush.bf16.msra.mxu0 %v247
    %332 = vmatpush.bf16.msra.mxu0 %v231
    %333 = vmatmul.bf16.gmra.mxu0 %v295
    %v334 = vpop.f32.mrf.mxu0
    %v335 = vadd.f32 %v103, %v334
    %v336 = vpop.f32.mrf.mxu0
    %v337 = vadd.f32 %v103, %v336
    %338 = vdwg.mxu0
    %339 = vmatpush.bf16.msra.mxu0 0
    %340 = vmatpush.bf16.msra.mxu0 0
    %341 = vmatpush.bf16.msra.mxu0 0
    %342 = vmatpush.bf16.msra.mxu0 0
    %343 = vmatpush.bf16.msra.mxu0 0
    %344 = vmatpush.bf16.msra.mxu0 0
    %345 = vmatpush.bf16.msra.mxu0 %v248
    %346 = vmatpush.bf16.msra.mxu0 %v232
    %347 = vmatmul.bf16.gmra.mxu0 %v295
    %v348 = vpop.f32.mrf.mxu0
    %v349 = vadd.f32 %v104, %v348
    %v350 = vpop.f32.mrf.mxu0
    %v351 = vadd.f32 %v104, %v350
    %352 = vdwg.mxu0
    %353 = vmatpush.bf16.msra.mxu0 0
    %354 = vmatpush.bf16.msra.mxu0 0
    %355 = vmatpush.bf16.msra.mxu0 0
    %356 = vmatpush.bf16.msra.mxu0 0
    %357 = vmatpush.bf16.msra.mxu0 0
    %358 = vmatpush.bf16.msra.mxu0 0
    %359 = vmatpush.bf16.msra.mxu0 %v249
    %360 = vmatpush.bf16.msra.mxu0 %v233
    %361 = vmatmul.bf16.gmra.mxu0 %v295
    %v362 = vpop.f32.mrf.mxu0
    %v363 = vadd.f32 %v105, %v362
    %v364 = vpop.f32.mrf.mxu0
    %v365 = vadd.f32 %v105, %v364
    %366 = vdwg.mxu0
    %367 = vmatpush.bf16.msra.mxu0 0
    %368 = vmatpush.bf16.msra.mxu0 0
    %369 = vmatpush.bf16.msra.mxu0 0
    %370 = vmatpush.bf16.msra.mxu0 0
    %371 = vmatpush.bf16.msra.mxu0 0
    %372 = vmatpush.bf16.msra.mxu0 0
    %373 = vmatpush.bf16.msra.mxu0 %v250
    %374 = vmatpush.bf16.msra.mxu0 %v234
    %375 = vmatmul.bf16.gmra.mxu0 %v295
    %v376 = vpop.f32.mrf.mxu0
    %v377 = vadd.f32 %v106, %v376
    %v378 = vpop.f32.mrf.mxu0
    %v379 = vadd.f32 %v106, %v378
    %380 = vdwg.mxu0
    %381 = vmatpush.bf16.msra.mxu0 0
    %382 = vmatpush.bf16.msra.mxu0 0
    %383 = vmatpush.bf16.msra.mxu0 0
    %384 = vmatpush.bf16.msra.mxu0 0
    %385 = vmatpush.bf16.msra.mxu0 0
    %386 = vmatpush.bf16.msra.mxu0 0
    %387 = vmatpush.bf16.msra.mxu0 %v251
    %388 = vmatpush.bf16.msra.mxu0 %v235
    %389 = vmatmul.bf16.gmra.mxu0 %v295
    %v390 = vpop.f32.mrf.mxu0
    %v391 = vadd.f32 %v107, %v390
    %v392 = vpop.f32.mrf.mxu0
    %v393 = vadd.f32 %v107, %v392
    %394 = vdwg.mxu0
    %395 = vmatpush.bf16.msra.mxu0 0
    %396 = vmatpush.bf16.msra.mxu0 0
    %397 = vmatpush.bf16.msra.mxu0 0
    %398 = vmatpush.bf16.msra.mxu0 0
    %399 = vmatpush.bf16.msra.mxu0 0
    %400 = vmatpush.bf16.msra.mxu0 0
    %401 = vmatpush.bf16.msra.mxu0 %v252
    %402 = vmatpush.bf16.msra.mxu0 %v236
    %403 = vmatmul.bf16.gmra.mxu0 %v295
    %v404 = vpop.f32.mrf.mxu0
    %v405 = vadd.f32 %v108, %v404
    %v406 = vpop.f32.mrf.mxu0
    %v407 = vadd.f32 %v108, %v406
    %408 = vdwg.mxu0
    %409 = vmatpush.bf16.msra.mxu0 0
    %410 = vmatpush.bf16.msra.mxu0 0
    %411 = vmatpush.bf16.msra.mxu0 0
    %412 = vmatpush.bf16.msra.mxu0 0
    %413 = vmatpush.bf16.msra.mxu0 0
    %414 = vmatpush.bf16.msra.mxu0 0
    %415 = vmatpush.bf16.msra.mxu0 %v253
    %416 = vmatpush.bf16.msra.mxu0 %v237
    %417 = vmatmul.bf16.gmra.mxu0 %v295
    %v418 = vpop.f32.mrf.mxu0
    %v419 = vadd.f32 %v109, %v418
    %v420 = vpop.f32.mrf.mxu0
    %v421 = vadd.f32 %v109, %v420
    %422 = vdwg.mxu0
    %423 = vmatpush.bf16.msra.mxu0 0
    %424 = vmatpush.bf16.msra.mxu0 0
    %425 = vmatpush.bf16.msra.mxu0 0
    %426 = vmatpush.bf16.msra.mxu0 0
    %427 = vmatpush.bf16.msra.mxu0 0
    %428 = vmatpush.bf16.msra.mxu0 0
    %429 = vmatpush.bf16.msra.mxu0 %v254
    %430 = vmatpush.bf16.msra.mxu0 %v238
    %431 = vmatmul.bf16.gmra.mxu0 %v295
    %v432 = vpop.f32.mrf.mxu0
    %v433 = vadd.f32 %v110, %v432
    %v434 = vpop.f32.mrf.mxu0
    %v435 = vadd.f32 %v110, %v434
    %436 = vdwg.mxu0
    %437 = vmatpush.bf16.msra.mxu0 0
    %438 = vmatpush.bf16.msra.mxu0 0
    %439 = vmatpush.bf16.msra.mxu0 0
    %440 = vmatpush.bf16.msra.mxu0 0
    %441 = vmatpush.bf16.msra.mxu0 0
    %442 = vmatpush.bf16.msra.mxu0 0
    %443 = vmatpush.bf16.msra.mxu0 %v255
    %444 = vmatpush.bf16.msra.mxu0 %v239
    %445 = vmatmul.bf16.gmra.mxu0 %v295
    %v446 = vpop.f32.mrf.mxu0
    %v447 = vadd.f32 %v111, %v446
    %v448 = vpop.f32.mrf.mxu0
    %v449 = vadd.f32 %v111, %v448
    %450 = vdwg.mxu0
    %451 = vmatpush.bf16.msra.mxu0 0
    %452 = vmatpush.bf16.msra.mxu0 0
    %453 = vmatpush.bf16.msra.mxu0 0
    %454 = vmatpush.bf16.msra.mxu0 0
    %455 = vmatpush.bf16.msra.mxu0 0
    %456 = vmatpush.bf16.msra.mxu0 0
    %457 = vmatpush.bf16.msra.mxu0 %v256
    %458 = vmatpush.bf16.msra.mxu0 %v240
    %459 = vmatmul.bf16.gmra.mxu0 %v295
    %v460 = vpop.f32.mrf.mxu0
    %v461 = vadd.f32 %v112, %v460
    %v462 = vpop.f32.mrf.mxu0
    %v463 = vadd.f32 %v112, %v462
    %464 = vdwg.mxu0
    %465 = vmatpush.bf16.msra.mxu0 0
    %466 = vmatpush.bf16.msra.mxu0 0
    %467 = vmatpush.bf16.msra.mxu0 0
    %468 = vmatpush.bf16.msra.mxu0 0
    %469 = vmatpush.bf16.msra.mxu0 0
    %470 = vmatpush.bf16.msra.mxu0 0
    %471 = vmatpush.bf16.msra.mxu0 %v257
    %472 = vmatpush.bf16.msra.mxu0 %v241
    %473 = vmatmul.bf16.gmra.mxu0 %v295
    %v474 = vpop.f32.mrf.mxu0
    %v475 = vadd.f32 %v113, %v474
    %v476 = vpop.f32.mrf.mxu0
    %v477 = vadd.f32 %v113, %v476
    %478 = vdwg.mxu0
    %479 = vmatpush.bf16.msra.mxu0 0
    %480 = vmatpush.bf16.msra.mxu0 0
    %481 = vmatpush.bf16.msra.mxu0 0
    %482 = vmatpush.bf16.msra.mxu0 0
    %483 = vmatpush.bf16.msra.mxu0 0
    %484 = vmatpush.bf16.msra.mxu0 0
    %485 = vmatpush.bf16.msra.mxu0 %v258
    %486 = vmatpush.bf16.msra.mxu0 %v242
    %487 = vmatmul.bf16.gmra.mxu0 %v295
    %v488 = vpop.f32.mrf.mxu0
    %v489 = vadd.f32 %v114, %v488
    %v490 = vpop.f32.mrf.mxu0
    %v491 = vadd.f32 %v114, %v490
    %492 = vdwg.mxu0
    %493 = vmatpush.bf16.msra.mxu0 0
    %494 = vmatpush.bf16.msra.mxu0 0
    %495 = vmatpush.bf16.msra.mxu0 0
    %496 = vmatpush.bf16.msra.mxu0 0
    %497 = vmatpush.bf16.msra.mxu0 0
    %498 = vmatpush.bf16.msra.mxu0 0
    %499 = vmatpush.bf16.msra.mxu0 %v259
    %500 = vmatpush.bf16.msra.mxu0 %v243
    %501 = vmatmul.bf16.gmra.mxu0 %v295
    %v502 = vpop.f32.mrf.mxu0
    %v503 = vadd.f32 %v115, %v502
    %v504 = vpop.f32.mrf.mxu0
    %v505 = vadd.f32 %v115, %v504
    %506 = vdwg.mxu0
    %507 = vmatpush.bf16.msra.mxu0 0
    %508 = vmatpush.bf16.msra.mxu0 0
    %509 = vmatpush.bf16.msra.mxu0 0
    %510 = vmatpush.bf16.msra.mxu0 0
    %511 = vmatpush.bf16.msra.mxu0 0
    %512 = vmatpush.bf16.msra.mxu0 0
    %513 = vmatpush.bf16.msra.mxu0 %v260
    %514 = vmatpush.bf16.msra.mxu0 %v244
    %515 = vmatmul.bf16.gmra.mxu0 %v295
    %v516 = vpop.f32.mrf.mxu0
    %v517 = vadd.f32 %v116, %v516
    %v518 = vpop.f32.mrf.mxu0
    %v519 = vadd.f32 %v116, %v518
    %520 = vdwg.mxu0
    %v521 = vmax.f32 %v307, 0.0
    %v522 = vmax.f32 %v321, 0.0
    %v523 = vmax.f32 %v335, 0.0
    %v524 = vmax.f32 %v349, 0.0
    %v525 = vmax.f32 %v363, 0.0
    %v526 = vmax.f32 %v377, 0.0
    %v527 = vmax.f32 %v391, 0.0
    %v528 = vmax.f32 %v405, 0.0
    %v529 = vmax.f32 %v419, 0.0
    %v530 = vmax.f32 %v433, 0.0
    %v531 = vmax.f32 %v447, 0.0
    %v532 = vmax.f32 %v461, 0.0
    %v533 = vmax.f32 %v475, 0.0
    %v534 = vmax.f32 %v489, 0.0
    %v535 = vmax.f32 %v503, 0.0
    %v536 = vmax.f32 %v517, 0.0
    %v537 = vmax.f32 %v309, 0.0
    %v538 = vmax.f32 %v323, 0.0
    %v539 = vmax.f32 %v337, 0.0
    %v540 = vmax.f32 %v351, 0.0
    %v541 = vmax.f32 %v365, 0.0
    %v542 = vmax.f32 %v379, 0.0
    %v543 = vmax.f32 %v393, 0.0
    %v544 = vmax.f32 %v407, 0.0
    %v545 = vmax.f32 %v421, 0.0
    %v546 = vmax.f32 %v435, 0.0
    %v547 = vmax.f32 %v449, 0.0
    %v548 = vmax.f32 %v463, 0.0
    %v549 = vmax.f32 %v477, 0.0
    %v550 = vmax.f32 %v491, 0.0
    %v551 = vmax.f32 %v505, 0.0
    %v552 = vmax.f32 %v519, 0.0
    %v553 = vpack.c.bf16 %v537, %v521
    %v554 = vpack.c.bf16 %v538, %v522
    %v555 = vpack.c.bf16 %v539, %v523
    %v556 = vpack.c.bf16 %v540, %v524
    %v557 = vpack.c.bf16 %v541, %v525
    %v558 = vpack.c.bf16 %v542, %v526
    %v559 = vpack.c.bf16 %v543, %v527
    %v560 = vpack.c.bf16 %v544, %v528
    %v561 = vpack.c.bf16 %v545, %v529
    %v562 = vpack.c.bf16 %v546, %v530
    %v563 = vpack.c.bf16 %v547, %v531
    %v564 = vpack.c.bf16 %v548, %v532
    %v565 = vpack.c.bf16 %v549, %v533
    %v566 = vpack.c.bf16 %v550, %v534
    %v567 = vpack.c.bf16 %v551, %v535
    %v568 = vpack.c.bf16 %v552, %v536
    %v569 = vld [vmem:[#allocation4] sm:$0xf]
    %v570 = vld [vmem:[#allocation4 + $0x4] sm:$0xf]
    %v571 = vld [vmem:[#allocation4 + $0x8] sm:$0xf]
    %v572 = vld [vmem:[#allocation4 + $0xc] sm:$0xf]
    %v573 = vld [vmem:[#allocation4 + $0x10] sm:$0xf]
    %v574 = vld [vmem:[#allocation4 + $0x14] sm:$0xf]
    %v575 = vld [vmem:[#allocation4 + $0x18] sm:$0xf]
    %v576 = vld [vmem:[#allocation4 + $0x1c] sm:$0xf]
    %v577 = vld [vmem:[#allocation4 + $0x20] sm:$0xf]
    %v578 = vld [vmem:[#allocation4 + $0x24] sm:$0xf]
    %v579 = vld [vmem:[#allocation4 + $0x28] sm:$0xf]
    %v580 = vld [vmem:[#allocation4 + $0x2c] sm:$0xf]
    %v581 = vld [vmem:[#allocation4 + $0x30] sm:$0xf]
    %v582 = vld [vmem:[#allocation4 + $0x34] sm:$0xf]
    %v583 = vld [vmem:[#allocation4 + $0x38] sm:$0xf]
    %v584 = vld [vmem:[#allocation4 + $0x3c] sm:$0xf]
    %v585 = vld [vmem:[#allocation4 + $0x40] sm:$0xf]
    %v586 = vld [vmem:[#allocation4 + $0x44] sm:$0xf]
    %v587 = vld [vmem:[#allocation4 + $0x48] sm:$0xf]
    %v588 = vld [vmem:[#allocation4 + $0x4c] sm:$0xf]
    %v589 = vld [vmem:[#allocation4 + $0x50] sm:$0xf]
    %v590 = vld [vmem:[#allocation4 + $0x54] sm:$0xf]
    %v591 = vld [vmem:[#allocation4 + $0x58] sm:$0xf]
    %v592 = vld [vmem:[#allocation4 + $0x5c] sm:$0xf]
    %v593 = vld [vmem:[#allocation4 + $0x60] sm:$0xf]
    %v594 = vld [vmem:[#allocation4 + $0x64] sm:$0xf]
    %v595 = vld [vmem:[#allocation4 + $0x68] sm:$0xf]
    %v596 = vld [vmem:[#allocation4 + $0x6c] sm:$0xf]
    %v597 = vld [vmem:[#allocation4 + $0x70] sm:$0xf]
    %v598 = vld [vmem:[#allocation4 + $0x74] sm:$0xf]
    %v599 = vld [vmem:[#allocation4 + $0x78] sm:$0xf]
    %v600 = vld [vmem:[#allocation4 + $0x7c] sm:$0xf]
    %v601 = vld [vmem:[#allocation4 + $0x80] sm:$0xf]
    %v602 = vld [vmem:[#allocation4 + $0x84] sm:$0xf]
    %v603 = vld [vmem:[#allocation4 + $0x88] sm:$0xf]
    %v604 = vld [vmem:[#allocation4 + $0x8c] sm:$0xf]
    %v605 = vld [vmem:[#allocation4 + $0x90] sm:$0xf]
    %v606 = vld [vmem:[#allocation4 + $0x94] sm:$0xf]
    %v607 = vld [vmem:[#allocation4 + $0x98] sm:$0xf]
    %v608 = vld [vmem:[#allocation4 + $0x9c] sm:$0xf]
    %v609 = vld [vmem:[#allocation4 + $0xa0] sm:$0xf]
    %v610 = vld [vmem:[#allocation4 + $0xa4] sm:$0xf]
    %v611 = vld [vmem:[#allocation4 + $0xa8] sm:$0xf]
    %v612 = vld [vmem:[#allocation4 + $0xac] sm:$0xf]
    %v613 = vld [vmem:[#allocation4 + $0xb0] sm:$0xf]
    %v614 = vld [vmem:[#allocation4 + $0xb4] sm:$0xf]
    %v615 = vld [vmem:[#allocation4 + $0xb8] sm:$0xf]
    %v616 = vld [vmem:[#allocation4 + $0xbc] sm:$0xf]
    %v617 = vld [vmem:[#allocation4 + $0xc0] sm:$0xf]
    %v618 = vld [vmem:[#allocation4 + $0xc4] sm:$0xf]
    %v619 = vld [vmem:[#allocation4 + $0xc8] sm:$0xf]
    %v620 = vld [vmem:[#allocation4 + $0xcc] sm:$0xf]
    %v621 = vld [vmem:[#allocation4 + $0xd0] sm:$0xf]
    %v622 = vld [vmem:[#allocation4 + $0xd4] sm:$0xf]
    %v623 = vld [vmem:[#allocation4 + $0xd8] sm:$0xf]
    %v624 = vld [vmem:[#allocation4 + $0xdc] sm:$0xf]
    %v625 = vld [vmem:[#allocation4 + $0xe0] sm:$0xf]
    %v626 = vld [vmem:[#allocation4 + $0xe4] sm:$0xf]
    %v627 = vld [vmem:[#allocation4 + $0xe8] sm:$0xf]
    %v628 = vld [vmem:[#allocation4 + $0xec] sm:$0xf]
    %v629 = vld [vmem:[#allocation4 + $0xf0] sm:$0xf]
    %v630 = vld [vmem:[#allocation4 + $0xf4] sm:$0xf]
    %v631 = vld [vmem:[#allocation4 + $0xf8] sm:$0xf]
    %v632 = vld [vmem:[#allocation4 + $0xfc] sm:$0xf]
    %v633 = vld [vmem:[#allocation4 + $0x100] sm:$0xf]
    %v634 = vld [vmem:[#allocation4 + $0x104] sm:$0xf]
    %v635 = vld [vmem:[#allocation4 + $0x108] sm:$0xf]
    %v636 = vld [vmem:[#allocation4 + $0x10c] sm:$0xf]
    %v637 = vld [vmem:[#allocation4 + $0x110] sm:$0xf]
    %v638 = vld [vmem:[#allocation4 + $0x114] sm:$0xf]
    %v639 = vld [vmem:[#allocation4 + $0x118] sm:$0xf]
    %v640 = vld [vmem:[#allocation4 + $0x11c] sm:$0xf]
    %v641 = vld [vmem:[#allocation4 + $0x120] sm:$0xf]
    %v642 = vld [vmem:[#allocation4 + $0x124] sm:$0xf]
    %v643 = vld [vmem:[#allocation4 + $0x128] sm:$0xf]
    %v644 = vld [vmem:[#allocation4 + $0x12c] sm:$0xf]
    %v645 = vld [vmem:[#allocation4 + $0x130] sm:$0xf]
    %v646 = vld [vmem:[#allocation4 + $0x134] sm:$0xf]
    %v647 = vld [vmem:[#allocation4 + $0x138] sm:$0xf]
    %v648 = vld [vmem:[#allocation4 + $0x13c] sm:$0xf]
    %v649 = vld [vmem:[#allocation4 + $0x140] sm:$0xf]
    %v650 = vld [vmem:[#allocation4 + $0x144] sm:$0xf]
    %v651 = vld [vmem:[#allocation4 + $0x148] sm:$0xf]
    %v652 = vld [vmem:[#allocation4 + $0x14c] sm:$0xf]
    %v653 = vld [vmem:[#allocation4 + $0x150] sm:$0xf]
    %v654 = vld [vmem:[#allocation4 + $0x154] sm:$0xf]
    %v655 = vld [vmem:[#allocation4 + $0x158] sm:$0xf]
    %v656 = vld [vmem:[#allocation4 + $0x15c] sm:$0xf]
    %v657 = vld [vmem:[#allocation4 + $0x160] sm:$0xf]
    %v658 = vld [vmem:[#allocation4 + $0x164] sm:$0xf]
    %v659 = vld [vmem:[#allocation4 + $0x168] sm:$0xf]
    %v660 = vld [vmem:[#allocation4 + $0x16c] sm:$0xf]
    %v661 = vld [vmem:[#allocation4 + $0x170] sm:$0xf]
    %v662 = vld [vmem:[#allocation4 + $0x174] sm:$0xf]
    %v663 = vld [vmem:[#allocation4 + $0x178] sm:$0xf]
    %v664 = vld [vmem:[#allocation4 + $0x17c] sm:$0xf]
    %v665 = vld [vmem:[#allocation4 + $0x180] sm:$0xf]
    %v666 = vld [vmem:[#allocation4 + $0x184] sm:$0xf]
    %v667 = vld [vmem:[#allocation4 + $0x188] sm:$0xf]
    %v668 = vld [vmem:[#allocation4 + $0x18c] sm:$0xf]
    %v669 = vld [vmem:[#allocation4 + $0x190] sm:$0xf]
    %v670 = vld [vmem:[#allocation4 + $0x194] sm:$0xf]
    %v671 = vld [vmem:[#allocation4 + $0x198] sm:$0xf]
    %v672 = vld [vmem:[#allocation4 + $0x19c] sm:$0xf]
    %v673 = vld [vmem:[#allocation4 + $0x1a0] sm:$0xf]
    %v674 = vld [vmem:[#allocation4 + $0x1a4] sm:$0xf]
    %v675 = vld [vmem:[#allocation4 + $0x1a8] sm:$0xf]
    %v676 = vld [vmem:[#allocation4 + $0x1ac] sm:$0xf]
    %v677 = vld [vmem:[#allocation4 + $0x1b0] sm:$0xf]
    %v678 = vld [vmem:[#allocation4 + $0x1b4] sm:$0xf]
    %v679 = vld [vmem:[#allocation4 + $0x1b8] sm:$0xf]
    %v680 = vld [vmem:[#allocation4 + $0x1bc] sm:$0xf]
    %v681 = vld [vmem:[#allocation4 + $0x1c0] sm:$0xf]
    %v682 = vld [vmem:[#allocation4 + $0x1c4] sm:$0xf]
    %v683 = vld [vmem:[#allocation4 + $0x1c8] sm:$0xf]
    %v684 = vld [vmem:[#allocation4 + $0x1cc] sm:$0xf]
    %v685 = vld [vmem:[#allocation4 + $0x1d0] sm:$0xf]
    %v686 = vld [vmem:[#allocation4 + $0x1d4] sm:$0xf]
    %v687 = vld [vmem:[#allocation4 + $0x1d8] sm:$0xf]
    %v688 = vld [vmem:[#allocation4 + $0x1dc] sm:$0xf]
    %v689 = vld [vmem:[#allocation4 + $0x1e0] sm:$0xf]
    %v690 = vld [vmem:[#allocation4 + $0x1e4] sm:$0xf]
    %v691 = vld [vmem:[#allocation4 + $0x1e8] sm:$0xf]
    %v692 = vld [vmem:[#allocation4 + $0x1ec] sm:$0xf]
    %v693 = vld [vmem:[#allocation4 + $0x1f0] sm:$0xf]
    %v694 = vld [vmem:[#allocation4 + $0x1f4] sm:$0xf]
    %v695 = vld [vmem:[#allocation4 + $0x1f8] sm:$0xf]
    %v696 = vld [vmem:[#allocation4 + $0x1fc] sm:$0xf]
    %v697 = vld [vmem:[#allocation4 + $0x200] sm:$0xf]
    %v698 = vld [vmem:[#allocation4 + $0x204] sm:$0xf]
    %v699 = vld [vmem:[#allocation4 + $0x208] sm:$0xf]
    %v700 = vld [vmem:[#allocation4 + $0x20c] sm:$0xf]
    %v701 = vld [vmem:[#allocation4 + $0x210] sm:$0xf]
    %v702 = vld [vmem:[#allocation4 + $0x214] sm:$0xf]
    %v703 = vld [vmem:[#allocation4 + $0x218] sm:$0xf]
    %v704 = vld [vmem:[#allocation4 + $0x21c] sm:$0xf]
    %v705 = vld [vmem:[#allocation4 + $0x220] sm:$0xf]
    %v706 = vld [vmem:[#allocation4 + $0x224] sm:$0xf]
    %v707 = vld [vmem:[#allocation4 + $0x228] sm:$0xf]
    %v708 = vld [vmem:[#allocation4 + $0x22c] sm:$0xf]
    %v709 = vld [vmem:[#allocation4 + $0x230] sm:$0xf]
    %v710 = vld [vmem:[#allocation4 + $0x234] sm:$0xf]
    %v711 = vld [vmem:[#allocation4 + $0x238] sm:$0xf]
    %v712 = vld [vmem:[#allocation4 + $0x23c] sm:$0xf]
    %v713 = vld [vmem:[#allocation4 + $0x240] sm:$0xf]
    %v714 = vld [vmem:[#allocation4 + $0x244] sm:$0xf]
    %v715 = vld [vmem:[#allocation4 + $0x248] sm:$0xf]
    %v716 = vld [vmem:[#allocation4 + $0x24c] sm:$0xf]
    %v717 = vld [vmem:[#allocation4 + $0x250] sm:$0xf]
    %v718 = vld [vmem:[#allocation4 + $0x254] sm:$0xf]
    %v719 = vld [vmem:[#allocation4 + $0x258] sm:$0xf]
    %v720 = vld [vmem:[#allocation4 + $0x25c] sm:$0xf]
    %v721 = vld [vmem:[#allocation4 + $0x260] sm:$0xf]
    %v722 = vld [vmem:[#allocation4 + $0x264] sm:$0xf]
    %v723 = vld [vmem:[#allocation4 + $0x268] sm:$0xf]
    %v724 = vld [vmem:[#allocation4 + $0x26c] sm:$0xf]
    %v725 = vld [vmem:[#allocation4 + $0x270] sm:$0xf]
    %v726 = vld [vmem:[#allocation4 + $0x274] sm:$0xf]
    %v727 = vld [vmem:[#allocation4 + $0x278] sm:$0xf]
    %v728 = vld [vmem:[#allocation4 + $0x27c] sm:$0xf]
    %v729 = vld [vmem:[#allocation4 + $0x280] sm:$0xf]
    %v730 = vld [vmem:[#allocation4 + $0x284] sm:$0xf]
    %v731 = vld [vmem:[#allocation4 + $0x288] sm:$0xf]
    %v732 = vld [vmem:[#allocation4 + $0x28c] sm:$0xf]
    %v733 = vld [vmem:[#allocation4 + $0x290] sm:$0xf]
    %v734 = vld [vmem:[#allocation4 + $0x294] sm:$0xf]
    %v735 = vld [vmem:[#allocation4 + $0x298] sm:$0xf]
    %v736 = vld [vmem:[#allocation4 + $0x29c] sm:$0xf]
    %v737 = vld [vmem:[#allocation4 + $0x2a0] sm:$0xf]
    %v738 = vld [vmem:[#allocation4 + $0x2a4] sm:$0xf]
    %v739 = vld [vmem:[#allocation4 + $0x2a8] sm:$0xf]
    %v740 = vld [vmem:[#allocation4 + $0x2ac] sm:$0xf]
    %v741 = vld [vmem:[#allocation4 + $0x2b0] sm:$0xf]
    %v742 = vld [vmem:[#allocation4 + $0x2b4] sm:$0xf]
    %v743 = vld [vmem:[#allocation4 + $0x2b8] sm:$0xf]
    %v744 = vld [vmem:[#allocation4 + $0x2bc] sm:$0xf]
    %v745 = vld [vmem:[#allocation4 + $0x2c0] sm:$0xf]
    %v746 = vld [vmem:[#allocation4 + $0x2c4] sm:$0xf]
    %v747 = vld [vmem:[#allocation4 + $0x2c8] sm:$0xf]
    %v748 = vld [vmem:[#allocation4 + $0x2cc] sm:$0xf]
    %v749 = vld [vmem:[#allocation4 + $0x2d0] sm:$0xf]
    %v750 = vld [vmem:[#allocation4 + $0x2d4] sm:$0xf]
    %v751 = vld [vmem:[#allocation4 + $0x2d8] sm:$0xf]
    %v752 = vld [vmem:[#allocation4 + $0x2dc] sm:$0xf]
    %v753 = vld [vmem:[#allocation4 + $0x2e0] sm:$0xf]
    %v754 = vld [vmem:[#allocation4 + $0x2e4] sm:$0xf]
    %v755 = vld [vmem:[#allocation4 + $0x2e8] sm:$0xf]
    %v756 = vld [vmem:[#allocation4 + $0x2ec] sm:$0xf]
    %v757 = vld [vmem:[#allocation4 + $0x2f0] sm:$0xf]
    %v758 = vld [vmem:[#allocation4 + $0x2f4] sm:$0xf]
    %v759 = vld [vmem:[#allocation4 + $0x2f8] sm:$0xf]
    %v760 = vld [vmem:[#allocation4 + $0x2fc] sm:$0xf]
    %v761 = vld [vmem:[#allocation4 + $0x300] sm:$0xf]
    %v762 = vld [vmem:[#allocation4 + $0x304] sm:$0xf]
    %v763 = vld [vmem:[#allocation4 + $0x308] sm:$0xf]
    %v764 = vld [vmem:[#allocation4 + $0x30c] sm:$0xf]
    %v765 = vld [vmem:[#allocation4 + $0x310] sm:$0xf]
    %v766 = vld [vmem:[#allocation4 + $0x314] sm:$0xf]
    %v767 = vld [vmem:[#allocation4 + $0x318] sm:$0xf]
    %v768 = vld [vmem:[#allocation4 + $0x31c] sm:$0xf]
    %v769 = vld [vmem:[#allocation4 + $0x320] sm:$0xf]
    %v770 = vld [vmem:[#allocation4 + $0x324] sm:$0xf]
    %v771 = vld [vmem:[#allocation4 + $0x328] sm:$0xf]
    %v772 = vld [vmem:[#allocation4 + $0x32c] sm:$0xf]
    %v773 = vld [vmem:[#allocation4 + $0x330] sm:$0xf]
    %v774 = vld [vmem:[#allocation4 + $0x334] sm:$0xf]
    %v775 = vld [vmem:[#allocation4 + $0x338] sm:$0xf]
    %v776 = vld [vmem:[#allocation4 + $0x33c] sm:$0xf]
    %v777 = vld [vmem:[#allocation4 + $0x340] sm:$0xf]
    %v778 = vld [vmem:[#allocation4 + $0x344] sm:$0xf]
    %v779 = vld [vmem:[#allocation4 + $0x348] sm:$0xf]
    %v780 = vld [vmem:[#allocation4 + $0x34c] sm:$0xf]
    %v781 = vld [vmem:[#allocation4 + $0x350] sm:$0xf]
    %v782 = vld [vmem:[#allocation4 + $0x354] sm:$0xf]
    %v783 = vld [vmem:[#allocation4 + $0x358] sm:$0xf]
    %v784 = vld [vmem:[#allocation4 + $0x35c] sm:$0xf]
    %v785 = vld [vmem:[#allocation4 + $0x360] sm:$0xf]
    %v786 = vld [vmem:[#allocation4 + $0x364] sm:$0xf]
    %v787 = vld [vmem:[#allocation4 + $0x368] sm:$0xf]
    %v788 = vld [vmem:[#allocation4 + $0x36c] sm:$0xf]
    %v789 = vld [vmem:[#allocation4 + $0x370] sm:$0xf]
    %v790 = vld [vmem:[#allocation4 + $0x374] sm:$0xf]
    %v791 = vld [vmem:[#allocation4 + $0x378] sm:$0xf]
    %v792 = vld [vmem:[#allocation4 + $0x37c] sm:$0xf]
    %v793 = vld [vmem:[#allocation4 + $0x380] sm:$0xf]
    %v794 = vld [vmem:[#allocation4 + $0x384] sm:$0xf]
    %v795 = vld [vmem:[#allocation4 + $0x388] sm:$0xf]
    %v796 = vld [vmem:[#allocation4 + $0x38c] sm:$0xf]
    %v797 = vld [vmem:[#allocation4 + $0x390] sm:$0xf]
    %v798 = vld [vmem:[#allocation4 + $0x394] sm:$0xf]
    %v799 = vld [vmem:[#allocation4 + $0x398] sm:$0xf]
    %v800 = vld [vmem:[#allocation4 + $0x39c] sm:$0xf]
    %v801 = vld [vmem:[#allocation4 + $0x3a0] sm:$0xf]
    %v802 = vld [vmem:[#allocation4 + $0x3a4] sm:$0xf]
    %v803 = vld [vmem:[#allocation4 + $0x3a8] sm:$0xf]
    %v804 = vld [vmem:[#allocation4 + $0x3ac] sm:$0xf]
    %v805 = vld [vmem:[#allocation4 + $0x3b0] sm:$0xf]
    %v806 = vld [vmem:[#allocation4 + $0x3b4] sm:$0xf]
    %v807 = vld [vmem:[#allocation4 + $0x3b8] sm:$0xf]
    %v808 = vld [vmem:[#allocation4 + $0x3bc] sm:$0xf]
    %v809 = vld [vmem:[#allocation4 + $0x3c0] sm:$0xf]
    %v810 = vld [vmem:[#allocation4 + $0x3c4] sm:$0xf]
    %v811 = vld [vmem:[#allocation4 + $0x3c8] sm:$0xf]
    %v812 = vld [vmem:[#allocation4 + $0x3cc] sm:$0xf]
    %v813 = vld [vmem:[#allocation4 + $0x3d0] sm:$0xf]
    %v814 = vld [vmem:[#allocation4 + $0x3d4] sm:$0xf]
    %v815 = vld [vmem:[#allocation4 + $0x3d8] sm:$0xf]
    %v816 = vld [vmem:[#allocation4 + $0x3dc] sm:$0xf]
    %v817 = vld [vmem:[#allocation4 + $0x3e0] sm:$0xf]
    %v818 = vld [vmem:[#allocation4 + $0x3e4] sm:$0xf]
    %v819 = vld [vmem:[#allocation4 + $0x3e8] sm:$0xf]
    %v820 = vld [vmem:[#allocation4 + $0x3ec] sm:$0xf]
    %v821 = vld [vmem:[#allocation4 + $0x3f0] sm:$0xf]
    %v822 = vld [vmem:[#allocation4 + $0x3f4] sm:$0xf]
    %v823 = vld [vmem:[#allocation4 + $0x3f8] sm:$0xf]
    %v824 = vld [vmem:[#allocation4 + $0x3fc] sm:$0xf]
    %v1081 = vunpack.c.l.b16 %v569
    %v1082 = vunpack.c.l.b16 %v570
    %v1083 = vunpack.c.l.b16 %v571
    %v1084 = vunpack.c.l.b16 %v572
    %v1085 = vunpack.c.l.b16 %v573
    %v1086 = vunpack.c.l.b16 %v574
    %v1087 = vunpack.c.l.b16 %v575
    %v1088 = vunpack.c.l.b16 %v576
    %v1089 = vunpack.c.l.b16 %v577
    %v1090 = vunpack.c.l.b16 %v578
    %v1091 = vunpack.c.l.b16 %v579
    %v1092 = vunpack.c.l.b16 %v580
    %v1093 = vunpack.c.l.b16 %v581
    %v1094 = vunpack.c.l.b16 %v582
    %v1095 = vunpack.c.l.b16 %v583
    %v1096 = vunpack.c.l.b16 %v584
    %v1097 = vunpack.c.l.b16 %v585
    %v1098 = vunpack.c.l.b16 %v586
    %v1099 = vunpack.c.l.b16 %v587
    %v1100 = vunpack.c.l.b16 %v588
    %v1101 = vunpack.c.l.b16 %v589
    %v1102 = vunpack.c.l.b16 %v590
    %v1103 = vunpack.c.l.b16 %v591
    %v1104 = vunpack.c.l.b16 %v592
    %v1105 = vunpack.c.l.b16 %v593
    %v1106 = vunpack.c.l.b16 %v594
    %v1107 = vunpack.c.l.b16 %v595
    %v1108 = vunpack.c.l.b16 %v596
    %v1109 = vunpack.c.l.b16 %v597
    %v1110 = vunpack.c.l.b16 %v598
    %v1111 = vunpack.c.l.b16 %v599
    %v1112 = vunpack.c.l.b16 %v600
    %v1113 = vunpack.c.l.b16 %v601
    %v1114 = vunpack.c.l.b16 %v602
    %v1115 = vunpack.c.l.b16 %v603
    %v1116 = vunpack.c.l.b16 %v604
    %v1117 = vunpack.c.l.b16 %v605
    %v1118 = vunpack.c.l.b16 %v606
    %v1119 = vunpack.c.l.b16 %v607
    %v1120 = vunpack.c.l.b16 %v608
    %v1121 = vunpack.c.l.b16 %v609
    %v1122 = vunpack.c.l.b16 %v610
    %v1123 = vunpack.c.l.b16 %v611
    %v1124 = vunpack.c.l.b16 %v612
    %v1125 = vunpack.c.l.b16 %v613
    %v1126 = vunpack.c.l.b16 %v614
    %v1127 = vunpack.c.l.b16 %v615
    %v1128 = vunpack.c.l.b16 %v616
    %v1129 = vunpack.c.l.b16 %v617
    %v1130 = vunpack.c.l.b16 %v618
    %v1131 = vunpack.c.l.b16 %v619
    %v1132 = vunpack.c.l.b16 %v620
    %v1133 = vunpack.c.l.b16 %v621
    %v1134 = vunpack.c.l.b16 %v622
    %v1135 = vunpack.c.l.b16 %v623
    %v1136 = vunpack.c.l.b16 %v624
    %v1137 = vunpack.c.l.b16 %v625
    %v1138 = vunpack.c.l.b16 %v626
    %v1139 = vunpack.c.l.b16 %v627
    %v1140 = vunpack.c.l.b16 %v628
    %v1141 = vunpack.c.l.b16 %v629
    %v1142 = vunpack.c.l.b16 %v630
    %v1143 = vunpack.c.l.b16 %v631
    %v1144 = vunpack.c.l.b16 %v632
    %v1145 = vunpack.c.l.b16 %v633
    %v1146 = vunpack.c.l.b16 %v634
    %v1147 = vunpack.c.l.b16 %v635
    %v1148 = vunpack.c.l.b16 %v636
    %v1149 = vunpack.c.l.b16 %v637
    %v1150 = vunpack.c.l.b16 %v638
    %v1151 = vunpack.c.l.b16 %v639
    %v1152 = vunpack.c.l.b16 %v640
    %v1153 = vunpack.c.l.b16 %v641
    %v1154 = vunpack.c.l.b16 %v642
    %v1155 = vunpack.c.l.b16 %v643
    %v1156 = vunpack.c.l.b16 %v644
    %v1157 = vunpack.c.l.b16 %v645
    %v1158 = vunpack.c.l.b16 %v646
    %v1159 = vunpack.c.l.b16 %v647
    %v1160 = vunpack.c.l.b16 %v648
    %v1161 = vunpack.c.l.b16 %v649
    %v1162 = vunpack.c.l.b16 %v650
    %v1163 = vunpack.c.l.b16 %v651
    %v1164 = vunpack.c.l.b16 %v652
    %v1165 = vunpack.c.l.b16 %v653
    %v1166 = vunpack.c.l.b16 %v654
    %v1167 = vunpack.c.l.b16 %v655
    %v1168 = vunpack.c.l.b16 %v656
    %v1169 = vunpack.c.l.b16 %v657
    %v1170 = vunpack.c.l.b16 %v658
    %v1171 = vunpack.c.l.b16 %v659
    %v1172 = vunpack.c.l.b16 %v660
    %v1173 = vunpack.c.l.b16 %v661
    %v1174 = vunpack.c.l.b16 %v662
    %v1175 = vunpack.c.l.b16 %v663
    %v1176 = vunpack.c.l.b16 %v664
    %v1177 = vunpack.c.l.b16 %v665
    %v1178 = vunpack.c.l.b16 %v666
    %v1179 = vunpack.c.l.b16 %v667
    %v1180 = vunpack.c.l.b16 %v668
    %v1181 = vunpack.c.l.b16 %v669
    %v1182 = vunpack.c.l.b16 %v670
    %v1183 = vunpack.c.l.b16 %v671
    %v1184 = vunpack.c.l.b16 %v672
    %v1185 = vunpack.c.l.b16 %v673
    %v1186 = vunpack.c.l.b16 %v674
    %v1187 = vunpack.c.l.b16 %v675
    %v1188 = vunpack.c.l.b16 %v676
    %v1189 = vunpack.c.l.b16 %v677
    %v1190 = vunpack.c.l.b16 %v678
    %v1191 = vunpack.c.l.b16 %v679
    %v1192 = vunpack.c.l.b16 %v680
    %v1193 = vunpack.c.l.b16 %v681
    %v1194 = vunpack.c.l.b16 %v682
    %v1195 = vunpack.c.l.b16 %v683
    %v1196 = vunpack.c.l.b16 %v684
    %v1197 = vunpack.c.l.b16 %v685
    %v1198 = vunpack.c.l.b16 %v686
    %v1199 = vunpack.c.l.b16 %v687
    %v1200 = vunpack.c.l.b16 %v688
    %v1201 = vunpack.c.l.b16 %v689
    %v1202 = vunpack.c.l.b16 %v690
    %v1203 = vunpack.c.l.b16 %v691
    %v1204 = vunpack.c.l.b16 %v692
    %v1205 = vunpack.c.l.b16 %v693
    %v1206 = vunpack.c.l.b16 %v694
    %v1207 = vunpack.c.l.b16 %v695
    %v1208 = vunpack.c.l.b16 %v696
    %v1209 = vunpack.c.l.b16 %v697
    %v1210 = vunpack.c.l.b16 %v698
    %v1211 = vunpack.c.l.b16 %v699
    %v1212 = vunpack.c.l.b16 %v700
    %v1213 = vunpack.c.l.b16 %v701
    %v1214 = vunpack.c.l.b16 %v702
    %v1215 = vunpack.c.l.b16 %v703
    %v1216 = vunpack.c.l.b16 %v704
    %v1217 = vunpack.c.l.b16 %v705
    %v1218 = vunpack.c.l.b16 %v706
    %v1219 = vunpack.c.l.b16 %v707
    %v1220 = vunpack.c.l.b16 %v708
    %v1221 = vunpack.c.l.b16 %v709
    %v1222 = vunpack.c.l.b16 %v710
    %v1223 = vunpack.c.l.b16 %v711
    %v1224 = vunpack.c.l.b16 %v712
    %v1225 = vunpack.c.l.b16 %v713
    %v1226 = vunpack.c.l.b16 %v714
    %v1227 = vunpack.c.l.b16 %v715
    %v1228 = vunpack.c.l.b16 %v716
    %v1229 = vunpack.c.l.b16 %v717
    %v1230 = vunpack.c.l.b16 %v718
    %v1231 = vunpack.c.l.b16 %v719
    %v1232 = vunpack.c.l.b16 %v720
    %v1233 = vunpack.c.l.b16 %v721
    %v1234 = vunpack.c.l.b16 %v722
    %v1235 = vunpack.c.l.b16 %v723
    %v1236 = vunpack.c.l.b16 %v724
    %v1237 = vunpack.c.l.b16 %v725
    %v1238 = vunpack.c.l.b16 %v726
    %v1239 = vunpack.c.l.b16 %v727
    %v1240 = vunpack.c.l.b16 %v728
    %v1241 = vunpack.c.l.b16 %v729
    %v1242 = vunpack.c.l.b16 %v730
    %v1243 = vunpack.c.l.b16 %v731
    %v1244 = vunpack.c.l.b16 %v732
    %v1245 = vunpack.c.l.b16 %v733
    %v1246 = vunpack.c.l.b16 %v734
    %v1247 = vunpack.c.l.b16 %v735
    %v1248 = vunpack.c.l.b16 %v736
    %v1249 = vunpack.c.l.b16 %v737
    %v1250 = vunpack.c.l.b16 %v738
    %v1251 = vunpack.c.l.b16 %v739
    %v1252 = vunpack.c.l.b16 %v740
    %v1253 = vunpack.c.l.b16 %v741
    %v1254 = vunpack.c.l.b16 %v742
    %v1255 = vunpack.c.l.b16 %v743
    %v1256 = vunpack.c.l.b16 %v744
    %v1257 = vunpack.c.l.b16 %v745
    %v1258 = vunpack.c.l.b16 %v746
    %v1259 = vunpack.c.l.b16 %v747
    %v1260 = vunpack.c.l.b16 %v748
    %v1261 = vunpack.c.l.b16 %v749
    %v1262 = vunpack.c.l.b16 %v750
    %v1263 = vunpack.c.l.b16 %v751
    %v1264 = vunpack.c.l.b16 %v752
    %v1265 = vunpack.c.l.b16 %v753
    %v1266 = vunpack.c.l.b16 %v754
    %v1267 = vunpack.c.l.b16 %v755
    %v1268 = vunpack.c.l.b16 %v756
    %v1269 = vunpack.c.l.b16 %v757
    %v1270 = vunpack.c.l.b16 %v758
    %v1271 = vunpack.c.l.b16 %v759
    %v1272 = vunpack.c.l.b16 %v760
    %v1273 = vunpack.c.l.b16 %v761
    %v1274 = vunpack.c.l.b16 %v762
    %v1275 = vunpack.c.l.b16 %v763
    %v1276 = vunpack.c.l.b16 %v764
    %v1277 = vunpack.c.l.b16 %v765
    %v1278 = vunpack.c.l.b16 %v766
    %v1279 = vunpack.c.l.b16 %v767
    %v1280 = vunpack.c.l.b16 %v768
    %v1281 = vunpack.c.l.b16 %v769
    %v1282 = vunpack.c.l.b16 %v770
    %v1283 = vunpack.c.l.b16 %v771
    %v1284 = vunpack.c.l.b16 %v772
    %v1285 = vunpack.c.l.b16 %v773
    %v1286 = vunpack.c.l.b16 %v774
    %v1287 = vunpack.c.l.b16 %v775
    %v1288 = vunpack.c.l.b16 %v776
    %v1289 = vunpack.c.l.b16 %v777
    %v1290 = vunpack.c.l.b16 %v778
    %v1291 = vunpack.c.l.b16 %v779
    %v1292 = vunpack.c.l.b16 %v780
    %v1293 = vunpack.c.l.b16 %v781
    %v1294 = vunpack.c.l.b16 %v782
    %v1295 = vunpack.c.l.b16 %v783
    %v1296 = vunpack.c.l.b16 %v784
    %v1297 = vunpack.c.l.b16 %v785
    %v1298 = vunpack.c.l.b16 %v786
    %v1299 = vunpack.c.l.b16 %v787
    %v1300 = vunpack.c.l.b16 %v788
    %v1301 = vunpack.c.l.b16 %v789
    %v1302 = vunpack.c.l.b16 %v790
    %v1303 = vunpack.c.l.b16 %v791
    %v1304 = vunpack.c.l.b16 %v792
    %v1305 = vunpack.c.l.b16 %v793
    %v1306 = vunpack.c.l.b16 %v794
    %v1307 = vunpack.c.l.b16 %v795
    %v1308 = vunpack.c.l.b16 %v796
    %v1309 = vunpack.c.l.b16 %v797
    %v1310 = vunpack.c.l.b16 %v798
    %v1311 = vunpack.c.l.b16 %v799
    %v1312 = vunpack.c.l.b16 %v800
    %v1313 = vunpack.c.l.b16 %v801
    %v1314 = vunpack.c.l.b16 %v802
    %v1315 = vunpack.c.l.b16 %v803
    %v1316 = vunpack.c.l.b16 %v804
    %v1317 = vunpack.c.l.b16 %v805
    %v1318 = vunpack.c.l.b16 %v806
    %v1319 = vunpack.c.l.b16 %v807
    %v1320 = vunpack.c.l.b16 %v808
    %v1321 = vunpack.c.l.b16 %v809
    %v1322 = vunpack.c.l.b16 %v810
    %v1323 = vunpack.c.l.b16 %v811
    %v1324 = vunpack.c.l.b16 %v812
    %v1325 = vunpack.c.l.b16 %v813
    %v1326 = vunpack.c.l.b16 %v814
    %v1327 = vunpack.c.l.b16 %v815
    %v1328 = vunpack.c.l.b16 %v816
    %v1329 = vunpack.c.l.b16 %v817
    %v1330 = vunpack.c.l.b16 %v818
    %v1331 = vunpack.c.l.b16 %v819
    %v1332 = vunpack.c.l.b16 %v820
    %v1333 = vunpack.c.l.b16 %v821
    %v1334 = vunpack.c.l.b16 %v822
    %v1335 = vunpack.c.l.b16 %v823
    %v1336 = vunpack.c.l.b16 %v824
    %v1337 = vpack.c.b16 %v1082, %v1081
    %v1338 = vpack.c.b16 %v1084, %v1083
    %v1339 = vpack.c.b16 %v1086, %v1085
    %v1340 = vpack.c.b16 %v1088, %v1087
    %v1341 = vpack.c.b16 %v1090, %v1089
    %v1342 = vpack.c.b16 %v1092, %v1091
    %v1343 = vpack.c.b16 %v1094, %v1093
    %v1344 = vpack.c.b16 %v1096, %v1095
    %v1345 = vpack.c.b16 %v1098, %v1097
    %v1346 = vpack.c.b16 %v1100, %v1099
    %v1347 = vpack.c.b16 %v1102, %v1101
    %v1348 = vpack.c.b16 %v1104, %v1103
    %v1349 = vpack.c.b16 %v1106, %v1105
    %v1350 = vpack.c.b16 %v1108, %v1107
    %v1351 = vpack.c.b16 %v1110, %v1109
    %v1352 = vpack.c.b16 %v1112, %v1111
    %v1353 = vpack.c.b16 %v1114, %v1113
    %v1354 = vpack.c.b16 %v1116, %v1115
    %v1355 = vpack.c.b16 %v1118, %v1117
    %v1356 = vpack.c.b16 %v1120, %v1119
    %v1357 = vpack.c.b16 %v1122, %v1121
    %v1358 = vpack.c.b16 %v1124, %v1123
    %v1359 = vpack.c.b16 %v1126, %v1125
    %v1360 = vpack.c.b16 %v1128, %v1127
    %v1361 = vpack.c.b16 %v1130, %v1129
    %v1362 = vpack.c.b16 %v1132, %v1131
    %v1363 = vpack.c.b16 %v1134, %v1133
    %v1364 = vpack.c.b16 %v1136, %v1135
    %v1365 = vpack.c.b16 %v1138, %v1137
    %v1366 = vpack.c.b16 %v1140, %v1139
    %v1367 = vpack.c.b16 %v1142, %v1141
    %v1368 = vpack.c.b16 %v1144, %v1143
    %v1369 = vpack.c.b16 %v1146, %v1145
    %v1370 = vpack.c.b16 %v1148, %v1147
    %v1371 = vpack.c.b16 %v1150, %v1149
    %v1372 = vpack.c.b16 %v1152, %v1151
    %v1373 = vpack.c.b16 %v1154, %v1153
    %v1374 = vpack.c.b16 %v1156, %v1155
    %v1375 = vpack.c.b16 %v1158, %v1157
    %v1376 = vpack.c.b16 %v1160, %v1159
    %v1377 = vpack.c.b16 %v1162, %v1161
    %v1378 = vpack.c.b16 %v1164, %v1163
    %v1379 = vpack.c.b16 %v1166, %v1165
    %v1380 = vpack.c.b16 %v1168, %v1167
    %v1381 = vpack.c.b16 %v1170, %v1169
    %v1382 = vpack.c.b16 %v1172, %v1171
    %v1383 = vpack.c.b16 %v1174, %v1173
    %v1384 = vpack.c.b16 %v1176, %v1175
    %v1385 = vpack.c.b16 %v1178, %v1177
    %v1386 = vpack.c.b16 %v1180, %v1179
    %v1387 = vpack.c.b16 %v1182, %v1181
    %v1388 = vpack.c.b16 %v1184, %v1183
    %v1389 = vpack.c.b16 %v1186, %v1185
    %v1390 = vpack.c.b16 %v1188, %v1187
    %v1391 = vpack.c.b16 %v1190, %v1189
    %v1392 = vpack.c.b16 %v1192, %v1191
    %v1393 = vpack.c.b16 %v1194, %v1193
    %v1394 = vpack.c.b16 %v1196, %v1195
    %v1395 = vpack.c.b16 %v1198, %v1197
    %v1396 = vpack.c.b16 %v1200, %v1199
    %v1397 = vpack.c.b16 %v1202, %v1201
    %v1398 = vpack.c.b16 %v1204, %v1203
    %v1399 = vpack.c.b16 %v1206, %v1205
    %v1400 = vpack.c.b16 %v1208, %v1207
    %v1401 = vpack.c.b16 %v1210, %v1209
    %v1402 = vpack.c.b16 %v1212, %v1211
    %v1403 = vpack.c.b16 %v1214, %v1213
    %v1404 = vpack.c.b16 %v1216, %v1215
    %v1405 = vpack.c.b16 %v1218, %v1217
    %v1406 = vpack.c.b16 %v1220, %v1219
    %v1407 = vpack.c.b16 %v1222, %v1221
    %v1408 = vpack.c.b16 %v1224, %v1223
    %v1409 = vpack.c.b16 %v1226, %v1225
    %v1410 = vpack.c.b16 %v1228, %v1227
    %v1411 = vpack.c.b16 %v1230, %v1229
    %v1412 = vpack.c.b16 %v1232, %v1231
    %v1413 = vpack.c.b16 %v1234, %v1233
    %v1414 = vpack.c.b16 %v1236, %v1235
    %v1415 = vpack.c.b16 %v1238, %v1237
    %v1416 = vpack.c.b16 %v1240, %v1239
    %v1417 = vpack.c.b16 %v1242, %v1241
    %v1418 = vpack.c.b16 %v1244, %v1243
    %v1419 = vpack.c.b16 %v1246, %v1245
    %v1420 = vpack.c.b16 %v1248, %v1247
    %v1421 = vpack.c.b16 %v1250, %v1249
    %v1422 = vpack.c.b16 %v1252, %v1251
    %v1423 = vpack.c.b16 %v1254, %v1253
    %v1424 = vpack.c.b16 %v1256, %v1255
    %v1425 = vpack.c.b16 %v1258, %v1257
    %v1426 = vpack.c.b16 %v1260, %v1259
    %v1427 = vpack.c.b16 %v1262, %v1261
    %v1428 = vpack.c.b16 %v1264, %v1263
    %v1429 = vpack.c.b16 %v1266, %v1265
    %v1430 = vpack.c.b16 %v1268, %v1267
    %v1431 = vpack.c.b16 %v1270, %v1269
    %v1432 = vpack.c.b16 %v1272, %v1271
    %v1433 = vpack.c.b16 %v1274, %v1273
    %v1434 = vpack.c.b16 %v1276, %v1275
    %v1435 = vpack.c.b16 %v1278, %v1277
    %v1436 = vpack.c.b16 %v1280, %v1279
    %v1437 = vpack.c.b16 %v1282, %v1281
    %v1438 = vpack.c.b16 %v1284, %v1283
    %v1439 = vpack.c.b16 %v1286, %v1285
    %v1440 = vpack.c.b16 %v1288, %v1287
    %v1441 = vpack.c.b16 %v1290, %v1289
    %v1442 = vpack.c.b16 %v1292, %v1291
    %v1443 = vpack.c.b16 %v1294, %v1293
    %v1444 = vpack.c.b16 %v1296, %v1295
    %v1445 = vpack.c.b16 %v1298, %v1297
    %v1446 = vpack.c.b16 %v1300, %v1299
    %v1447 = vpack.c.b16 %v1302, %v1301
    %v1448 = vpack.c.b16 %v1304, %v1303
    %v1449 = vpack.c.b16 %v1306, %v1305
    %v1450 = vpack.c.b16 %v1308, %v1307
    %v1451 = vpack.c.b16 %v1310, %v1309
    %v1452 = vpack.c.b16 %v1312, %v1311
    %v1453 = vpack.c.b16 %v1314, %v1313
    %v1454 = vpack.c.b16 %v1316, %v1315
    %v1455 = vpack.c.b16 %v1318, %v1317
    %v1456 = vpack.c.b16 %v1320, %v1319
    %v1457 = vpack.c.b16 %v1322, %v1321
    %v1458 = vpack.c.b16 %v1324, %v1323
    %v1459 = vpack.c.b16 %v1326, %v1325
    %v1460 = vpack.c.b16 %v1328, %v1327
    %v1461 = vpack.c.b16 %v1330, %v1329
    %v1462 = vpack.c.b16 %v1332, %v1331
    %v1463 = vpack.c.b16 %v1334, %v1333
    %v1464 = vpack.c.b16 %v1336, %v1335
    %1593 = vmatpush.bf16.msra.mxu0 %v1344
    %1594 = vmatpush.bf16.msra.mxu0 %v1343
    %1595 = vmatpush.bf16.msra.mxu0 %v1342
    %1596 = vmatpush.bf16.msra.mxu0 %v1341
    %1597 = vmatpush.bf16.msra.mxu0 %v1340
    %1598 = vmatpush.bf16.msra.mxu0 %v1339
    %1599 = vmatpush.bf16.msra.mxu0 %v1338
    %1600 = vmatpush.bf16.msra.mxu0 %v1337
    %1601 = vmatmul.bf16.gmra.mxu0 %v553
    %v1602 = vpop.f32.mrf.mxu0
    %v1603 = vadd.f32 0.0, %v1602
    %v1604 = vpop.f32.mrf.mxu0
    %v1605 = vadd.f32 0.0, %v1604
    %1606 = vdwg.mxu0
    %1607 = vmatpush.bf16.msra.mxu0 %v1352
    %1608 = vmatpush.bf16.msra.mxu0 %v1351
    %1609 = vmatpush.bf16.msra.mxu0 %v1350
    %1610 = vmatpush.bf16.msra.mxu0 %v1349
    %1611 = vmatpush.bf16.msra.mxu0 %v1348
    %1612 = vmatpush.bf16.msra.mxu0 %v1347
    %1613 = vmatpush.bf16.msra.mxu0 %v1346
    %1614 = vmatpush.bf16.msra.mxu0 %v1345
    %1615 = vmatmul.bf16.gmra.mxu0 %v554
    %v1616 = vpop.f32.mrf.mxu0
    %v1617 = vadd.f32 %v1603, %v1616
    %v1618 = vpop.f32.mrf.mxu0
    %v1619 = vadd.f32 %v1605, %v1618
    %1620 = vdwg.mxu0
    %1621 = vmatpush.bf16.msra.mxu0 %v1360
    %1622 = vmatpush.bf16.msra.mxu0 %v1359
    %1623 = vmatpush.bf16.msra.mxu0 %v1358
    %1624 = vmatpush.bf16.msra.mxu0 %v1357
    %1625 = vmatpush.bf16.msra.mxu0 %v1356
    %1626 = vmatpush.bf16.msra.mxu0 %v1355
    %1627 = vmatpush.bf16.msra.mxu0 %v1354
    %1628 = vmatpush.bf16.msra.mxu0 %v1353
    %1629 = vmatmul.bf16.gmra.mxu0 %v555
    %v1630 = vpop.f32.mrf.mxu0
    %v1631 = vadd.f32 %v1617, %v1630
    %v1632 = vpop.f32.mrf.mxu0
    %v1633 = vadd.f32 %v1619, %v1632
    %1634 = vdwg.mxu0
    %1635 = vmatpush.bf16.msra.mxu0 %v1368
    %1636 = vmatpush.bf16.msra.mxu0 %v1367
    %1637 = vmatpush.bf16.msra.mxu0 %v1366
    %1638 = vmatpush.bf16.msra.mxu0 %v1365
    %1639 = vmatpush.bf16.msra.mxu0 %v1364
    %1640 = vmatpush.bf16.msra.mxu0 %v1363
    %1641 = vmatpush.bf16.msra.mxu0 %v1362
    %1642 = vmatpush.bf16.msra.mxu0 %v1361
    %1643 = vmatmul.bf16.gmra.mxu0 %v556
    %v1644 = vpop.f32.mrf.mxu0
    %v1645 = vadd.f32 %v1631, %v1644
    %v1646 = vpop.f32.mrf.mxu0
    %v1647 = vadd.f32 %v1633, %v1646
    %1648 = vdwg.mxu0
    %1649 = vmatpush.bf16.msra.mxu0 %v1376
    %1650 = vmatpush.bf16.msra.mxu0 %v1375
    %1651 = vmatpush.bf16.msra.mxu0 %v1374
    %1652 = vmatpush.bf16.msra.mxu0 %v1373
    %1653 = vmatpush.bf16.msra.mxu0 %v1372
    %1654 = vmatpush.bf16.msra.mxu0 %v1371
    %1655 = vmatpush.bf16.msra.mxu0 %v1370
    %1656 = vmatpush.bf16.msra.mxu0 %v1369
    %1657 = vmatmul.bf16.gmra.mxu0 %v557
    %v1658 = vpop.f32.mrf.mxu0
    %v1659 = vadd.f32 %v1645, %v1658
    %v1660 = vpop.f32.mrf.mxu0
    %v1661 = vadd.f32 %v1647, %v1660
    %1662 = vdwg.mxu0
    %1663 = vmatpush.bf16.msra.mxu0 %v1384
    %1664 = vmatpush.bf16.msra.mxu0 %v1383
    %1665 = vmatpush.bf16.msra.mxu0 %v1382
    %1666 = vmatpush.bf16.msra.mxu0 %v1381
    %1667 = vmatpush.bf16.msra.mxu0 %v1380
    %1668 = vmatpush.bf16.msra.mxu0 %v1379
    %1669 = vmatpush.bf16.msra.mxu0 %v1378
    %1670 = vmatpush.bf16.msra.mxu0 %v1377
    %1671 = vmatmul.bf16.gmra.mxu0 %v558
    %v1672 = vpop.f32.mrf.mxu0
    %v1673 = vadd.f32 %v1659, %v1672
    %v1674 = vpop.f32.mrf.mxu0
    %v1675 = vadd.f32 %v1661, %v1674
    %1676 = vdwg.mxu0
    %1677 = vmatpush.bf16.msra.mxu0 %v1392
    %1678 = vmatpush.bf16.msra.mxu0 %v1391
    %1679 = vmatpush.bf16.msra.mxu0 %v1390
    %1680 = vmatpush.bf16.msra.mxu0 %v1389
    %1681 = vmatpush.bf16.msra.mxu0 %v1388
    %1682 = vmatpush.bf16.msra.mxu0 %v1387
    %1683 = vmatpush.bf16.msra.mxu0 %v1386
    %1684 = vmatpush.bf16.msra.mxu0 %v1385
    %1685 = vmatmul.bf16.gmra.mxu0 %v559
    %v1686 = vpop.f32.mrf.mxu0
    %v1687 = vadd.f32 %v1673, %v1686
    %v1688 = vpop.f32.mrf.mxu0
    %v1689 = vadd.f32 %v1675, %v1688
    %1690 = vdwg.mxu0
    %1691 = vmatpush.bf16.msra.mxu0 %v1400
    %1692 = vmatpush.bf16.msra.mxu0 %v1399
    %1693 = vmatpush.bf16.msra.mxu0 %v1398
    %1694 = vmatpush.bf16.msra.mxu0 %v1397
    %1695 = vmatpush.bf16.msra.mxu0 %v1396
    %1696 = vmatpush.bf16.msra.mxu0 %v1395
    %1697 = vmatpush.bf16.msra.mxu0 %v1394
    %1698 = vmatpush.bf16.msra.mxu0 %v1393
    %1699 = vmatmul.bf16.gmra.mxu0 %v560
    %v1700 = vpop.f32.mrf.mxu0
    %v1701 = vadd.f32 %v1687, %v1700
    %v1702 = vpop.f32.mrf.mxu0
    %v1703 = vadd.f32 %v1689, %v1702
    %1704 = vdwg.mxu0
    %1705 = vmatpush.bf16.msra.mxu0 %v1408
    %1706 = vmatpush.bf16.msra.mxu0 %v1407
    %1707 = vmatpush.bf16.msra.mxu0 %v1406
    %1708 = vmatpush.bf16.msra.mxu0 %v1405
    %1709 = vmatpush.bf16.msra.mxu0 %v1404
    %1710 = vmatpush.bf16.msra.mxu0 %v1403
    %1711 = vmatpush.bf16.msra.mxu0 %v1402
    %1712 = vmatpush.bf16.msra.mxu0 %v1401
    %1713 = vmatmul.bf16.gmra.mxu0 %v561
    %v1714 = vpop.f32.mrf.mxu0
    %v1715 = vadd.f32 %v1701, %v1714
    %v1716 = vpop.f32.mrf.mxu0
    %v1717 = vadd.f32 %v1703, %v1716
    %1718 = vdwg.mxu0
    %1719 = vmatpush.bf16.msra.mxu0 %v1416
    %1720 = vmatpush.bf16.msra.mxu0 %v1415
    %1721 = vmatpush.bf16.msra.mxu0 %v1414
    %1722 = vmatpush.bf16.msra.mxu0 %v1413
    %1723 = vmatpush.bf16.msra.mxu0 %v1412
    %1724 = vmatpush.bf16.msra.mxu0 %v1411
    %1725 = vmatpush.bf16.msra.mxu0 %v1410
    %1726 = vmatpush.bf16.msra.mxu0 %v1409
    %1727 = vmatmul.bf16.gmra.mxu0 %v562
    %v1728 = vpop.f32.mrf.mxu0
    %v1729 = vadd.f32 %v1715, %v1728
    %v1730 = vpop.f32.mrf.mxu0
    %v1731 = vadd.f32 %v1717, %v1730
    %1732 = vdwg.mxu0
    %1733 = vmatpush.bf16.msra.mxu0 %v1424
    %1734 = vmatpush.bf16.msra.mxu0 %v1423
    %1735 = vmatpush.bf16.msra.mxu0 %v1422
    %1736 = vmatpush.bf16.msra.mxu0 %v1421
    %1737 = vmatpush.bf16.msra.mxu0 %v1420
    %1738 = vmatpush.bf16.msra.mxu0 %v1419
    %1739 = vmatpush.bf16.msra.mxu0 %v1418
    %1740 = vmatpush.bf16.msra.mxu0 %v1417
    %1741 = vmatmul.bf16.gmra.mxu0 %v563
    %v1742 = vpop.f32.mrf.mxu0
    %v1743 = vadd.f32 %v1729, %v1742
    %v1744 = vpop.f32.mrf.mxu0
    %v1745 = vadd.f32 %v1731, %v1744
    %1746 = vdwg.mxu0
    %1747 = vmatpush.bf16.msra.mxu0 %v1432
    %1748 = vmatpush.bf16.msra.mxu0 %v1431
    %1749 = vmatpush.bf16.msra.mxu0 %v1430
    %1750 = vmatpush.bf16.msra.mxu0 %v1429
    %1751 = vmatpush.bf16.msra.mxu0 %v1428
    %1752 = vmatpush.bf16.msra.mxu0 %v1427
    %1753 = vmatpush.bf16.msra.mxu0 %v1426
    %1754 = vmatpush.bf16.msra.mxu0 %v1425
    %1755 = vmatmul.bf16.gmra.mxu0 %v564
    %v1756 = vpop.f32.mrf.mxu0
    %v1757 = vadd.f32 %v1743, %v1756
    %v1758 = vpop.f32.mrf.mxu0
    %v1759 = vadd.f32 %v1745, %v1758
    %1760 = vdwg.mxu0
    %1761 = vmatpush.bf16.msra.mxu0 %v1440
    %1762 = vmatpush.bf16.msra.mxu0 %v1439
    %1763 = vmatpush.bf16.msra.mxu0 %v1438
    %1764 = vmatpush.bf16.msra.mxu0 %v1437
    %1765 = vmatpush.bf16.msra.mxu0 %v1436
    %1766 = vmatpush.bf16.msra.mxu0 %v1435
    %1767 = vmatpush.bf16.msra.mxu0 %v1434
    %1768 = vmatpush.bf16.msra.mxu0 %v1433
    %1769 = vmatmul.bf16.gmra.mxu0 %v565
    %v1770 = vpop.f32.mrf.mxu0
    %v1771 = vadd.f32 %v1757, %v1770
    %v1772 = vpop.f32.mrf.mxu0
    %v1773 = vadd.f32 %v1759, %v1772
    %1774 = vdwg.mxu0
    %1775 = vmatpush.bf16.msra.mxu0 %v1448
    %1776 = vmatpush.bf16.msra.mxu0 %v1447
    %1777 = vmatpush.bf16.msra.mxu0 %v1446
    %1778 = vmatpush.bf16.msra.mxu0 %v1445
    %1779 = vmatpush.bf16.msra.mxu0 %v1444
    %1780 = vmatpush.bf16.msra.mxu0 %v1443
    %1781 = vmatpush.bf16.msra.mxu0 %v1442
    %1782 = vmatpush.bf16.msra.mxu0 %v1441
    %1783 = vmatmul.bf16.gmra.mxu0 %v566
    %v1784 = vpop.f32.mrf.mxu0
    %v1785 = vadd.f32 %v1771, %v1784
    %v1786 = vpop.f32.mrf.mxu0
    %v1787 = vadd.f32 %v1773, %v1786
    %1788 = vdwg.mxu0
    %1789 = vmatpush.bf16.msra.mxu0 %v1456
    %1790 = vmatpush.bf16.msra.mxu0 %v1455
    %1791 = vmatpush.bf16.msra.mxu0 %v1454
    %1792 = vmatpush.bf16.msra.mxu0 %v1453
    %1793 = vmatpush.bf16.msra.mxu0 %v1452
    %1794 = vmatpush.bf16.msra.mxu0 %v1451
    %1795 = vmatpush.bf16.msra.mxu0 %v1450
    %1796 = vmatpush.bf16.msra.mxu0 %v1449
    %1797 = vmatmul.bf16.gmra.mxu0 %v567
    %v1798 = vpop.f32.mrf.mxu0
    %v1799 = vadd.f32 %v1785, %v1798
    %v1800 = vpop.f32.mrf.mxu0
    %v1801 = vadd.f32 %v1787, %v1800
    %1802 = vdwg.mxu0
    %1803 = vmatpush.bf16.msra.mxu0 %v1464
    %1804 = vmatpush.bf16.msra.mxu0 %v1463
    %1805 = vmatpush.bf16.msra.mxu0 %v1462
    %1806 = vmatpush.bf16.msra.mxu0 %v1461
    %1807 = vmatpush.bf16.msra.mxu0 %v1460
    %1808 = vmatpush.bf16.msra.mxu0 %v1459
    %1809 = vmatpush.bf16.msra.mxu0 %v1458
    %1810 = vmatpush.bf16.msra.mxu0 %v1457
    %1811 = vmatmul.bf16.gmra.mxu0 %v568
    %v1812 = vpop.f32.mrf.mxu0
    %v1813 = vadd.f32 %v1799, %v1812
    %v1814 = vpop.f32.mrf.mxu0
    %v1815 = vadd.f32 %v1801, %v1814
    %1816 = vdwg.mxu0
    %v1817 = vld [vmem:[%s5] sm:$0xff]
    %v1818 = vld [vmem:[%s5 + $0x8] sm:$0xff]
    %v1819 = vadd.f32 %v1817, %v1813
    %v1820 = vadd.f32 %v1818, %v1815
    %v1821 = vld [vmem:[%s4] sm:$0x1]
    %v1823 = vperm.slane %v1821, 0
    %v1825 = vadd.f32 %v1819, %v1823
    %v1826 = vadd.f32 %v1820, %v1823
    %v1827 = vsel %vm293, %v1825, 0.0
    %1828 = vadd.xlane.f32.xlu0 %v1827
    %v1829 = vpop.xlane.xlu0 %1828
    %v1830 = vsel %vm293, %v1826, 0.0
    %1831 = vadd.xlane.f32.xlu0 %v1830
    %v1832 = vpop.xlane.xlu0 %1831
    %v1833 = vrcp.pop 32.0
    %v1834 = vmul.f32 32.0, %v1833
    %v1835 = vsub.f32 1.0, %v1834
    %v1836 = vmul.f32 %v1833, %v1835
    %v1837 = vadd.f32 %v1833, %v1836
    %vm1838 = vweird.f32 %v1833
    %v1839 = vsel %vm1838, %v1833, %v1837
    %v1840 = vmul.f32 %v1829, %v1839
    %v1841 = vmul.f32 %v1832, %v1839
    %v1842 = vsub.f32 %v1825, %v1840
    %v1843 = vsub.f32 %v1826, %v1841
    %v1844 = vmul.f32 %v1842, %v1842
    %v1845 = vmul.f32 %v1843, %v1843
    %v1846 = vsel %vm293, %v1844, 0.0
    %1847 = vadd.xlane.f32.xlu0 %v1846
    %v1848 = vpop.xlane.xlu0 %1847
    %v1849 = vsel %vm293, %v1845, 0.0
    %1850 = vadd.xlane.f32.xlu0 %v1849
    %v1851 = vpop.xlane.xlu0 %1850
    %v1852 = vmul.f32 %v1848, %v1839
    %v1853 = vmul.f32 %v1851, %v1839
    %v1854 = vadd.f32 %v1852, 1e-05
    %v1855 = vadd.f32 %v1853, 1e-05
    %v1856 = vrsqrt.pop %v1854
    %v1857 = vmul.f32 %v1856, %v1854
    %v1858 = vmul.f32 %v1857, %v1856
    %v1859 = vmul.f32 0.5, %v1858
    %v1860 = vsub.f32 1.5, %v1859
    %v1861 = vmul.f32 %v1856, %v1860
    %vm1862 = vweird.f32 %v1854
    %vm1863 = vweird.f32 %v1856
    %vm1864 = vmor %vm1862, %vm1863
    %v1865 = vsel %vm1864, %v1856, %v1861
    %v1866 = vrsqrt.pop %v1855
    %v1867 = vmul.f32 %v1866, %v1855
    %v1868 = vmul.f32 %v1867, %v1866
    %v1869 = vmul.f32 0.5, %v1868
    %v1870 = vsub.f32 1.5, %v1869
    %v1871 = vmul.f32 %v1866, %v1870
    %vm1872 = vweird.f32 %v1855
    %vm1873 = vweird.f32 %v1866
    %vm1874 = vmor %vm1872, %vm1873
    %v1875 = vsel %vm1874, %v1866, %v1871
    %v1876 = vmul.f32 %v1842, %v1865
    %v1877 = vmul.f32 %v1843, %v1875
    %v1878 = vld [vmem:[%s6] sm:$0x1]
    %v1880 = vperm.slane %v1878, 0
    %v1882 = vmul.f32 %v1876, %v1880
    %v1883 = vmul.f32 %v1877, %v1880
    %v1884 = vld [vmem:[%s7] sm:$0x1]
    %v1886 = vperm.slane %v1884, 0
    %v1888 = vadd.f32 %v1882, %v1886
    %v1889 = vadd.f32 %v1883, %v1886
    %1890 = vst.msk [vmem:[%s8] sm:$0xff] %vm293, %v1888
    %1891 = vst.msk [vmem:[%s8 + $0x8] sm:$0xff] %vm293, %v1889
    // Predicated region
    $region42: #{_lambda_.30} parent=1 // pred_check
      _
    $region43: #{_lambda_.30} parent=1 // pred_check_branch
      %1893 = sbr.rel (0) target = $region45
    $region44: #{_lambda_.30} parent=1 // pred_region
      _
    $region45: #{_lambda_.30} parent=1 // pred_fallthru
      _
    // Predicated region
    $region46: #{_lambda_.30} parent=1 // pred_check
      _
    $region47: #{_lambda_.30} parent=1 // pred_check_branch
      %1895 = sbr.rel (0) target = $region49
    $region48: #{_lambda_.30} parent=1 // pred_region
      _
    $region49: #{_lambda_.30} parent=1 // pred_fallthru
      _
    %1896 = vsyncpa [#allocation3], 1
    %1897 = vsyncpa [#allocation5], 1

</llo_original>
